<compile_context>
chip_gen: v6e
topology: v6e:2x2x1
jax: 0.10.0
libtpu: 0.0.40
codegen_flags: <defaults>
</compile_context>

<pallas_src>
import jax
import jax.numpy as jnp
from jax import lax
from jax.experimental import pallas as pl
from jax.experimental.pallas import tpu as pltpu

LANE = 128
BN_EPS = 1e-5
LRELU_SLOPE = 0.01  # PyTorch LeakyReLU default


def _leaky_relu(x):
    return jnp.where(x > 0, x, LRELU_SLOPE * x)


def _round_up(x, m):
    return ((x + m - 1) // m) * m


# --------------------------------------------------------------------------- #
# Kernels
# --------------------------------------------------------------------------- #
def make_conv_stats_kernel(*, ks, W0, Hout, Cin_real, Opad, pad_rows, fuse_bn_in):
    """Valid ks x ks conv (stride 1) as one bf16 MXU GEMM over a row-flattened
    image, optionally preceded by a fused BatchNorm+LeakyReLU of the previous
    block, plus per-image (sum, sum^2) channel stats for the following BN.

    Row-flattened layout: activation rows are indexed r = h * W0 + w.  The patch
    row for output position (h, w) and tap (ki, kj) is simply row r + ki*W0 + kj,
    so patches come from ks*ks *static* row-shifted slices (no reshapes).
    Output columns with w >= Wout ("wrap" columns) are computed but masked to 0,
    so summing the stored tile gives exact BN statistics.
    """
    M = Hout * W0  # number of GEMM rows actually computed

    def kernel(*refs):
        if fuse_bn_in:
            x_ref, scale_ref, shift_ref, w_ref, mask_ref, o_ref, stats_ref = refs
        else:
            x_ref, w_ref, mask_ref, o_ref, stats_ref = refs

        x = x_ref[0][:, :Cin_real]                          # (L_in, Cin_real) f32
        if fuse_bn_in:
            scale = scale_ref[...][:, :Cin_real]            # (1, Cin_real)
            shift = shift_ref[...][:, :Cin_real]
            x = _leaky_relu(x * scale + shift)              # BN + LReLU of prev block

        # (M, ks*ks*Cin_real) patch matrix from static row-shifted slices.
        cols = []
        for ki in range(ks):
            for kj in range(ks):
                off = ki * W0 + kj
                cols.append(x[off:off + M, :])
        patches = jnp.concatenate(cols, axis=1).astype(jnp.bfloat16)

        y = jnp.dot(patches, w_ref[...],
                    preferred_element_type=jnp.float32)     # (M, Opad) f32

        # Zero wrap-around columns so they contribute nothing to the BN stats
        # (and the stored buffer stays clean for the next stage).
        y = y * mask_ref[...]                               # (M, 1) broadcast

        # Lane-dense full-block store (valid rows + `pad_rows` zero slack rows).
        o_ref[...] = jnp.concatenate(
            [y, jnp.zeros((pad_rows, Opad), jnp.float32)], axis=0)[None]

        # Per-image BN partials (f32 accumulators).
        s = jnp.sum(y, axis=0, keepdims=True)               # (1, Opad)
        ss = jnp.sum(y * y, axis=0, keepdims=True)          # (1, Opad)
        stats_ref[...] = jnp.concatenate([s, ss], axis=0)[None]

    return kernel


def bn_lrelu_kernel(y_ref, scale_ref, shift_ref, o_ref):
    """Final BatchNorm (precomputed per-channel scale/shift) + LeakyReLU."""
    z = y_ref[0] * scale_ref[...] + shift_ref[...]
    o_ref[...] = _leaky_relu(z)[None]


# --------------------------------------------------------------------------- #
# Host-side helpers
# --------------------------------------------------------------------------- #
def _prep_weight(w_oihw, Opad, ks):
    """(O, I, kh, kw) -> (kh*kw*I, Opad) bf16, matching the kernel's patch order."""
    O_, I_ = w_oihw.shape[0], w_oihw.shape[1]
    wf = jnp.transpose(w_oihw, (2, 3, 1, 0)).reshape(ks * ks * I_, O_)
    wf = jnp.pad(wf, ((0, 0), (0, Opad - O_)))
    return wf.astype(jnp.bfloat16)


def _pad_channels(v, Opad):
    return jnp.pad(v, (0, Opad - v.shape[0])).reshape(1, Opad).astype(jnp.float32)


def _col_mask(Hout, Wout, W0):
    """(Hout*W0, 1) f32 mask: 1 where the flattened row's column index w < Wout."""
    m = (jnp.arange(W0) < Wout).astype(jnp.float32)
    return jnp.tile(m, (Hout,)).reshape(Hout * W0, 1)


def _bn_scale_shift(stats, count, gamma_p, beta_p):
    """Per-channel scale/shift from summed (sum, sum^2) partials (train-mode BN)."""
    tot = jnp.sum(stats, axis=0)                            # (2, Opad)
    mean = tot[0:1, :] / count
    var = jnp.maximum(tot[1:2, :] / count - mean * mean, 0.0)  # biased var, clamped
    rstd = lax.rsqrt(var + BN_EPS)
    scale = gamma_p * rstd
    shift = beta_p - mean * scale
    return scale, shift


def conv_layer_forward(x_nchw, params, ks=3):
    """Full convLayer forward (NCHW in / NCHW out), training-mode BatchNorm."""
    N, Cin, H0, W0 = x_nchw.shape
    Cout = params["w1"].shape[0]
    Opad = _round_up(max(Cout, LANE), LANE)
    H1, W1 = H0 - (ks - 1), W0 - (ks - 1)
    H2, W2 = H1 - (ks - 1), W1 - (ks - 1)
    pad_rows = W0                                           # >= ks-1 slack rows
    L_in, L1, L2 = H0 * W0 + pad_rows, H1 * W0 + pad_rows, H2 * W0 + pad_rows
    M1, M2 = H1 * W0, H2 * W0
    K1, K2 = ks * ks * Cin, ks * ks * Cout

    # NCHW -> row-flattened NHWC (+ `pad_rows` trailing zero rows).
    x_flat = jnp.transpose(x_nchw, (0, 2, 3, 1)).reshape(N, H0 * W0, Cin)
    x_flat = jnp.concatenate(
        [x_flat, jnp.zeros((N, pad_rows, Cin), x_flat.dtype)], axis=1)

    w1f = _prep_weight(params["w1"], Opad, ks)
    w2f = _prep_weight(params["w2"], Opad, ks)
    g1, b1 = _pad_channels(params["g1"], Opad), _pad_channels(params["beta1"], Opad)
    g2, b2 = _pad_channels(params["g2"], Opad), _pad_channels(params["beta2"], Opad)
    # params["b1"] / params["b2"] (conv biases) are intentionally unused:
    # train-mode BatchNorm's batch-mean subtraction cancels them exactly.

    mask1, mask2 = _col_mask(H1, W1, W0), _col_mask(H2, W2, W0)
    cparams = pltpu.CompilerParams(dimension_semantics=("parallel",))

    # ---- pass A: conv1 + BN1 partial stats ----------------------------------
    y1, st1 = pl.pallas_call(
        make_conv_stats_kernel(ks=ks, W0=W0, Hout=H1, Cin_real=Cin, Opad=Opad,
                               pad_rows=pad_rows, fuse_bn_in=False),
        grid=(N,),
        in_specs=[
            pl.BlockSpec((1, L_in, Cin), lambda n: (n, 0, 0)),
            pl.BlockSpec((K1, Opad), lambda n: (0, 0)),
            pl.BlockSpec((M1, 1), lambda n: (0, 0)),
        ],
        out_specs=(
            pl.BlockSpec((1, L1, Opad), lambda n: (n, 0, 0)),
            pl.BlockSpec((1, 2, Opad), lambda n: (n, 0, 0)),
        ),
        out_shape=(
            jax.ShapeDtypeStruct((N, L1, Opad), jnp.float32),
            jax.ShapeDtypeStruct((N, 2, Opad), jnp.float32),
        ),
        compiler_params=cparams,
        cost_estimate=pl.CostEstimate(
            flops=2 * N * M1 * K1 * Opad,
            transcendentals=0,
            bytes_accessed=4 * N * (L_in * Cin + (L1 + 2) * Opad) + 2 * K1 * Opad),
    )(x_flat, w1f, mask1)
    scale1, shift1 = _bn_scale_shift(st1, float(N * H1 * W1), g1, b1)

    # ---- pass B: BN1 + LReLU1 + conv2 + BN2 partial stats --------------------
    y2, st2 = pl.pallas_call(
        make_conv_stats_kernel(ks=ks, W0=W0, Hout=H2, Cin_real=Cout, Opad=Opad,
                               pad_rows=pad_rows, fuse_bn_in=True),
        grid=(N,),
        in_specs=[
            pl.BlockSpec((1, L1, Opad), lambda n: (n, 0, 0)),
            pl.BlockSpec((1, Opad), lambda n: (0, 0)),
            pl.BlockSpec((1, Opad), lambda n: (0, 0)),
            pl.BlockSpec((K2, Opad), lambda n: (0, 0)),
            pl.BlockSpec((M2, 1), lambda n: (0, 0)),
        ],
        out_specs=(
            pl.BlockSpec((1, L2, Opad), lambda n: (n, 0, 0)),
            pl.BlockSpec((1, 2, Opad), lambda n: (n, 0, 0)),
        ),
        out_shape=(
            jax.ShapeDtypeStruct((N, L2, Opad), jnp.float32),
            jax.ShapeDtypeStruct((N, 2, Opad), jnp.float32),
        ),
        compiler_params=cparams,
        cost_estimate=pl.CostEstimate(
            flops=2 * N * M2 * K2 * Opad,
            transcendentals=0,
            bytes_accessed=4 * N * ((L1 + L2 + 2) * Opad) + 2 * K2 * Opad),
    )(y1, scale1, shift1, w2f, mask2)
    scale2, shift2 = _bn_scale_shift(st2, float(N * H2 * W2), g2, b2)

    # ---- pass C: BN2 + LReLU2 -------------------------------------------------
    out_full = pl.pallas_call(
        bn_lrelu_kernel,
        grid=(N,),
        in_specs=[
            pl.BlockSpec((1, L2, Opad), lambda n: (n, 0, 0)),
            pl.BlockSpec((1, Opad), lambda n: (0, 0)),
            pl.BlockSpec((1, Opad), lambda n: (0, 0)),
        ],
        out_specs=pl.BlockSpec((1, L2, Opad), lambda n: (n, 0, 0)),
        out_shape=jax.ShapeDtypeStruct((N, L2, Opad), jnp.float32),
        compiler_params=cparams,
    )(y2, scale2, shift2)

    # Strip padding: (N, (H2+1)*W0, Opad) -> (N, H2, W2, Cout) -> NCHW.
    out = out_full.reshape(N, H2 + 1, W0, Opad)[:, :H2, :W2, :Cout]
    return jnp.transpose(out, (0, 3, 1, 2))


def init_params(key, in_ch, out_ch, ks=3):
    k1, k2, k3, k4 = jax.random.split(key, 4)
    return {
        # Conv weights (O, I, kh, kw) -- deterministic synthetic init.
        "w1": 0.1 * jax.random.normal(k1, (out_ch, in_ch, ks, ks), jnp.float32),
        "b1": 0.05 * jax.random.normal(k2, (out_ch,), jnp.float32),
        "w2": 0.1 * jax.random.normal(k3, (out_ch, out_ch, ks, ks), jnp.float32),
        "b2": 0.05 * jax.random.normal(k4, (out_ch,), jnp.float32),
        # BatchNorm affine params, PyTorch default init.
        "g1": jnp.ones((out_ch,), jnp.float32),
        "beta1": jnp.zeros((out_ch,), jnp.float32),
        "g2": jnp.ones((out_ch,), jnp.float32),
        "beta2": jnp.zeros((out_ch,), jnp.float32),
    }


if __name__ == "__main__":
    key = jax.random.PRNGKey(0)
    kx, kp = jax.random.split(key)

    N, in_ch, out_ch, HW, ks = 2, 4, 8, 16, 3
    x = jax.random.normal(kx, (N, in_ch, HW, HW), jnp.float32)   # NCHW like PyTorch
    params = init_params(kp, in_ch, out_ch, ks)

    fwd = jax.jit(lambda xx: conv_layer_forward(xx, params, ks))
    out = jax.block_until_ready(fwd(x))

    expected_hw = HW - 2 * (ks - 1)  # two valid 3x3 convs: 16 -> 14 -> 12
    assert out.shape == (N, out_ch, expected_hw, expected_hw), out.shape
    assert bool(jnp.all(jnp.isfinite(out)))
    print("KERNEL_OK")
</pallas_src>

<mosaic_0001>
module attributes {stable_mosaic.version = 11 : i64} {
  func.func @kernel(%arg0: i32, %arg1: memref<1x272x4xf32, #tpu.memory_space<vmem>>, %arg2: memref<36x128xbf16, #tpu.memory_space<vmem>>, %arg3: memref<224x1xf32, #tpu.memory_space<vmem>>, %arg4: memref<1x240x128xf32, #tpu.memory_space<vmem>>, %arg5: memref<1x2x128xf32, #tpu.memory_space<vmem>>) attributes {dimension_semantics = [#tpu.dimension_semantics<parallel>], iteration_bounds = array<i64: 2>, scalar_prefetch = 0 : i64, scratch_operands = 0 : i64, tpu.core_type = #tpu.core_type<tc>, window_params = [{transform_indices = @transform_0, window_bounds = array<i64: 1, 272, 4>}, {pipeline_mode = #tpu.pipeline_mode<synchronous>, transform_indices = @transform_1, window_bounds = array<i64: 36, 128>}, {pipeline_mode = #tpu.pipeline_mode<synchronous>, transform_indices = @transform_2, window_bounds = array<i64: 224, 1>}, {transform_indices = @transform_3, window_bounds = array<i64: 1, 240, 128>}, {transform_indices = @transform_4, window_bounds = array<i64: 1, 2, 128>}]} {
    %c0 = arith.constant 0 : index
    %c0_0 = arith.constant 0 : index
    %c0_1 = arith.constant 0 : index
    %0 = vector.load %arg1[%c0, %c0_0, %c0_1] : memref<1x272x4xf32, #tpu.memory_space<vmem>>, vector<1x272x4xf32>
    %1 = vector.shape_cast %0 : vector<1x272x4xf32> to vector<272x4xf32>
    %2 = vector.extract_strided_slice %1 {offsets = [0, 0], sizes = [224, 4], strides = [1, 1]} : vector<272x4xf32> to vector<224x4xf32>
    %3 = vector.extract_strided_slice %1 {offsets = [1, 0], sizes = [224, 4], strides = [1, 1]} : vector<272x4xf32> to vector<224x4xf32>
    %4 = vector.extract_strided_slice %1 {offsets = [2, 0], sizes = [224, 4], strides = [1, 1]} : vector<272x4xf32> to vector<224x4xf32>
    %5 = vector.extract_strided_slice %1 {offsets = [16, 0], sizes = [224, 4], strides = [1, 1]} : vector<272x4xf32> to vector<224x4xf32>
    %6 = vector.extract_strided_slice %1 {offsets = [17, 0], sizes = [224, 4], strides = [1, 1]} : vector<272x4xf32> to vector<224x4xf32>
    %7 = vector.extract_strided_slice %1 {offsets = [18, 0], sizes = [224, 4], strides = [1, 1]} : vector<272x4xf32> to vector<224x4xf32>
    %8 = vector.extract_strided_slice %1 {offsets = [32, 0], sizes = [224, 4], strides = [1, 1]} : vector<272x4xf32> to vector<224x4xf32>
    %9 = vector.extract_strided_slice %1 {offsets = [33, 0], sizes = [224, 4], strides = [1, 1]} : vector<272x4xf32> to vector<224x4xf32>
    %10 = vector.extract_strided_slice %1 {offsets = [34, 0], sizes = [224, 4], strides = [1, 1]} : vector<272x4xf32> to vector<224x4xf32>
    %11 = tpu.concatenate %2, %3, %4, %5, %6, %7, %8, %9, %10 in 1 : vector<224x4xf32>, vector<224x4xf32>, vector<224x4xf32>, vector<224x4xf32>, vector<224x4xf32>, vector<224x4xf32>, vector<224x4xf32>, vector<224x4xf32>, vector<224x4xf32> -> vector<224x36xf32>
    %12 = arith.truncf %11 : vector<224x36xf32> to vector<224x36xbf16>
    %c0_2 = arith.constant 0 : index
    %c0_3 = arith.constant 0 : index
    %13 = vector.load %arg2[%c0_2, %c0_3] : memref<36x128xbf16, #tpu.memory_space<vmem>>, vector<36x128xbf16>
    %cst = arith.constant dense<0.000000e+00> : vector<224x128xf32>
    %14 = tpu.matmul %12, %13, %cst {dimension_numbers = #tpu.dot_dimension_numbers<[1], [0], [0], [1], [0, 0, 1, 1], [], []>} : vector<224x36xbf16>, vector<36x128xbf16>, vector<224x128xf32> -> vector<224x128xf32>
    %c0_4 = arith.constant 0 : index
    %c0_5 = arith.constant 0 : index
    %15 = vector.load %arg3[%c0_4, %c0_5] : memref<224x1xf32, #tpu.memory_space<vmem>>, vector<224x1xf32>
    %16 = vector.broadcast %15 : vector<224x1xf32> to vector<224x128xf32>
    %17 = arith.mulf %14, %16 : vector<224x128xf32>
    %cst_6 = arith.constant 0.000000e+00 : f32
    %18 = vector.broadcast %cst_6 : f32 to vector<16x128xf32>
    %19 = tpu.concatenate %17, %18 in 0 : vector<224x128xf32>, vector<16x128xf32> -> vector<240x128xf32>
    %20 = vector.shape_cast %19 : vector<240x128xf32> to vector<1x240x128xf32>
    %c0_7 = arith.constant 0 : index
    %c0_8 = arith.constant 0 : index
    %c0_9 = arith.constant 0 : index
    %21 = vector.load %arg4[%c0_7, %c0_8, %c0_9] : memref<1x240x128xf32, #tpu.memory_space<vmem>>, vector<1x240x128xf32>
    tpu.vector_store %arg4[%c0_7, %c0_8, %c0_9], %20 {strides = array<i32>} : memref<1x240x128xf32, #tpu.memory_space<vmem>>, vector<1x240x128xf32>,
    %cst_10 = arith.constant dense<0.000000e+00> : vector<128xf32>
    %22 = vector.multi_reduction <add>, %17, %cst_10 [0] : vector<224x128xf32> to vector<128xf32>
    %23 = vector.shape_cast %22 : vector<128xf32> to vector<1x128xf32>
    %24 = arith.mulf %17, %17 : vector<224x128xf32>
    %cst_11 = arith.constant dense<0.000000e+00> : vector<128xf32>
    %25 = vector.multi_reduction <add>, %24, %cst_11 [0] : vector<224x128xf32> to vector<128xf32>
    %26 = vector.shape_cast %25 : vector<128xf32> to vector<1x128xf32>
    %27 = tpu.concatenate %23, %26 in 0 : vector<1x128xf32>, vector<1x128xf32> -> vector<2x128xf32>
    %28 = vector.shape_cast %27 : vector<2x128xf32> to vector<1x2x128xf32>
    %c0_12 = arith.constant 0 : index
    %c0_13 = arith.constant 0 : index
    %c0_14 = arith.constant 0 : index
    %29 = vector.load %arg5[%c0_12, %c0_13, %c0_14] : memref<1x2x128xf32, #tpu.memory_space<vmem>>, vector<1x2x128xf32>
    tpu.vector_store %arg5[%c0_12, %c0_13, %c0_14], %28 {strides = array<i32>} : memref<1x2x128xf32, #tpu.memory_space<vmem>>, vector<1x2x128xf32>,
    return
  }
  func.func @transform_0(%arg0: i32) -> (i32, i32, i32) {
    %c0_i32 = arith.constant 0 : i32
    %c0_i32_0 = arith.constant 0 : i32
    %c0_i32_1 = arith.constant 0 : i32
    return %arg0, %c0_i32, %c0_i32_0 : i32, i32, i32
  }
  func.func @transform_1(%arg0: i32) -> (i32, i32) {
    %c0_i32 = arith.constant 0 : i32
    %c0_i32_0 = arith.constant 0 : i32
    %c0_i32_1 = arith.constant 0 : i32
    return %c0_i32, %c0_i32_0 : i32, i32
  }
  func.func @transform_2(%arg0: i32) -> (i32, i32) {
    %c0_i32 = arith.constant 0 : i32
    %c0_i32_0 = arith.constant 0 : i32
    %c0_i32_1 = arith.constant 0 : i32
    return %c0_i32, %c0_i32_0 : i32, i32
  }
  func.func @transform_3(%arg0: i32) -> (i32, i32, i32) {
    %c0_i32 = arith.constant 0 : i32
    %c0_i32_0 = arith.constant 0 : i32
    %c0_i32_1 = arith.constant 0 : i32
    return %arg0, %c0_i32, %c0_i32_0 : i32, i32, i32
  }
  func.func @transform_4(%arg0: i32) -> (i32, i32, i32) {
    %c0_i32 = arith.constant 0 : i32
    %c0_i32_0 = arith.constant 0 : i32
    %c0_i32_1 = arith.constant 0 : i32
    return %arg0, %c0_i32, %c0_i32_0 : i32, i32, i32
  }
}

module attributes {stable_mosaic.version = 11 : i64} {
  func.func @kernel(%arg0: i32, %arg1: memref<1x240x128xf32, #tpu.memory_space<vmem>>, %arg2: memref<1x128xf32, #tpu.memory_space<vmem>>, %arg3: memref<1x128xf32, #tpu.memory_space<vmem>>, %arg4: memref<72x128xbf16, #tpu.memory_space<vmem>>, %arg5: memref<192x1xf32, #tpu.memory_space<vmem>>, %arg6: memref<1x208x128xf32, #tpu.memory_space<vmem>>, %arg7: memref<1x2x128xf32, #tpu.memory_space<vmem>>) attributes {dimension_semantics = [#tpu.dimension_semantics<parallel>], iteration_bounds = array<i64: 2>, scalar_prefetch = 0 : i64, scratch_operands = 0 : i64, tpu.core_type = #tpu.core_type<tc>, window_params = [{transform_indices = @transform_0, window_bounds = array<i64: 1, 240, 128>}, {pipeline_mode = #tpu.pipeline_mode<synchronous>, transform_indices = @transform_1, window_bounds = array<i64: 1, 128>}, {pipeline_mode = #tpu.pipeline_mode<synchronous>, transform_indices = @transform_2, window_bounds = array<i64: 1, 128>}, {pipeline_mode = #tpu.pipeline_mode<synchronous>, transform_indices = @transform_3, window_bounds = array<i64: 72, 128>}, {pipeline_mode = #tpu.pipeline_mode<synchronous>, transform_indices = @transform_4, window_bounds = array<i64: 192, 1>}, {transform_indices = @transform_5, window_bounds = array<i64: 1, 208, 128>}, {transform_indices = @transform_6, window_bounds = array<i64: 1, 2, 128>}]} {
    %c0 = arith.constant 0 : index
    %c0_0 = arith.constant 0 : index
    %c0_1 = arith.constant 0 : index
    %0 = vector.load %arg1[%c0, %c0_0, %c0_1] : memref<1x240x128xf32, #tpu.memory_space<vmem>>, vector<1x240x128xf32>
    %1 = vector.shape_cast %0 : vector<1x240x128xf32> to vector<240x128xf32>
    %2 = vector.extract_strided_slice %1 {offsets = [0, 0], sizes = [240, 8], strides = [1, 1]} : vector<240x128xf32> to vector<240x8xf32>
    %c0_2 = arith.constant 0 : index
    %c0_3 = arith.constant 0 : index
    %3 = vector.load %arg2[%c0_2, %c0_3] : memref<1x128xf32, #tpu.memory_space<vmem>>, vector<1x128xf32>
    %4 = vector.extract_strided_slice %3 {offsets = [0, 0], sizes = [1, 8], strides = [1, 1]} : vector<1x128xf32> to vector<1x8xf32>
    %c0_4 = arith.constant 0 : index
    %c0_5 = arith.constant 0 : index
    %5 = vector.load %arg3[%c0_4, %c0_5] : memref<1x128xf32, #tpu.memory_space<vmem>>, vector<1x128xf32>
    %6 = vector.extract_strided_slice %5 {offsets = [0, 0], sizes = [1, 8], strides = [1, 1]} : vector<1x128xf32> to vector<1x8xf32>
    %7 = vector.broadcast %4 : vector<1x8xf32> to vector<240x8xf32>
    %8 = arith.mulf %2, %7 : vector<240x8xf32>
    %9 = vector.broadcast %6 : vector<1x8xf32> to vector<240x8xf32>
    %10 = arith.addf %8, %9 : vector<240x8xf32>
    %cst = arith.constant 0.000000e+00 : f32
    %11 = vector.broadcast %cst : f32 to vector<240x8xf32>
    %12 = arith.cmpf ogt, %10, %11 : vector<240x8xf32>
    %cst_6 = arith.constant 0.00999999977 : f32
    %13 = vector.broadcast %cst_6 : f32 to vector<240x8xf32>
    %14 = arith.mulf %13, %10 : vector<240x8xf32>
    %15 = arith.select %12, %10, %14 : vector<240x8xi1>, vector<240x8xf32>
    %16 = vector.extract_strided_slice %15 {offsets = [0, 0], sizes = [192, 8], strides = [1, 1]} : vector<240x8xf32> to vector<192x8xf32>
    %17 = vector.extract_strided_slice %15 {offsets = [1, 0], sizes = [192, 8], strides = [1, 1]} : vector<240x8xf32> to vector<192x8xf32>
    %18 = vector.extract_strided_slice %15 {offsets = [2, 0], sizes = [192, 8], strides = [1, 1]} : vector<240x8xf32> to vector<192x8xf32>
    %19 = vector.extract_strided_slice %15 {offsets = [16, 0], sizes = [192, 8], strides = [1, 1]} : vector<240x8xf32> to vector<192x8xf32>
    %20 = vector.extract_strided_slice %15 {offsets = [17, 0], sizes = [192, 8], strides = [1, 1]} : vector<240x8xf32> to vector<192x8xf32>
    %21 = vector.extract_strided_slice %15 {offsets = [18, 0], sizes = [192, 8], strides = [1, 1]} : vector<240x8xf32> to vector<192x8xf32>
    %22 = vector.extract_strided_slice %15 {offsets = [32, 0], sizes = [192, 8], strides = [1, 1]} : vector<240x8xf32> to vector<192x8xf32>
    %23 = vector.extract_strided_slice %15 {offsets = [33, 0], sizes = [192, 8], strides = [1, 1]} : vector<240x8xf32> to vector<192x8xf32>
    %24 = vector.extract_strided_slice %15 {offsets = [34, 0], sizes = [192, 8], strides = [1, 1]} : vector<240x8xf32> to vector<192x8xf32>
    %25 = tpu.concatenate %16, %17, %18, %19, %20, %21, %22, %23, %24 in 1 : vector<192x8xf32>, vector<192x8xf32>, vector<192x8xf32>, vector<192x8xf32>, vector<192x8xf32>, vector<192x8xf32>, vector<192x8xf32>, vector<192x8xf32>, vector<192x8xf32> -> vector<192x72xf32>
    %26 = arith.truncf %25 : vector<192x72xf32> to vector<192x72xbf16>
    %c0_7 = arith.constant 0 : index
    %c0_8 = arith.constant 0 : index
    %27 = vector.load %arg4[%c0_7, %c0_8] : memref<72x128xbf16, #tpu.memory_space<vmem>>, vector<72x128xbf16>
    %cst_9 = arith.constant dense<0.000000e+00> : vector<192x128xf32>
    %28 = tpu.matmul %26, %27, %cst_9 {dimension_numbers = #tpu.dot_dimension_numbers<[1], [0], [0], [1], [0, 0, 1, 1], [], []>} : vector<192x72xbf16>, vector<72x128xbf16>, vector<192x128xf32> -> vector<192x128xf32>
    %c0_10 = arith.constant 0 : index
    %c0_11 = arith.constant 0 : index
    %29 = vector.load %arg5[%c0_10, %c0_11] : memref<192x1xf32, #tpu.memory_space<vmem>>, vector<192x1xf32>
    %30 = vector.broadcast %29 : vector<192x1xf32> to vector<192x128xf32>
    %31 = arith.mulf %28, %30 : vector<192x128xf32>
    %cst_12 = arith.constant 0.000000e+00 : f32
    %32 = vector.broadcast %cst_12 : f32 to vector<16x128xf32>
    %33 = tpu.concatenate %31, %32 in 0 : vector<192x128xf32>, vector<16x128xf32> -> vector<208x128xf32>
    %34 = vector.shape_cast %33 : vector<208x128xf32> to vector<1x208x128xf32>
    %c0_13 = arith.constant 0 : index
    %c0_14 = arith.constant 0 : index
    %c0_15 = arith.constant 0 : index
    %35 = vector.load %arg6[%c0_13, %c0_14, %c0_15] : memref<1x208x128xf32, #tpu.memory_space<vmem>>, vector<1x208x128xf32>
    tpu.vector_store %arg6[%c0_13, %c0_14, %c0_15], %34 {strides = array<i32>} : memref<1x208x128xf32, #tpu.memory_space<vmem>>, vector<1x208x128xf32>,
    %cst_16 = arith.constant dense<0.000000e+00> : vector<128xf32>
    %36 = vector.multi_reduction <add>, %31, %cst_16 [0] : vector<192x128xf32> to vector<128xf32>
    %37 = vector.shape_cast %36 : vector<128xf32> to vector<1x128xf32>
    %38 = arith.mulf %31, %31 : vector<192x128xf32>
    %cst_17 = arith.constant dense<0.000000e+00> : vector<128xf32>
    %39 = vector.multi_reduction <add>, %38, %cst_17 [0] : vector<192x128xf32> to vector<128xf32>
    %40 = vector.shape_cast %39 : vector<128xf32> to vector<1x128xf32>
    %41 = tpu.concatenate %37, %40 in 0 : vector<1x128xf32>, vector<1x128xf32> -> vector<2x128xf32>
    %42 = vector.shape_cast %41 : vector<2x128xf32> to vector<1x2x128xf32>
    %c0_18 = arith.constant 0 : index
    %c0_19 = arith.constant 0 : index
    %c0_20 = arith.constant 0 : index
    %43 = vector.load %arg7[%c0_18, %c0_19, %c0_20] : memref<1x2x128xf32, #tpu.memory_space<vmem>>, vector<1x2x128xf32>
    tpu.vector_store %arg7[%c0_18, %c0_19, %c0_20], %42 {strides = array<i32>} : memref<1x2x128xf32, #tpu.memory_space<vmem>>, vector<1x2x128xf32>,
    return
  }
  func.func @transform_0(%arg0: i32) -> (i32, i32, i32) {
    %c0_i32 = arith.constant 0 : i32
    %c0_i32_0 = arith.constant 0 : i32
    %c0_i32_1 = arith.constant 0 : i32
    return %arg0, %c0_i32, %c0_i32_0 : i32, i32, i32
  }
  func.func @transform_1(%arg0: i32) -> (i32, i32) {
    %c0_i32 = arith.constant 0 : i32
    %c0_i32_0 = arith.constant 0 : i32
    %c0_i32_1 = arith.constant 0 : i32
    return %c0_i32, %c0_i32_0 : i32, i32
  }
  func.func @transform_2(%arg0: i32) -> (i32, i32) {
    %c0_i32 = arith.constant 0 : i32
    %c0_i32_0 = arith.constant 0 : i32
    %c0_i32_1 = arith.constant 0 : i32
    return %c0_i32, %c0_i32_0 : i32, i32
  }
  func.func @transform_3(%arg0: i32) -> (i32, i32) {
    %c0_i32 = arith.constant 0 : i32
    %c0_i32_0 = arith.constant 0 : i32
    %c0_i32_1 = arith.constant 0 : i32
    return %c0_i32, %c0_i32_0 : i32, i32
  }
  func.func @transform_4(%arg0: i32) -> (i32, i32) {
    %c0_i32 = arith.constant 0 : i32
    %c0_i32_0 = arith.constant 0 : i32
    %c0_i32_1 = arith.constant 0 : i32
    return %c0_i32, %c0_i32_0 : i32, i32
  }
  func.func @transform_5(%arg0: i32) -> (i32, i32, i32) {
    %c0_i32 = arith.constant 0 : i32
    %c0_i32_0 = arith.constant 0 : i32
    %c0_i32_1 = arith.constant 0 : i32
    return %arg0, %c0_i32, %c0_i32_0 : i32, i32, i32
  }
  func.func @transform_6(%arg0: i32) -> (i32, i32, i32) {
    %c0_i32 = arith.constant 0 : i32
    %c0_i32_0 = arith.constant 0 : i32
    %c0_i32_1 = arith.constant 0 : i32
    return %arg0, %c0_i32, %c0_i32_0 : i32, i32, i32
  }
}

module attributes {stable_mosaic.version = 11 : i64} {
  func.func @bn_lrelu_kernel(%arg0: i32, %arg1: memref<1x208x128xf32, #tpu.memory_space<vmem>>, %arg2: memref<1x128xf32, #tpu.memory_space<vmem>>, %arg3: memref<1x128xf32, #tpu.memory_space<vmem>>, %arg4: memref<1x208x128xf32, #tpu.memory_space<vmem>>) attributes {dimension_semantics = [#tpu.dimension_semantics<parallel>], iteration_bounds = array<i64: 2>, scalar_prefetch = 0 : i64, scratch_operands = 0 : i64, tpu.core_type = #tpu.core_type<tc>, window_params = [{transform_indices = @transform_0, window_bounds = array<i64: 1, 208, 128>}, {pipeline_mode = #tpu.pipeline_mode<synchronous>, transform_indices = @transform_1, window_bounds = array<i64: 1, 128>}, {pipeline_mode = #tpu.pipeline_mode<synchronous>, transform_indices = @transform_2, window_bounds = array<i64: 1, 128>}, {transform_indices = @transform_3, window_bounds = array<i64: 1, 208, 128>}]} {
    %c0 = arith.constant 0 : index
    %c0_0 = arith.constant 0 : index
    %c0_1 = arith.constant 0 : index
    %0 = vector.load %arg1[%c0, %c0_0, %c0_1] : memref<1x208x128xf32, #tpu.memory_space<vmem>>, vector<1x208x128xf32>
    %1 = vector.shape_cast %0 : vector<1x208x128xf32> to vector<208x128xf32>
    %c0_2 = arith.constant 0 : index
    %c0_3 = arith.constant 0 : index
    %2 = vector.load %arg2[%c0_2, %c0_3] : memref<1x128xf32, #tpu.memory_space<vmem>>, vector<1x128xf32>
    %3 = vector.broadcast %2 : vector<1x128xf32> to vector<208x128xf32>
    %4 = arith.mulf %1, %3 : vector<208x128xf32>
    %c0_4 = arith.constant 0 : index
    %c0_5 = arith.constant 0 : index
    %5 = vector.load %arg3[%c0_4, %c0_5] : memref<1x128xf32, #tpu.memory_space<vmem>>, vector<1x128xf32>
    %6 = vector.broadcast %5 : vector<1x128xf32> to vector<208x128xf32>
    %7 = arith.addf %4, %6 : vector<208x128xf32>
    %cst = arith.constant 0.000000e+00 : f32
    %8 = vector.broadcast %cst : f32 to vector<208x128xf32>
    %9 = arith.cmpf ogt, %7, %8 : vector<208x128xf32>
    %cst_6 = arith.constant 0.00999999977 : f32
    %10 = vector.broadcast %cst_6 : f32 to vector<208x128xf32>
    %11 = arith.mulf %10, %7 : vector<208x128xf32>
    %12 = arith.select %9, %7, %11 : vector<208x128xi1>, vector<208x128xf32>
    %13 = vector.shape_cast %12 : vector<208x128xf32> to vector<1x208x128xf32>
    %c0_7 = arith.constant 0 : index
    %c0_8 = arith.constant 0 : index
    %c0_9 = arith.constant 0 : index
    %14 = vector.load %arg4[%c0_7, %c0_8, %c0_9] : memref<1x208x128xf32, #tpu.memory_space<vmem>>, vector<1x208x128xf32>
    tpu.vector_store %arg4[%c0_7, %c0_8, %c0_9], %13 {strides = array<i32>} : memref<1x208x128xf32, #tpu.memory_space<vmem>>, vector<1x208x128xf32>,
    return
  }
  func.func @transform_0(%arg0: i32) -> (i32, i32, i32) {
    %c0_i32 = arith.constant 0 : i32
    %c0_i32_0 = arith.constant 0 : i32
    %c0_i32_1 = arith.constant 0 : i32
    return %arg0, %c0_i32, %c0_i32_0 : i32, i32, i32
  }
  func.func @transform_1(%arg0: i32) -> (i32, i32) {
    %c0_i32 = arith.constant 0 : i32
    %c0_i32_0 = arith.constant 0 : i32
    %c0_i32_1 = arith.constant 0 : i32
    return %c0_i32, %c0_i32_0 : i32, i32
  }
  func.func @transform_2(%arg0: i32) -> (i32, i32) {
    %c0_i32 = arith.constant 0 : i32
    %c0_i32_0 = arith.constant 0 : i32
    %c0_i32_1 = arith.constant 0 : i32
    return %c0_i32, %c0_i32_0 : i32, i32
  }
  func.func @transform_3(%arg0: i32) -> (i32, i32, i32) {
    %c0_i32 = arith.constant 0 : i32
    %c0_i32_0 = arith.constant 0 : i32
    %c0_i32_1 = arith.constant 0 : i32
    return %arg0, %c0_i32, %c0_i32_0 : i32, i32, i32
  }
}

</mosaic_0001>

<llo_original>
// kernel: tile.13
$region0: #{tile.13}
  #allocation0 [shape = 's32[1]{0}', space=sflag, size = 0x4, scoped, tag = 'scoped memory for tile.13']
  %s0 = inlined_call_operand.vmem [shape: f32[16], index: 0, kind: input, shape index: {}]
  %s1 = inlined_call_operand.vmem [shape: f32[14,16], index: 1, kind: output, shape index: {}]
  // Predicated region
  $region2: #{tile.13} parent=0 // pred_check
    _
  $region3: #{tile.13} parent=0 // pred_check_branch
    %3 = sbr.rel (0) target = $region5
  $region4: #{tile.13} parent=0 // pred_region
    _
  $region5: #{tile.13} parent=0 // pred_fallthru
    _
  %v4 = vld [vmem:[%s0] ss:$0 sm:$0xff]
  %5 = vst [vmem:[%s1] sm:$0xff] %v4
  %s6 = scalar_lea.vmem %s1, 8
  %7 = vst [vmem:[%s6] sm:$0xff] %v4

// kernel: tile.0
$region0: #{tile.0}
  %s0 = inlined_call_operand.vmem [shape: f32[14,16], index: 0, kind: input, shape index: {}]
  %s1 = inlined_call_operand.vmem [shape: f32[224,1], index: 1, kind: output, shape index: {}]
  %v2 = vld [vmem:[%s0] sm:$0xff]
  %vm3 = vcmask 7168
  %4 = vst.msk [vmem:[%s1] ss:$16 sm:$0x3] %vm3, %v2
  %5 = vst.msk [vmem:[%s1] ss:$16 sm:$0xc] %vm3, %v2
  %6 = vst.msk [vmem:[%s1] ss:$16 sm:$0x30] %vm3, %v2
  %7 = vst.msk [vmem:[%s1] ss:$16 sm:$0xc0] %vm3, %v2
  %s8 = scalar_lea.vmem %s0, 8
  %v9 = vld [vmem:[%s8] sm:$0x3f]
  %vm10 = vcmask 7168
  %s11 = scalar_lea.vmem %s1, 128
  %12 = vst.msk [vmem:[%s11] ss:$16 sm:$0x3] %vm10, %v9
  %s13 = scalar_lea.vmem %s1, 128
  %14 = vst.msk [vmem:[%s13] ss:$16 sm:$0xc] %vm10, %v9
  %s15 = scalar_lea.vmem %s1, 128
  %16 = vst.msk [vmem:[%s15] ss:$16 sm:$0x30] %vm10, %v9
  %v17 = vld [vmem:[%s0] sm:$0xff]
  %18 = vrot.lane.b32.xlu0 %v17, 127
  %v19 = vpop.permute.xlu0 %18
  %vm20 = vcmask 7168
  %s21 = scalar_lea.vmem %s1, 1
  %22 = vst.msk [vmem:[%s21] ss:$16 sm:$0x3] %vm20, %v19
  %s23 = scalar_lea.vmem %s1, 1
  %24 = vst.msk [vmem:[%s23] ss:$16 sm:$0xc] %vm20, %v19
  %s25 = scalar_lea.vmem %s1, 1
  %26 = vst.msk [vmem:[%s25] ss:$16 sm:$0x30] %vm20, %v19
  %s27 = scalar_lea.vmem %s1, 1
  %28 = vst.msk [vmem:[%s27] ss:$16 sm:$0xc0] %vm20, %v19
  %s29 = scalar_lea.vmem %s0, 8
  %v30 = vld [vmem:[%s29] sm:$0x3f]
  %31 = vrot.lane.b32.xlu0 %v30, 127
  %v32 = vpop.permute.xlu0 %31
  %vm33 = vcmask 7168
  %s34 = scalar_lea.vmem %s1, 129
  %35 = vst.msk [vmem:[%s34] ss:$16 sm:$0x3] %vm33, %v32
  %s36 = scalar_lea.vmem %s1, 129
  %37 = vst.msk [vmem:[%s36] ss:$16 sm:$0xc] %vm33, %v32
  %s38 = scalar_lea.vmem %s1, 129
  %39 = vst.msk [vmem:[%s38] ss:$16 sm:$0x30] %vm33, %v32
  %v40 = vld [vmem:[%s0] sm:$0xff]
  %41 = vrot.lane.b32.xlu0 %v40, 126
  %v42 = vpop.permute.xlu0 %41
  %vm43 = vcmask 7168
  %s44 = scalar_lea.vmem %s1, 2
  %45 = vst.msk [vmem:[%s44] ss:$16 sm:$0x3] %vm43, %v42
  %s46 = scalar_lea.vmem %s1, 2
  %47 = vst.msk [vmem:[%s46] ss:$16 sm:$0xc] %vm43, %v42
  %s48 = scalar_lea.vmem %s1, 2
  %49 = vst.msk [vmem:[%s48] ss:$16 sm:$0x30] %vm43, %v42
  %s50 = scalar_lea.vmem %s1, 2
  %51 = vst.msk [vmem:[%s50] ss:$16 sm:$0xc0] %vm43, %v42
  %s52 = scalar_lea.vmem %s0, 8
  %v53 = vld [vmem:[%s52] sm:$0x3f]
  %54 = vrot.lane.b32.xlu0 %v53, 126
  %v55 = vpop.permute.xlu0 %54
  %vm56 = vcmask 7168
  %s57 = scalar_lea.vmem %s1, 130
  %58 = vst.msk [vmem:[%s57] ss:$16 sm:$0x3] %vm56, %v55
  %s59 = scalar_lea.vmem %s1, 130
  %60 = vst.msk [vmem:[%s59] ss:$16 sm:$0xc] %vm56, %v55
  %s61 = scalar_lea.vmem %s1, 130
  %62 = vst.msk [vmem:[%s61] ss:$16 sm:$0x30] %vm56, %v55
  %v63 = vld [vmem:[%s0] sm:$0xff]
  %64 = vrot.lane.b32.xlu0 %v63, 125
  %v65 = vpop.permute.xlu0 %64
  %vm66 = vcmask 7168
  %s67 = scalar_lea.vmem %s1, 3
  %68 = vst.msk [vmem:[%s67] ss:$16 sm:$0x3] %vm66, %v65
  %s69 = scalar_lea.vmem %s1, 3
  %70 = vst.msk [vmem:[%s69] ss:$16 sm:$0xc] %vm66, %v65
  %s71 = scalar_lea.vmem %s1, 3
  %72 = vst.msk [vmem:[%s71] ss:$16 sm:$0x30] %vm66, %v65
  %s73 = scalar_lea.vmem %s1, 3
  %74 = vst.msk [vmem:[%s73] ss:$16 sm:$0xc0] %vm66, %v65
  %s75 = scalar_lea.vmem %s0, 8
  %v76 = vld [vmem:[%s75] sm:$0x3f]
  %77 = vrot.lane.b32.xlu0 %v76, 125
  %v78 = vpop.permute.xlu0 %77
  %vm79 = vcmask 7168
  %s80 = scalar_lea.vmem %s1, 131
  %81 = vst.msk [vmem:[%s80] ss:$16 sm:$0x3] %vm79, %v78
  %s82 = scalar_lea.vmem %s1, 131
  %83 = vst.msk [vmem:[%s82] ss:$16 sm:$0xc] %vm79, %v78
  %s84 = scalar_lea.vmem %s1, 131
  %85 = vst.msk [vmem:[%s84] ss:$16 sm:$0x30] %vm79, %v78
  %v86 = vld [vmem:[%s0] sm:$0xff]
  %87 = vrot.lane.b32.xlu0 %v86, 124
  %v88 = vpop.permute.xlu0 %87
  %vm89 = vcmask 7168
  %s90 = scalar_lea.vmem %s1, 4
  %91 = vst.msk [vmem:[%s90] ss:$16 sm:$0x3] %vm89, %v88
  %s92 = scalar_lea.vmem %s1, 4
  %93 = vst.msk [vmem:[%s92] ss:$16 sm:$0xc] %vm89, %v88
  %s94 = scalar_lea.vmem %s1, 4
  %95 = vst.msk [vmem:[%s94] ss:$16 sm:$0x30] %vm89, %v88
  %s96 = scalar_lea.vmem %s1, 4
  %97 = vst.msk [vmem:[%s96] ss:$16 sm:$0xc0] %vm89, %v88
  %s98 = scalar_lea.vmem %s0, 8
  %v99 = vld [vmem:[%s98] sm:$0x3f]
  %100 = vrot.lane.b32.xlu0 %v99, 124
  %v101 = vpop.permute.xlu0 %100
  %vm102 = vcmask 7168
  %s103 = scalar_lea.vmem %s1, 132
  %104 = vst.msk [vmem:[%s103] ss:$16 sm:$0x3] %vm102, %v101
  %s105 = scalar_lea.vmem %s1, 132
  %106 = vst.msk [vmem:[%s105] ss:$16 sm:$0xc] %vm102, %v101
  %s107 = scalar_lea.vmem %s1, 132
  %108 = vst.msk [vmem:[%s107] ss:$16 sm:$0x30] %vm102, %v101
  %v109 = vld [vmem:[%s0] sm:$0xff]
  %110 = vrot.lane.b32.xlu0 %v109, 123
  %v111 = vpop.permute.xlu0 %110
  %vm112 = vcmask 7168
  %s113 = scalar_lea.vmem %s1, 5
  %114 = vst.msk [vmem:[%s113] ss:$16 sm:$0x3] %vm112, %v111
  %s115 = scalar_lea.vmem %s1, 5
  %116 = vst.msk [vmem:[%s115] ss:$16 sm:$0xc] %vm112, %v111
  %s117 = scalar_lea.vmem %s1, 5
  %118 = vst.msk [vmem:[%s117] ss:$16 sm:$0x30] %vm112, %v111
  %s119 = scalar_lea.vmem %s1, 5
  %120 = vst.msk [vmem:[%s119] ss:$16 sm:$0xc0] %vm112, %v111
  %s121 = scalar_lea.vmem %s0, 8
  %v122 = vld [vmem:[%s121] sm:$0x3f]
  %123 = vrot.lane.b32.xlu0 %v122, 123
  %v124 = vpop.permute.xlu0 %123
  %vm125 = vcmask 7168
  %s126 = scalar_lea.vmem %s1, 133
  %127 = vst.msk [vmem:[%s126] ss:$16 sm:$0x3] %vm125, %v124
  %s128 = scalar_lea.vmem %s1, 133
  %129 = vst.msk [vmem:[%s128] ss:$16 sm:$0xc] %vm125, %v124
  %s130 = scalar_lea.vmem %s1, 133
  %131 = vst.msk [vmem:[%s130] ss:$16 sm:$0x30] %vm125, %v124
  %v132 = vld [vmem:[%s0] sm:$0xff]
  %133 = vrot.lane.b32.xlu0 %v132, 122
  %v134 = vpop.permute.xlu0 %133
  %vm135 = vcmask 7168
  %s136 = scalar_lea.vmem %s1, 6
  %137 = vst.msk [vmem:[%s136] ss:$16 sm:$0x3] %vm135, %v134
  %s138 = scalar_lea.vmem %s1, 6
  %139 = vst.msk [vmem:[%s138] ss:$16 sm:$0xc] %vm135, %v134
  %s140 = scalar_lea.vmem %s1, 6
  %141 = vst.msk [vmem:[%s140] ss:$16 sm:$0x30] %vm135, %v134
  %s142 = scalar_lea.vmem %s1, 6
  %143 = vst.msk [vmem:[%s142] ss:$16 sm:$0xc0] %vm135, %v134
  %s144 = scalar_lea.vmem %s0, 8
  %v145 = vld [vmem:[%s144] sm:$0x3f]
  %146 = vrot.lane.b32.xlu0 %v145, 122
  %v147 = vpop.permute.xlu0 %146
  %vm148 = vcmask 7168
  %s149 = scalar_lea.vmem %s1, 134
  %150 = vst.msk [vmem:[%s149] ss:$16 sm:$0x3] %vm148, %v147
  %s151 = scalar_lea.vmem %s1, 134
  %152 = vst.msk [vmem:[%s151] ss:$16 sm:$0xc] %vm148, %v147
  %s153 = scalar_lea.vmem %s1, 134
  %154 = vst.msk [vmem:[%s153] ss:$16 sm:$0x30] %vm148, %v147
  %v155 = vld [vmem:[%s0] sm:$0xff]
  %156 = vrot.lane.b32.xlu0 %v155, 121
  %v157 = vpop.permute.xlu0 %156
  %vm158 = vcmask 7168
  %s159 = scalar_lea.vmem %s1, 7
  %160 = vst.msk [vmem:[%s159] ss:$16 sm:$0x3] %vm158, %v157
  %s161 = scalar_lea.vmem %s1, 7
  %162 = vst.msk [vmem:[%s161] ss:$16 sm:$0xc] %vm158, %v157
  %s163 = scalar_lea.vmem %s1, 7
  %164 = vst.msk [vmem:[%s163] ss:$16 sm:$0x30] %vm158, %v157
  %s165 = scalar_lea.vmem %s1, 7
  %166 = vst.msk [vmem:[%s165] ss:$16 sm:$0xc0] %vm158, %v157
  %s167 = scalar_lea.vmem %s0, 8
  %v168 = vld [vmem:[%s167] sm:$0x3f]
  %169 = vrot.lane.b32.xlu0 %v168, 121
  %v170 = vpop.permute.xlu0 %169
  %vm171 = vcmask 7168
  %s172 = scalar_lea.vmem %s1, 135
  %173 = vst.msk [vmem:[%s172] ss:$16 sm:$0x3] %vm171, %v170
  %s174 = scalar_lea.vmem %s1, 135
  %175 = vst.msk [vmem:[%s174] ss:$16 sm:$0xc] %vm171, %v170
  %s176 = scalar_lea.vmem %s1, 135
  %177 = vst.msk [vmem:[%s176] ss:$16 sm:$0x30] %vm171, %v170
  %v178 = vld [vmem:[%s0] sm:$0xff]
  %179 = vrot.lane.b32.xlu0 %v178, 120
  %v180 = vpop.permute.xlu0 %179
  %vm181 = vcmask 7168
  %s182 = scalar_lea.vmem %s1, 8
  %183 = vst.msk [vmem:[%s182] ss:$16 sm:$0x3] %vm181, %v180
  %s184 = scalar_lea.vmem %s1, 8
  %185 = vst.msk [vmem:[%s184] ss:$16 sm:$0xc] %vm181, %v180
  %s186 = scalar_lea.vmem %s1, 8
  %187 = vst.msk [vmem:[%s186] ss:$16 sm:$0x30] %vm181, %v180
  %s188 = scalar_lea.vmem %s1, 8
  %189 = vst.msk [vmem:[%s188] ss:$16 sm:$0xc0] %vm181, %v180
  %s190 = scalar_lea.vmem %s0, 8
  %v191 = vld [vmem:[%s190] sm:$0x3f]
  %192 = vrot.lane.b32.xlu0 %v191, 120
  %v193 = vpop.permute.xlu0 %192
  %vm194 = vcmask 7168
  %s195 = scalar_lea.vmem %s1, 136
  %196 = vst.msk [vmem:[%s195] ss:$16 sm:$0x3] %vm194, %v193
  %s197 = scalar_lea.vmem %s1, 136
  %198 = vst.msk [vmem:[%s197] ss:$16 sm:$0xc] %vm194, %v193
  %s199 = scalar_lea.vmem %s1, 136
  %200 = vst.msk [vmem:[%s199] ss:$16 sm:$0x30] %vm194, %v193
  %v201 = vld [vmem:[%s0] sm:$0xff]
  %202 = vrot.lane.b32.xlu0 %v201, 119
  %v203 = vpop.permute.xlu0 %202
  %vm204 = vcmask 7168
  %s205 = scalar_lea.vmem %s1, 9
  %206 = vst.msk [vmem:[%s205] ss:$16 sm:$0x3] %vm204, %v203
  %s207 = scalar_lea.vmem %s1, 9
  %208 = vst.msk [vmem:[%s207] ss:$16 sm:$0xc] %vm204, %v203
  %s209 = scalar_lea.vmem %s1, 9
  %210 = vst.msk [vmem:[%s209] ss:$16 sm:$0x30] %vm204, %v203
  %s211 = scalar_lea.vmem %s1, 9
  %212 = vst.msk [vmem:[%s211] ss:$16 sm:$0xc0] %vm204, %v203
  %s213 = scalar_lea.vmem %s0, 8
  %v214 = vld [vmem:[%s213] sm:$0x3f]
  %215 = vrot.lane.b32.xlu0 %v214, 119
  %v216 = vpop.permute.xlu0 %215
  %vm217 = vcmask 7168
  %s218 = scalar_lea.vmem %s1, 137
  %219 = vst.msk [vmem:[%s218] ss:$16 sm:$0x3] %vm217, %v216
  %s220 = scalar_lea.vmem %s1, 137
  %221 = vst.msk [vmem:[%s220] ss:$16 sm:$0xc] %vm217, %v216
  %s222 = scalar_lea.vmem %s1, 137
  %223 = vst.msk [vmem:[%s222] ss:$16 sm:$0x30] %vm217, %v216
  %v224 = vld [vmem:[%s0] sm:$0xff]
  %225 = vrot.lane.b32.xlu0 %v224, 118
  %v226 = vpop.permute.xlu0 %225
  %vm227 = vcmask 7168
  %s228 = scalar_lea.vmem %s1, 10
  %229 = vst.msk [vmem:[%s228] ss:$16 sm:$0x3] %vm227, %v226
  %s230 = scalar_lea.vmem %s1, 10
  %231 = vst.msk [vmem:[%s230] ss:$16 sm:$0xc] %vm227, %v226
  %s232 = scalar_lea.vmem %s1, 10
  %233 = vst.msk [vmem:[%s232] ss:$16 sm:$0x30] %vm227, %v226
  %s234 = scalar_lea.vmem %s1, 10
  %235 = vst.msk [vmem:[%s234] ss:$16 sm:$0xc0] %vm227, %v226
  %s236 = scalar_lea.vmem %s0, 8
  %v237 = vld [vmem:[%s236] sm:$0x3f]
  %238 = vrot.lane.b32.xlu0 %v237, 118
  %v239 = vpop.permute.xlu0 %238
  %vm240 = vcmask 7168
  %s241 = scalar_lea.vmem %s1, 138
  %242 = vst.msk [vmem:[%s241] ss:$16 sm:$0x3] %vm240, %v239
  %s243 = scalar_lea.vmem %s1, 138
  %244 = vst.msk [vmem:[%s243] ss:$16 sm:$0xc] %vm240, %v239
  %s245 = scalar_lea.vmem %s1, 138
  %246 = vst.msk [vmem:[%s245] ss:$16 sm:$0x30] %vm240, %v239
  %v247 = vld [vmem:[%s0] sm:$0xff]
  %248 = vrot.lane.b32.xlu0 %v247, 117
  %v249 = vpop.permute.xlu0 %248
  %vm250 = vcmask 7168
  %s251 = scalar_lea.vmem %s1, 11
  %252 = vst.msk [vmem:[%s251] ss:$16 sm:$0x3] %vm250, %v249
  %s253 = scalar_lea.vmem %s1, 11
  %254 = vst.msk [vmem:[%s253] ss:$16 sm:$0xc] %vm250, %v249
  %s255 = scalar_lea.vmem %s1, 11
  %256 = vst.msk [vmem:[%s255] ss:$16 sm:$0x30] %vm250, %v249
  %s257 = scalar_lea.vmem %s1, 11
  %258 = vst.msk [vmem:[%s257] ss:$16 sm:$0xc0] %vm250, %v249
  %s259 = scalar_lea.vmem %s0, 8
  %v260 = vld [vmem:[%s259] sm:$0x3f]
  %261 = vrot.lane.b32.xlu0 %v260, 117
  %v262 = vpop.permute.xlu0 %261
  %vm263 = vcmask 7168
  %s264 = scalar_lea.vmem %s1, 139
  %265 = vst.msk [vmem:[%s264] ss:$16 sm:$0x3] %vm263, %v262
  %s266 = scalar_lea.vmem %s1, 139
  %267 = vst.msk [vmem:[%s266] ss:$16 sm:$0xc] %vm263, %v262
  %s268 = scalar_lea.vmem %s1, 139
  %269 = vst.msk [vmem:[%s268] ss:$16 sm:$0x30] %vm263, %v262
  %v270 = vld [vmem:[%s0] sm:$0xff]
  %271 = vrot.lane.b32.xlu0 %v270, 116
  %v272 = vpop.permute.xlu0 %271
  %vm273 = vcmask 7168
  %s274 = scalar_lea.vmem %s1, 12
  %275 = vst.msk [vmem:[%s274] ss:$16 sm:$0x3] %vm273, %v272
  %s276 = scalar_lea.vmem %s1, 12
  %277 = vst.msk [vmem:[%s276] ss:$16 sm:$0xc] %vm273, %v272
  %s278 = scalar_lea.vmem %s1, 12
  %279 = vst.msk [vmem:[%s278] ss:$16 sm:$0x30] %vm273, %v272
  %s280 = scalar_lea.vmem %s1, 12
  %281 = vst.msk [vmem:[%s280] ss:$16 sm:$0xc0] %vm273, %v272
  %s282 = scalar_lea.vmem %s0, 8
  %v283 = vld [vmem:[%s282] sm:$0x3f]
  %284 = vrot.lane.b32.xlu0 %v283, 116
  %v285 = vpop.permute.xlu0 %284
  %vm286 = vcmask 7168
  %s287 = scalar_lea.vmem %s1, 140
  %288 = vst.msk [vmem:[%s287] ss:$16 sm:$0x3] %vm286, %v285
  %s289 = scalar_lea.vmem %s1, 140
  %290 = vst.msk [vmem:[%s289] ss:$16 sm:$0xc] %vm286, %v285
  %s291 = scalar_lea.vmem %s1, 140
  %292 = vst.msk [vmem:[%s291] ss:$16 sm:$0x30] %vm286, %v285
  %v293 = vld [vmem:[%s0] sm:$0xff]
  %294 = vrot.lane.b32.xlu0 %v293, 115
  %v295 = vpop.permute.xlu0 %294
  %vm296 = vcmask 7168
  %s297 = scalar_lea.vmem %s1, 13
  %298 = vst.msk [vmem:[%s297] ss:$16 sm:$0x3] %vm296, %v295
  %s299 = scalar_lea.vmem %s1, 13
  %300 = vst.msk [vmem:[%s299] ss:$16 sm:$0xc] %vm296, %v295
  %s301 = scalar_lea.vmem %s1, 13
  %302 = vst.msk [vmem:[%s301] ss:$16 sm:$0x30] %vm296, %v295
  %s303 = scalar_lea.vmem %s1, 13
  %304 = vst.msk [vmem:[%s303] ss:$16 sm:$0xc0] %vm296, %v295
  %s305 = scalar_lea.vmem %s0, 8
  %v306 = vld [vmem:[%s305] sm:$0x3f]
  %307 = vrot.lane.b32.xlu0 %v306, 115
  %v308 = vpop.permute.xlu0 %307
  %vm309 = vcmask 7168
  %s310 = scalar_lea.vmem %s1, 141
  %311 = vst.msk [vmem:[%s310] ss:$16 sm:$0x3] %vm309, %v308
  %s312 = scalar_lea.vmem %s1, 141
  %313 = vst.msk [vmem:[%s312] ss:$16 sm:$0xc] %vm309, %v308
  %s314 = scalar_lea.vmem %s1, 141
  %315 = vst.msk [vmem:[%s314] ss:$16 sm:$0x30] %vm309, %v308
  %v316 = vld [vmem:[%s0] sm:$0xff]
  %317 = vrot.lane.b32.xlu0 %v316, 114
  %v318 = vpop.permute.xlu0 %317
  %vm319 = vcmask 7168
  %s320 = scalar_lea.vmem %s1, 14
  %321 = vst.msk [vmem:[%s320] ss:$16 sm:$0x3] %vm319, %v318
  %s322 = scalar_lea.vmem %s1, 14
  %323 = vst.msk [vmem:[%s322] ss:$16 sm:$0xc] %vm319, %v318
  %s324 = scalar_lea.vmem %s1, 14
  %325 = vst.msk [vmem:[%s324] ss:$16 sm:$0x30] %vm319, %v318
  %s326 = scalar_lea.vmem %s1, 14
  %327 = vst.msk [vmem:[%s326] ss:$16 sm:$0xc0] %vm319, %v318
  %s328 = scalar_lea.vmem %s0, 8
  %v329 = vld [vmem:[%s328] sm:$0x3f]
  %330 = vrot.lane.b32.xlu0 %v329, 114
  %v331 = vpop.permute.xlu0 %330
  %vm332 = vcmask 7168
  %s333 = scalar_lea.vmem %s1, 142
  %334 = vst.msk [vmem:[%s333] ss:$16 sm:$0x3] %vm332, %v331
  %s335 = scalar_lea.vmem %s1, 142
  %336 = vst.msk [vmem:[%s335] ss:$16 sm:$0xc] %vm332, %v331
  %s337 = scalar_lea.vmem %s1, 142
  %338 = vst.msk [vmem:[%s337] ss:$16 sm:$0x30] %vm332, %v331
  %v339 = vld [vmem:[%s0] sm:$0xff]
  %340 = vrot.lane.b32.xlu0 %v339, 113
  %v341 = vpop.permute.xlu0 %340
  %vm342 = vcmask 7168
  %s343 = scalar_lea.vmem %s1, 15
  %344 = vst.msk [vmem:[%s343] ss:$16 sm:$0x3] %vm342, %v341
  %s345 = scalar_lea.vmem %s1, 15
  %346 = vst.msk [vmem:[%s345] ss:$16 sm:$0xc] %vm342, %v341
  %s347 = scalar_lea.vmem %s1, 15
  %348 = vst.msk [vmem:[%s347] ss:$16 sm:$0x30] %vm342, %v341
  %s349 = scalar_lea.vmem %s1, 15
  %350 = vst.msk [vmem:[%s349] ss:$16 sm:$0xc0] %vm342, %v341
  %s351 = scalar_lea.vmem %s0, 8
  %v352 = vld [vmem:[%s351] sm:$0x3f]
  %353 = vrot.lane.b32.xlu0 %v352, 113
  %v354 = vpop.permute.xlu0 %353
  %vm355 = vcmask 7168
  %s356 = scalar_lea.vmem %s1, 143
  %357 = vst.msk [vmem:[%s356] ss:$16 sm:$0x3] %vm355, %v354
  %s358 = scalar_lea.vmem %s1, 143
  %359 = vst.msk [vmem:[%s358] ss:$16 sm:$0xc] %vm355, %v354
  %s360 = scalar_lea.vmem %s1, 143
  %361 = vst.msk [vmem:[%s360] ss:$16 sm:$0x30] %vm355, %v354

// kernel: tile.18
$region0: #{tile.18}
  #allocation0 [shape = 's32[1]{0}', space=sflag, size = 0x4, scoped, tag = 'scoped memory for tile.18']
  %s0 = inlined_call_operand.vmem [shape: f32[16], index: 0, kind: input, shape index: {}]
  %s1 = inlined_call_operand.vmem [shape: f32[12,16], index: 1, kind: output, shape index: {}]
  // Predicated region
  $region2: #{tile.18} parent=0 // pred_check
    _
  $region3: #{tile.18} parent=0 // pred_check_branch
    %3 = sbr.rel (0) target = $region5
  $region4: #{tile.18} parent=0 // pred_region
    _
  $region5: #{tile.18} parent=0 // pred_fallthru
    _
  %v4 = vld [vmem:[%s0] ss:$0 sm:$0xff]
  %5 = vst [vmem:[%s1] sm:$0xff] %v4
  %s6 = scalar_lea.vmem %s1, 8
  %7 = vst [vmem:[%s6] sm:$0xff] %v4

// kernel: tile.1
$region0: #{tile.1}
  %s0 = inlined_call_operand.vmem [shape: f32[12,16], index: 0, kind: input, shape index: {}]
  %s1 = inlined_call_operand.vmem [shape: f32[192,1], index: 1, kind: output, shape index: {}]
  %v2 = vld [vmem:[%s0] sm:$0xff]
  %vm3 = vcmask 7168
  %4 = vst.msk [vmem:[%s1] ss:$16 sm:$0x3] %vm3, %v2
  %5 = vst.msk [vmem:[%s1] ss:$16 sm:$0xc] %vm3, %v2
  %6 = vst.msk [vmem:[%s1] ss:$16 sm:$0x30] %vm3, %v2
  %7 = vst.msk [vmem:[%s1] ss:$16 sm:$0xc0] %vm3, %v2
  %s8 = scalar_lea.vmem %s0, 8
  %v9 = vld [vmem:[%s8] sm:$0xf]
  %vm10 = vcmask 7168
  %s11 = scalar_lea.vmem %s1, 128
  %12 = vst.msk [vmem:[%s11] ss:$16 sm:$0x3] %vm10, %v9
  %s13 = scalar_lea.vmem %s1, 128
  %14 = vst.msk [vmem:[%s13] ss:$16 sm:$0xc] %vm10, %v9
  %v15 = vld [vmem:[%s0] sm:$0xff]
  %16 = vrot.lane.b32.xlu0 %v15, 127
  %v17 = vpop.permute.xlu0 %16
  %vm18 = vcmask 7168
  %s19 = scalar_lea.vmem %s1, 1
  %20 = vst.msk [vmem:[%s19] ss:$16 sm:$0x3] %vm18, %v17
  %s21 = scalar_lea.vmem %s1, 1
  %22 = vst.msk [vmem:[%s21] ss:$16 sm:$0xc] %vm18, %v17
  %s23 = scalar_lea.vmem %s1, 1
  %24 = vst.msk [vmem:[%s23] ss:$16 sm:$0x30] %vm18, %v17
  %s25 = scalar_lea.vmem %s1, 1
  %26 = vst.msk [vmem:[%s25] ss:$16 sm:$0xc0] %vm18, %v17
  %s27 = scalar_lea.vmem %s0, 8
  %v28 = vld [vmem:[%s27] sm:$0xf]
  %29 = vrot.lane.b32.xlu0 %v28, 127
  %v30 = vpop.permute.xlu0 %29
  %vm31 = vcmask 7168
  %s32 = scalar_lea.vmem %s1, 129
  %33 = vst.msk [vmem:[%s32] ss:$16 sm:$0x3] %vm31, %v30
  %s34 = scalar_lea.vmem %s1, 129
  %35 = vst.msk [vmem:[%s34] ss:$16 sm:$0xc] %vm31, %v30
  %v36 = vld [vmem:[%s0] sm:$0xff]
  %37 = vrot.lane.b32.xlu0 %v36, 126
  %v38 = vpop.permute.xlu0 %37
  %vm39 = vcmask 7168
  %s40 = scalar_lea.vmem %s1, 2
  %41 = vst.msk [vmem:[%s40] ss:$16 sm:$0x3] %vm39, %v38
  %s42 = scalar_lea.vmem %s1, 2
  %43 = vst.msk [vmem:[%s42] ss:$16 sm:$0xc] %vm39, %v38
  %s44 = scalar_lea.vmem %s1, 2
  %45 = vst.msk [vmem:[%s44] ss:$16 sm:$0x30] %vm39, %v38
  %s46 = scalar_lea.vmem %s1, 2
  %47 = vst.msk [vmem:[%s46] ss:$16 sm:$0xc0] %vm39, %v38
  %s48 = scalar_lea.vmem %s0, 8
  %v49 = vld [vmem:[%s48] sm:$0xf]
  %50 = vrot.lane.b32.xlu0 %v49, 126
  %v51 = vpop.permute.xlu0 %50
  %vm52 = vcmask 7168
  %s53 = scalar_lea.vmem %s1, 130
  %54 = vst.msk [vmem:[%s53] ss:$16 sm:$0x3] %vm52, %v51
  %s55 = scalar_lea.vmem %s1, 130
  %56 = vst.msk [vmem:[%s55] ss:$16 sm:$0xc] %vm52, %v51
  %v57 = vld [vmem:[%s0] sm:$0xff]
  %58 = vrot.lane.b32.xlu0 %v57, 125
  %v59 = vpop.permute.xlu0 %58
  %vm60 = vcmask 7168
  %s61 = scalar_lea.vmem %s1, 3
  %62 = vst.msk [vmem:[%s61] ss:$16 sm:$0x3] %vm60, %v59
  %s63 = scalar_lea.vmem %s1, 3
  %64 = vst.msk [vmem:[%s63] ss:$16 sm:$0xc] %vm60, %v59
  %s65 = scalar_lea.vmem %s1, 3
  %66 = vst.msk [vmem:[%s65] ss:$16 sm:$0x30] %vm60, %v59
  %s67 = scalar_lea.vmem %s1, 3
  %68 = vst.msk [vmem:[%s67] ss:$16 sm:$0xc0] %vm60, %v59
  %s69 = scalar_lea.vmem %s0, 8
  %v70 = vld [vmem:[%s69] sm:$0xf]
  %71 = vrot.lane.b32.xlu0 %v70, 125
  %v72 = vpop.permute.xlu0 %71
  %vm73 = vcmask 7168
  %s74 = scalar_lea.vmem %s1, 131
  %75 = vst.msk [vmem:[%s74] ss:$16 sm:$0x3] %vm73, %v72
  %s76 = scalar_lea.vmem %s1, 131
  %77 = vst.msk [vmem:[%s76] ss:$16 sm:$0xc] %vm73, %v72
  %v78 = vld [vmem:[%s0] sm:$0xff]
  %79 = vrot.lane.b32.xlu0 %v78, 124
  %v80 = vpop.permute.xlu0 %79
  %vm81 = vcmask 7168
  %s82 = scalar_lea.vmem %s1, 4
  %83 = vst.msk [vmem:[%s82] ss:$16 sm:$0x3] %vm81, %v80
  %s84 = scalar_lea.vmem %s1, 4
  %85 = vst.msk [vmem:[%s84] ss:$16 sm:$0xc] %vm81, %v80
  %s86 = scalar_lea.vmem %s1, 4
  %87 = vst.msk [vmem:[%s86] ss:$16 sm:$0x30] %vm81, %v80
  %s88 = scalar_lea.vmem %s1, 4
  %89 = vst.msk [vmem:[%s88] ss:$16 sm:$0xc0] %vm81, %v80
  %s90 = scalar_lea.vmem %s0, 8
  %v91 = vld [vmem:[%s90] sm:$0xf]
  %92 = vrot.lane.b32.xlu0 %v91, 124
  %v93 = vpop.permute.xlu0 %92
  %vm94 = vcmask 7168
  %s95 = scalar_lea.vmem %s1, 132
  %96 = vst.msk [vmem:[%s95] ss:$16 sm:$0x3] %vm94, %v93
  %s97 = scalar_lea.vmem %s1, 132
  %98 = vst.msk [vmem:[%s97] ss:$16 sm:$0xc] %vm94, %v93
  %v99 = vld [vmem:[%s0] sm:$0xff]
  %100 = vrot.lane.b32.xlu0 %v99, 123
  %v101 = vpop.permute.xlu0 %100
  %vm102 = vcmask 7168
  %s103 = scalar_lea.vmem %s1, 5
  %104 = vst.msk [vmem:[%s103] ss:$16 sm:$0x3] %vm102, %v101
  %s105 = scalar_lea.vmem %s1, 5
  %106 = vst.msk [vmem:[%s105] ss:$16 sm:$0xc] %vm102, %v101
  %s107 = scalar_lea.vmem %s1, 5
  %108 = vst.msk [vmem:[%s107] ss:$16 sm:$0x30] %vm102, %v101
  %s109 = scalar_lea.vmem %s1, 5
  %110 = vst.msk [vmem:[%s109] ss:$16 sm:$0xc0] %vm102, %v101
  %s111 = scalar_lea.vmem %s0, 8
  %v112 = vld [vmem:[%s111] sm:$0xf]
  %113 = vrot.lane.b32.xlu0 %v112, 123
  %v114 = vpop.permute.xlu0 %113
  %vm115 = vcmask 7168
  %s116 = scalar_lea.vmem %s1, 133
  %117 = vst.msk [vmem:[%s116] ss:$16 sm:$0x3] %vm115, %v114
  %s118 = scalar_lea.vmem %s1, 133
  %119 = vst.msk [vmem:[%s118] ss:$16 sm:$0xc] %vm115, %v114
  %v120 = vld [vmem:[%s0] sm:$0xff]
  %121 = vrot.lane.b32.xlu0 %v120, 122
  %v122 = vpop.permute.xlu0 %121
  %vm123 = vcmask 7168
  %s124 = scalar_lea.vmem %s1, 6
  %125 = vst.msk [vmem:[%s124] ss:$16 sm:$0x3] %vm123, %v122
  %s126 = scalar_lea.vmem %s1, 6
  %127 = vst.msk [vmem:[%s126] ss:$16 sm:$0xc] %vm123, %v122
  %s128 = scalar_lea.vmem %s1, 6
  %129 = vst.msk [vmem:[%s128] ss:$16 sm:$0x30] %vm123, %v122
  %s130 = scalar_lea.vmem %s1, 6
  %131 = vst.msk [vmem:[%s130] ss:$16 sm:$0xc0] %vm123, %v122
  %s132 = scalar_lea.vmem %s0, 8
  %v133 = vld [vmem:[%s132] sm:$0xf]
  %134 = vrot.lane.b32.xlu0 %v133, 122
  %v135 = vpop.permute.xlu0 %134
  %vm136 = vcmask 7168
  %s137 = scalar_lea.vmem %s1, 134
  %138 = vst.msk [vmem:[%s137] ss:$16 sm:$0x3] %vm136, %v135
  %s139 = scalar_lea.vmem %s1, 134
  %140 = vst.msk [vmem:[%s139] ss:$16 sm:$0xc] %vm136, %v135
  %v141 = vld [vmem:[%s0] sm:$0xff]
  %142 = vrot.lane.b32.xlu0 %v141, 121
  %v143 = vpop.permute.xlu0 %142
  %vm144 = vcmask 7168
  %s145 = scalar_lea.vmem %s1, 7
  %146 = vst.msk [vmem:[%s145] ss:$16 sm:$0x3] %vm144, %v143
  %s147 = scalar_lea.vmem %s1, 7
  %148 = vst.msk [vmem:[%s147] ss:$16 sm:$0xc] %vm144, %v143
  %s149 = scalar_lea.vmem %s1, 7
  %150 = vst.msk [vmem:[%s149] ss:$16 sm:$0x30] %vm144, %v143
  %s151 = scalar_lea.vmem %s1, 7
  %152 = vst.msk [vmem:[%s151] ss:$16 sm:$0xc0] %vm144, %v143
  %s153 = scalar_lea.vmem %s0, 8
  %v154 = vld [vmem:[%s153] sm:$0xf]
  %155 = vrot.lane.b32.xlu0 %v154, 121
  %v156 = vpop.permute.xlu0 %155
  %vm157 = vcmask 7168
  %s158 = scalar_lea.vmem %s1, 135
  %159 = vst.msk [vmem:[%s158] ss:$16 sm:$0x3] %vm157, %v156
  %s160 = scalar_lea.vmem %s1, 135
  %161 = vst.msk [vmem:[%s160] ss:$16 sm:$0xc] %vm157, %v156
  %v162 = vld [vmem:[%s0] sm:$0xff]
  %163 = vrot.lane.b32.xlu0 %v162, 120
  %v164 = vpop.permute.xlu0 %163
  %vm165 = vcmask 7168
  %s166 = scalar_lea.vmem %s1, 8
  %167 = vst.msk [vmem:[%s166] ss:$16 sm:$0x3] %vm165, %v164
  %s168 = scalar_lea.vmem %s1, 8
  %169 = vst.msk [vmem:[%s168] ss:$16 sm:$0xc] %vm165, %v164
  %s170 = scalar_lea.vmem %s1, 8
  %171 = vst.msk [vmem:[%s170] ss:$16 sm:$0x30] %vm165, %v164
  %s172 = scalar_lea.vmem %s1, 8
  %173 = vst.msk [vmem:[%s172] ss:$16 sm:$0xc0] %vm165, %v164
  %s174 = scalar_lea.vmem %s0, 8
  %v175 = vld [vmem:[%s174] sm:$0xf]
  %176 = vrot.lane.b32.xlu0 %v175, 120
  %v177 = vpop.permute.xlu0 %176
  %vm178 = vcmask 7168
  %s179 = scalar_lea.vmem %s1, 136
  %180 = vst.msk [vmem:[%s179] ss:$16 sm:$0x3] %vm178, %v177
  %s181 = scalar_lea.vmem %s1, 136
  %182 = vst.msk [vmem:[%s181] ss:$16 sm:$0xc] %vm178, %v177
  %v183 = vld [vmem:[%s0] sm:$0xff]
  %184 = vrot.lane.b32.xlu0 %v183, 119
  %v185 = vpop.permute.xlu0 %184
  %vm186 = vcmask 7168
  %s187 = scalar_lea.vmem %s1, 9
  %188 = vst.msk [vmem:[%s187] ss:$16 sm:$0x3] %vm186, %v185
  %s189 = scalar_lea.vmem %s1, 9
  %190 = vst.msk [vmem:[%s189] ss:$16 sm:$0xc] %vm186, %v185
  %s191 = scalar_lea.vmem %s1, 9
  %192 = vst.msk [vmem:[%s191] ss:$16 sm:$0x30] %vm186, %v185
  %s193 = scalar_lea.vmem %s1, 9
  %194 = vst.msk [vmem:[%s193] ss:$16 sm:$0xc0] %vm186, %v185
  %s195 = scalar_lea.vmem %s0, 8
  %v196 = vld [vmem:[%s195] sm:$0xf]
  %197 = vrot.lane.b32.xlu0 %v196, 119
  %v198 = vpop.permute.xlu0 %197
  %vm199 = vcmask 7168
  %s200 = scalar_lea.vmem %s1, 137
  %201 = vst.msk [vmem:[%s200] ss:$16 sm:$0x3] %vm199, %v198
  %s202 = scalar_lea.vmem %s1, 137
  %203 = vst.msk [vmem:[%s202] ss:$16 sm:$0xc] %vm199, %v198
  %v204 = vld [vmem:[%s0] sm:$0xff]
  %205 = vrot.lane.b32.xlu0 %v204, 118
  %v206 = vpop.permute.xlu0 %205
  %vm207 = vcmask 7168
  %s208 = scalar_lea.vmem %s1, 10
  %209 = vst.msk [vmem:[%s208] ss:$16 sm:$0x3] %vm207, %v206
  %s210 = scalar_lea.vmem %s1, 10
  %211 = vst.msk [vmem:[%s210] ss:$16 sm:$0xc] %vm207, %v206
  %s212 = scalar_lea.vmem %s1, 10
  %213 = vst.msk [vmem:[%s212] ss:$16 sm:$0x30] %vm207, %v206
  %s214 = scalar_lea.vmem %s1, 10
  %215 = vst.msk [vmem:[%s214] ss:$16 sm:$0xc0] %vm207, %v206
  %s216 = scalar_lea.vmem %s0, 8
  %v217 = vld [vmem:[%s216] sm:$0xf]
  %218 = vrot.lane.b32.xlu0 %v217, 118
  %v219 = vpop.permute.xlu0 %218
  %vm220 = vcmask 7168
  %s221 = scalar_lea.vmem %s1, 138
  %222 = vst.msk [vmem:[%s221] ss:$16 sm:$0x3] %vm220, %v219
  %s223 = scalar_lea.vmem %s1, 138
  %224 = vst.msk [vmem:[%s223] ss:$16 sm:$0xc] %vm220, %v219
  %v225 = vld [vmem:[%s0] sm:$0xff]
  %226 = vrot.lane.b32.xlu0 %v225, 117
  %v227 = vpop.permute.xlu0 %226
  %vm228 = vcmask 7168
  %s229 = scalar_lea.vmem %s1, 11
  %230 = vst.msk [vmem:[%s229] ss:$16 sm:$0x3] %vm228, %v227
  %s231 = scalar_lea.vmem %s1, 11
  %232 = vst.msk [vmem:[%s231] ss:$16 sm:$0xc] %vm228, %v227
  %s233 = scalar_lea.vmem %s1, 11
  %234 = vst.msk [vmem:[%s233] ss:$16 sm:$0x30] %vm228, %v227
  %s235 = scalar_lea.vmem %s1, 11
  %236 = vst.msk [vmem:[%s235] ss:$16 sm:$0xc0] %vm228, %v227
  %s237 = scalar_lea.vmem %s0, 8
  %v238 = vld [vmem:[%s237] sm:$0xf]
  %239 = vrot.lane.b32.xlu0 %v238, 117
  %v240 = vpop.permute.xlu0 %239
  %vm241 = vcmask 7168
  %s242 = scalar_lea.vmem %s1, 139
  %243 = vst.msk [vmem:[%s242] ss:$16 sm:$0x3] %vm241, %v240
  %s244 = scalar_lea.vmem %s1, 139
  %245 = vst.msk [vmem:[%s244] ss:$16 sm:$0xc] %vm241, %v240
  %v246 = vld [vmem:[%s0] sm:$0xff]
  %247 = vrot.lane.b32.xlu0 %v246, 116
  %v248 = vpop.permute.xlu0 %247
  %vm249 = vcmask 7168
  %s250 = scalar_lea.vmem %s1, 12
  %251 = vst.msk [vmem:[%s250] ss:$16 sm:$0x3] %vm249, %v248
  %s252 = scalar_lea.vmem %s1, 12
  %253 = vst.msk [vmem:[%s252] ss:$16 sm:$0xc] %vm249, %v248
  %s254 = scalar_lea.vmem %s1, 12
  %255 = vst.msk [vmem:[%s254] ss:$16 sm:$0x30] %vm249, %v248
  %s256 = scalar_lea.vmem %s1, 12
  %257 = vst.msk [vmem:[%s256] ss:$16 sm:$0xc0] %vm249, %v248
  %s258 = scalar_lea.vmem %s0, 8
  %v259 = vld [vmem:[%s258] sm:$0xf]
  %260 = vrot.lane.b32.xlu0 %v259, 116
  %v261 = vpop.permute.xlu0 %260
  %vm262 = vcmask 7168
  %s263 = scalar_lea.vmem %s1, 140
  %264 = vst.msk [vmem:[%s263] ss:$16 sm:$0x3] %vm262, %v261
  %s265 = scalar_lea.vmem %s1, 140
  %266 = vst.msk [vmem:[%s265] ss:$16 sm:$0xc] %vm262, %v261
  %v267 = vld [vmem:[%s0] sm:$0xff]
  %268 = vrot.lane.b32.xlu0 %v267, 115
  %v269 = vpop.permute.xlu0 %268
  %vm270 = vcmask 7168
  %s271 = scalar_lea.vmem %s1, 13
  %272 = vst.msk [vmem:[%s271] ss:$16 sm:$0x3] %vm270, %v269
  %s273 = scalar_lea.vmem %s1, 13
  %274 = vst.msk [vmem:[%s273] ss:$16 sm:$0xc] %vm270, %v269
  %s275 = scalar_lea.vmem %s1, 13
  %276 = vst.msk [vmem:[%s275] ss:$16 sm:$0x30] %vm270, %v269
  %s277 = scalar_lea.vmem %s1, 13
  %278 = vst.msk [vmem:[%s277] ss:$16 sm:$0xc0] %vm270, %v269
  %s279 = scalar_lea.vmem %s0, 8
  %v280 = vld [vmem:[%s279] sm:$0xf]
  %281 = vrot.lane.b32.xlu0 %v280, 115
  %v282 = vpop.permute.xlu0 %281
  %vm283 = vcmask 7168
  %s284 = scalar_lea.vmem %s1, 141
  %285 = vst.msk [vmem:[%s284] ss:$16 sm:$0x3] %vm283, %v282
  %s286 = scalar_lea.vmem %s1, 141
  %287 = vst.msk [vmem:[%s286] ss:$16 sm:$0xc] %vm283, %v282
  %v288 = vld [vmem:[%s0] sm:$0xff]
  %289 = vrot.lane.b32.xlu0 %v288, 114
  %v290 = vpop.permute.xlu0 %289
  %vm291 = vcmask 7168
  %s292 = scalar_lea.vmem %s1, 14
  %293 = vst.msk [vmem:[%s292] ss:$16 sm:$0x3] %vm291, %v290
  %s294 = scalar_lea.vmem %s1, 14
  %295 = vst.msk [vmem:[%s294] ss:$16 sm:$0xc] %vm291, %v290
  %s296 = scalar_lea.vmem %s1, 14
  %297 = vst.msk [vmem:[%s296] ss:$16 sm:$0x30] %vm291, %v290
  %s298 = scalar_lea.vmem %s1, 14
  %299 = vst.msk [vmem:[%s298] ss:$16 sm:$0xc0] %vm291, %v290
  %s300 = scalar_lea.vmem %s0, 8
  %v301 = vld [vmem:[%s300] sm:$0xf]
  %302 = vrot.lane.b32.xlu0 %v301, 114
  %v303 = vpop.permute.xlu0 %302
  %vm304 = vcmask 7168
  %s305 = scalar_lea.vmem %s1, 142
  %306 = vst.msk [vmem:[%s305] ss:$16 sm:$0x3] %vm304, %v303
  %s307 = scalar_lea.vmem %s1, 142
  %308 = vst.msk [vmem:[%s307] ss:$16 sm:$0xc] %vm304, %v303
  %v309 = vld [vmem:[%s0] sm:$0xff]
  %310 = vrot.lane.b32.xlu0 %v309, 113
  %v311 = vpop.permute.xlu0 %310
  %vm312 = vcmask 7168
  %s313 = scalar_lea.vmem %s1, 15
  %314 = vst.msk [vmem:[%s313] ss:$16 sm:$0x3] %vm312, %v311
  %s315 = scalar_lea.vmem %s1, 15
  %316 = vst.msk [vmem:[%s315] ss:$16 sm:$0xc] %vm312, %v311
  %s317 = scalar_lea.vmem %s1, 15
  %318 = vst.msk [vmem:[%s317] ss:$16 sm:$0x30] %vm312, %v311
  %s319 = scalar_lea.vmem %s1, 15
  %320 = vst.msk [vmem:[%s319] ss:$16 sm:$0xc0] %vm312, %v311
  %s321 = scalar_lea.vmem %s0, 8
  %v322 = vld [vmem:[%s321] sm:$0xf]
  %323 = vrot.lane.b32.xlu0 %v322, 113
  %v324 = vpop.permute.xlu0 %323
  %vm325 = vcmask 7168
  %s326 = scalar_lea.vmem %s1, 143
  %327 = vst.msk [vmem:[%s326] ss:$16 sm:$0x3] %vm325, %v324
  %s328 = scalar_lea.vmem %s1, 143
  %329 = vst.msk [vmem:[%s328] ss:$16 sm:$0xc] %vm325, %v324

// kernel: _lambda_.5
$region0: #{_lambda_.5}
  #allocation0 [shape = 'u32[]', space=smem, size = 0x4, offset = 0x4, fixed_abs, tag = 'smem constant byte address 0x4 - core index']
  #allocation1 [shape = 'u32[144,128]{1,0:T(1,128)}', space=vmem, size = 0x12000, scoped, tag = 'internal scratch']
  %s0 = inlined_call_operand.vmem [shape: f32[2,208,128], index: 0, kind: input, shape index: {}]
  %s1 = inlined_call_operand.vmem [shape: f32[1,128], index: 1, kind: input, shape index: {}]
  %s2 = inlined_call_operand.vmem [shape: f32[1,128], index: 2, kind: input, shape index: {}]
  %s3 = inlined_call_operand.vmem [shape: f32[2,208,128], index: 3, kind: output, shape index: {}]
  %s4 = sld [smem:[#allocation0]]
  $region45: #{_lambda_.5} parent=0
    _
  %s6 = ssub.s32 1, %s4
  %s7 = scalar_select 0, %s6, %s4
  loop: start=0, step=1, limit=4
  $region2: #{_lambda_.5} parent=0 // loop_pre_header
    _
  $region3: #{_lambda_.5} parent=0 // loop_header
    %s9 = sphi 0, %s13
    %p10 = scmp.ge.s32.totalorder %s9, 4
    %s19 = sphi 0, %s21
    %s22 = sphi 0, %s19
    %s23 = sphi 0, %s22
    %s39 = sphi 0, %s23
    %s43 = sphi 0, %s43
    %s45 = sphi 0, %s43
    %s46 = sphi 0, %s45
    %s60 = sphi 0, %s46
    %s64 = sphi 0, %s64
    %s66 = sphi 0, %s64
    %s67 = sphi 0, %s66
    %s81 = sphi 0, %s67
    %s87 = sphi 0, %s89
    %s90 = sphi 0, %s87
    %s91 = sphi 0, %s90
    %s107 = sphi 0, %s91
  $region4: #{_lambda_.5} parent=0 // loop_header_branch
    %12 = sbr.rel (%p10) target = $region8
  $region5: #{_lambda_.5} parent=0 // loop_body
    %s14 = ssub.s32 %s9, 1
    %s15 = ssub.s32 %s9, 2
    %s16 = sadd.s32 %s9, 1
    %s17 = ssub.s32 %s9, %s16
    %p18 = scmp.eq.s32.totalorder %s17, 0
    %s20 = sadd.s32 %s19, 1
    %s21 = scalar_select %p18, %s19, %s20
    %p24 = pneg %p18
    %p25 = scmp.eq.s32.totalorder %s9, 1
    %p26 = por %p24, %p25
    %p27 = scmp.ne.s32.totalorder %s19, %s22
    %p28 = scmp.eq.s32.totalorder %s9, 0
    %p29 = por %p27, %p28
    %p30 = scmp.ne.s32.totalorder %s19, %s22
    %p31 = scmp.eq.s32.totalorder %s14, 1
    %p32 = por %p30, %p31
    %p33 = scmp.ne.s32.totalorder %s22, %s23
    %p34 = scmp.eq.s32.totalorder %s14, 0
    %p35 = por %p33, %p34
    %p36 = scmp.ne.s32.totalorder %s22, %s23
    %p37 = scmp.eq.s32.totalorder %s15, 1
    %p38 = por %p36, %p37
    %p40 = scmp.ne.s32.totalorder %s23, %s39
    %p41 = scmp.eq.s32.totalorder %s15, 0
    %p42 = por %p40, %p41
    %s44 = sadd.s32 %s43, 1
    %p47 = scmp.eq.s32.totalorder %s9, 1
    %p48 = scmp.ne.s32.totalorder %s43, %s45
    %p49 = scmp.eq.s32.totalorder %s9, 0
    %p50 = por %p48, %p49
    %p51 = scmp.ne.s32.totalorder %s43, %s45
    %p52 = scmp.eq.s32.totalorder %s14, 1
    %p53 = por %p51, %p52
    %p54 = scmp.ne.s32.totalorder %s45, %s46
    %p55 = scmp.eq.s32.totalorder %s14, 0
    %p56 = por %p54, %p55
    %p57 = scmp.ne.s32.totalorder %s45, %s46
    %p58 = scmp.eq.s32.totalorder %s15, 1
    %p59 = por %p57, %p58
    %p61 = scmp.ne.s32.totalorder %s46, %s60
    %p62 = scmp.eq.s32.totalorder %s15, 0
    %p63 = por %p61, %p62
    %s65 = sadd.s32 %s64, 1
    %p68 = scmp.eq.s32.totalorder %s9, 1
    %p69 = scmp.ne.s32.totalorder %s64, %s66
    %p70 = scmp.eq.s32.totalorder %s9, 0
    %p71 = por %p69, %p70
    %p72 = scmp.ne.s32.totalorder %s64, %s66
    %p73 = scmp.eq.s32.totalorder %s14, 1
    %p74 = por %p72, %p73
    %p75 = scmp.ne.s32.totalorder %s66, %s67
    %p76 = scmp.eq.s32.totalorder %s14, 0
    %p77 = por %p75, %p76
    %p78 = scmp.ne.s32.totalorder %s66, %s67
    %p79 = scmp.eq.s32.totalorder %s15, 1
    %p80 = por %p78, %p79
    %p82 = scmp.ne.s32.totalorder %s67, %s81
    %p83 = scmp.eq.s32.totalorder %s15, 0
    %p84 = por %p82, %p83
    %s85 = ssub.s32 %s9, %s16
    %p86 = scmp.eq.s32.totalorder %s85, 0
    %s88 = sadd.s32 %s87, 1
    %s89 = scalar_select %p86, %s87, %s88
    %p92 = pneg %p86
    %p93 = scmp.eq.s32.totalorder %s9, 1
    %p94 = por %p92, %p93
    %p95 = scmp.ne.s32.totalorder %s87, %s90
    %p96 = scmp.eq.s32.totalorder %s9, 0
    %p97 = por %p95, %p96
    %p98 = scmp.ne.s32.totalorder %s87, %s90
    %p99 = scmp.eq.s32.totalorder %s14, 1
    %p100 = por %p98, %p99
    %p101 = scmp.ne.s32.totalorder %s90, %s91
    %p102 = scmp.eq.s32.totalorder %s14, 0
    %p103 = por %p101, %p102
    %p104 = scmp.ne.s32.totalorder %s90, %s91
    %p105 = scmp.eq.s32.totalorder %s15, 1
    %p106 = por %p104, %p105
    %p108 = scmp.ne.s32.totalorder %s91, %s107
    %p109 = scmp.eq.s32.totalorder %s15, 0
    %p110 = por %p108, %p109
    %p111 = scmp.le.s32.totalorder 1, %s9
    %p112 = scmp.lt.s32.totalorder %s9, 3
    %p113 = pnand %p111, %p112
    %p114 = pneg %p113
    // Predicated region
    $region9: #{_lambda_.5} parent=5 // pred_check
      _
    $region10: #{_lambda_.5} parent=5 // pred_check_branch
      %116 = sbr.rel (%p113) target = $region12
    $region11: #{_lambda_.5} parent=5 // pred_region
      %s117 = ssub.s32 %s9, 1
      // Predicated region
      $region13: #{_lambda_.5} parent=11 // pred_check
        %p118 = pneg %p56
      $region14: #{_lambda_.5} parent=11 // pred_check_branch
        %120 = sbr.rel (%p118) target = $region16
      $region15: #{_lambda_.5} parent=11 // pred_region
        _
      $region16: #{_lambda_.5} parent=11 // pred_fallthru
        _
      // Predicated region
      $region17: #{_lambda_.5} parent=11 // pred_check
        %p121 = pneg %p77
      $region18: #{_lambda_.5} parent=11 // pred_check_branch
        %123 = sbr.rel (%p121) target = $region20
      $region19: #{_lambda_.5} parent=11 // pred_region
        _
      $region20: #{_lambda_.5} parent=11 // pred_fallthru
        _
    $region12: #{_lambda_.5} parent=5 // pred_fallthru
      _
    %p124 = scmp.lt.s32.totalorder %s9, 2
    // Predicated region
    $region21: #{_lambda_.5} parent=5 // pred_check
      %p125 = pneg %p124
    $region22: #{_lambda_.5} parent=5 // pred_check_branch
      %127 = sbr.rel (%p125) target = $region24
    $region23: #{_lambda_.5} parent=5 // pred_region
      // Predicated region
      $region25: #{_lambda_.5} parent=23 // pred_check
        %p128 = pneg %p29
      $region26: #{_lambda_.5} parent=23 // pred_check_branch
        %130 = sbr.rel (%p128) target = $region28
      $region27: #{_lambda_.5} parent=23 // pred_region
        %p131 = scmp.lt.s32.totalorder %s9, 1
        %s132 = scalar_select %p131, %s9, 1
        %s133 = smul.addr %s132, 26
        %s134 = smul.addr %s133, 8
        %s135 = scalar_lea.vmem %s0, %s134
      $region28: #{_lambda_.5} parent=23 // pred_fallthru
        _
    $region24: #{_lambda_.5} parent=5 // pred_fallthru
      _
    %p136 = scmp.le.s32.totalorder 1, %s9
    %p137 = scmp.lt.s32.totalorder %s9, 3
    %p138 = pnand %p136, %p137
    %p139 = pneg %p138
    // Predicated region
    $region29: #{_lambda_.5} parent=5 // pred_check
      _
    $region30: #{_lambda_.5} parent=5 // pred_check_branch
      %141 = sbr.rel (%p138) target = $region32
    $region31: #{_lambda_.5} parent=5 // pred_region
      %s142 = ssub.s32 %s9, 1
      %p143 = scmp.lt.s32.totalorder %s14, 1
      %s144 = scalar_select %p143, %s14, 1
      %s145 = smul.addr %s144, 26
      %s146 = smul.addr %s145, 8
      %s147 = scalar_lea.vmem %s0, %s146
      %p148 = pneg %p35
      %p149 = pneg %p32
      %p150 = pneg %p56
      %p151 = pneg %p53
      %p152 = pneg %p77
      %p153 = pneg %p74
      %p154 = pneg %p103
      %p155 = pneg %p100
      %p156 = scmp.lt.s32.totalorder %s14, 1
      %s157 = scalar_select %p156, %s14, 1
      %s158 = smul.addr %s157, 26
      %s159 = smul.addr %s158, 8
      %s160 = scalar_lea.vmem %s3, %s159
      %p161 = scmp.lt.s32.totalorder %s14, 1
      %s162 = scalar_select %p161, %s14, 1
      %s163 = smul.addr %s162, 26
      %s164 = smul.addr %s163, 8
      %s165 = scalar_lea.vmem %s0, %s164
      %p166 = scmp.lt.s32.totalorder %s14, 1
      %s167 = scalar_select %p166, %s14, 1
      %s168 = smul.addr %s167, 26
      %s169 = smul.addr %s168, 8
      %s170 = scalar_lea.vmem %s3, %s169
      %v171 = vld [vmem:[%s165] sm:$0xff]
      %v172 = vld [vmem:[%s165 + $0x8] sm:$0xff]
      %v173 = vld [vmem:[%s165 + $0x10] sm:$0xff]
      %v174 = vld [vmem:[%s165 + $0x18] sm:$0xff]
      %v175 = vld [vmem:[%s165 + $0x20] sm:$0xff]
      %v176 = vld [vmem:[%s165 + $0x28] sm:$0xff]
      %v177 = vld [vmem:[%s165 + $0x30] sm:$0xff]
      %v178 = vld [vmem:[%s165 + $0x38] sm:$0xff]
      %v179 = vld [vmem:[%s165 + $0x40] sm:$0xff]
      %v180 = vld [vmem:[%s165 + $0x48] sm:$0xff]
      %v181 = vld [vmem:[%s165 + $0x50] sm:$0xff]
      %v182 = vld [vmem:[%s165 + $0x58] sm:$0xff]
      %v183 = vld [vmem:[%s165 + $0x60] sm:$0xff]
      %v184 = vld [vmem:[%s165 + $0x68] sm:$0xff]
      %v185 = vld [vmem:[%s165 + $0x70] sm:$0xff]
      %v186 = vld [vmem:[%s165 + $0x78] sm:$0xff]
      %v187 = vld [vmem:[%s165 + $0x80] sm:$0xff]
      %v188 = vld [vmem:[%s165 + $0x88] sm:$0xff]
      %v189 = vld [vmem:[%s165 + $0x90] sm:$0xff]
      %v190 = vld [vmem:[%s165 + $0x98] sm:$0xff]
      %v191 = vld [vmem:[%s165 + $0xa0] sm:$0xff]
      %v192 = vld [vmem:[%s165 + $0xa8] sm:$0xff]
      %v193 = vld [vmem:[%s165 + $0xb0] sm:$0xff]
      %v194 = vld [vmem:[%s165 + $0xb8] sm:$0xff]
      %v195 = vld [vmem:[%s165 + $0xc0] sm:$0xff]
      %v196 = vld [vmem:[%s165 + $0xc8] sm:$0xff]
      %v197 = vld [vmem:[%s1] sm:$0x1]
      %v199 = vlaneseq
      %v200 = vshrl.u32 %v199, 7
      %v201 = vsub.s32 0, %v200
      %v202 = vrot.slane %v197, %v201
      %v204 = vmul.f32 %v171, %v202
      %v205 = vmul.f32 %v172, %v202
      %v206 = vmul.f32 %v173, %v202
      %v207 = vmul.f32 %v174, %v202
      %v208 = vmul.f32 %v175, %v202
      %v209 = vmul.f32 %v176, %v202
      %v210 = vmul.f32 %v177, %v202
      %v211 = vmul.f32 %v178, %v202
      %v212 = vmul.f32 %v179, %v202
      %v213 = vmul.f32 %v180, %v202
      %v214 = vmul.f32 %v181, %v202
      %v215 = vmul.f32 %v182, %v202
      %v216 = vmul.f32 %v183, %v202
      %v217 = vmul.f32 %v184, %v202
      %v218 = vmul.f32 %v185, %v202
      %v219 = vmul.f32 %v186, %v202
      %v220 = vmul.f32 %v187, %v202
      %v221 = vmul.f32 %v188, %v202
      %v222 = vmul.f32 %v189, %v202
      %v223 = vmul.f32 %v190, %v202
      %v224 = vmul.f32 %v191, %v202
      %v225 = vmul.f32 %v192, %v202
      %v226 = vmul.f32 %v193, %v202
      %v227 = vmul.f32 %v194, %v202
      %v228 = vmul.f32 %v195, %v202
      %v229 = vmul.f32 %v196, %v202
      %v230 = vld [vmem:[%s2] sm:$0x1]
      %v232 = vlaneseq
      %v233 = vshrl.u32 %v232, 7
      %v234 = vsub.s32 0, %v233
      %v235 = vrot.slane %v230, %v234
      %v237 = vadd.f32 %v204, %v235
      %v238 = vadd.f32 %v205, %v235
      %v239 = vadd.f32 %v206, %v235
      %v240 = vadd.f32 %v207, %v235
      %v241 = vadd.f32 %v208, %v235
      %v242 = vadd.f32 %v209, %v235
      %v243 = vadd.f32 %v210, %v235
      %v244 = vadd.f32 %v211, %v235
      %v245 = vadd.f32 %v212, %v235
      %v246 = vadd.f32 %v213, %v235
      %v247 = vadd.f32 %v214, %v235
      %v248 = vadd.f32 %v215, %v235
      %v249 = vadd.f32 %v216, %v235
      %v250 = vadd.f32 %v217, %v235
      %v251 = vadd.f32 %v218, %v235
      %v252 = vadd.f32 %v219, %v235
      %v253 = vadd.f32 %v220, %v235
      %v254 = vadd.f32 %v221, %v235
      %v255 = vadd.f32 %v222, %v235
      %v256 = vadd.f32 %v223, %v235
      %v257 = vadd.f32 %v224, %v235
      %v258 = vadd.f32 %v225, %v235
      %v259 = vadd.f32 %v226, %v235
      %v260 = vadd.f32 %v227, %v235
      %v261 = vadd.f32 %v228, %v235
      %v262 = vadd.f32 %v229, %v235
      %vm263 = vcmp.gt.f32.partialorder %v237, 0.0
      %vm264 = vcmp.gt.f32.partialorder %v238, 0.0
      %vm265 = vcmp.gt.f32.partialorder %v239, 0.0
      %vm266 = vcmp.gt.f32.partialorder %v240, 0.0
      %vm267 = vcmp.gt.f32.partialorder %v241, 0.0
      %vm268 = vcmp.gt.f32.partialorder %v242, 0.0
      %vm269 = vcmp.gt.f32.partialorder %v243, 0.0
      %vm270 = vcmp.gt.f32.partialorder %v244, 0.0
      %vm271 = vcmp.gt.f32.partialorder %v245, 0.0
      %vm272 = vcmp.gt.f32.partialorder %v246, 0.0
      %vm273 = vcmp.gt.f32.partialorder %v247, 0.0
      %vm274 = vcmp.gt.f32.partialorder %v248, 0.0
      %vm275 = vcmp.gt.f32.partialorder %v249, 0.0
      %vm276 = vcmp.gt.f32.partialorder %v250, 0.0
      %vm277 = vcmp.gt.f32.partialorder %v251, 0.0
      %vm278 = vcmp.gt.f32.partialorder %v252, 0.0
      %vm279 = vcmp.gt.f32.partialorder %v253, 0.0
      %vm280 = vcmp.gt.f32.partialorder %v254, 0.0
      %vm281 = vcmp.gt.f32.partialorder %v255, 0.0
      %vm282 = vcmp.gt.f32.partialorder %v256, 0.0
      %vm283 = vcmp.gt.f32.partialorder %v257, 0.0
      %vm284 = vcmp.gt.f32.partialorder %v258, 0.0
      %vm285 = vcmp.gt.f32.partialorder %v259, 0.0
      %vm286 = vcmp.gt.f32.partialorder %v260, 0.0
      %vm287 = vcmp.gt.f32.partialorder %v261, 0.0
      %vm288 = vcmp.gt.f32.partialorder %v262, 0.0
      %v289 = vmul.f32 %v237, 0.01
      %v290 = vmul.f32 %v238, 0.01
      %v291 = vmul.f32 %v239, 0.01
      %v292 = vmul.f32 %v240, 0.01
      %v293 = vmul.f32 %v241, 0.01
      %v294 = vmul.f32 %v242, 0.01
      %v295 = vmul.f32 %v243, 0.01
      %v296 = vmul.f32 %v244, 0.01
      %v297 = vmul.f32 %v245, 0.01
      %v298 = vmul.f32 %v246, 0.01
      %v299 = vmul.f32 %v247, 0.01
      %v300 = vmul.f32 %v248, 0.01
      %v301 = vmul.f32 %v249, 0.01
      %v302 = vmul.f32 %v250, 0.01
      %v303 = vmul.f32 %v251, 0.01
      %v304 = vmul.f32 %v252, 0.01
      %v305 = vmul.f32 %v253, 0.01
      %v306 = vmul.f32 %v254, 0.01
      %v307 = vmul.f32 %v255, 0.01
      %v308 = vmul.f32 %v256, 0.01
      %v309 = vmul.f32 %v257, 0.01
      %v310 = vmul.f32 %v258, 0.01
      %v311 = vmul.f32 %v259, 0.01
      %v312 = vmul.f32 %v260, 0.01
      %v313 = vmul.f32 %v261, 0.01
      %v314 = vmul.f32 %v262, 0.01
      %v315 = vsel %vm263, %v237, %v289
      %v316 = vsel %vm264, %v238, %v290
      %v317 = vsel %vm265, %v239, %v291
      %v318 = vsel %vm266, %v240, %v292
      %v319 = vsel %vm267, %v241, %v293
      %v320 = vsel %vm268, %v242, %v294
      %v321 = vsel %vm269, %v243, %v295
      %v322 = vsel %vm270, %v244, %v296
      %v323 = vsel %vm271, %v245, %v297
      %v324 = vsel %vm272, %v246, %v298
      %v325 = vsel %vm273, %v247, %v299
      %v326 = vsel %vm274, %v248, %v300
      %v327 = vsel %vm275, %v249, %v301
      %v328 = vsel %vm276, %v250, %v302
      %v329 = vsel %vm277, %v251, %v303
      %v330 = vsel %vm278, %v252, %v304
      %v331 = vsel %vm279, %v253, %v305
      %v332 = vsel %vm280, %v254, %v306
      %v333 = vsel %vm281, %v255, %v307
      %v334 = vsel %vm282, %v256, %v308
      %v335 = vsel %vm283, %v257, %v309
      %v336 = vsel %vm284, %v258, %v310
      %v337 = vsel %vm285, %v259, %v311
      %v338 = vsel %vm286, %v260, %v312
      %v339 = vsel %vm287, %v261, %v313
      %v340 = vsel %vm288, %v262, %v314
      %341 = vst [vmem:[%s170] sm:$0xff] %v315
      %342 = vst [vmem:[%s170 + $0x8] sm:$0xff] %v316
      %343 = vst [vmem:[%s170 + $0x10] sm:$0xff] %v317
      %344 = vst [vmem:[%s170 + $0x18] sm:$0xff] %v318
      %345 = vst [vmem:[%s170 + $0x20] sm:$0xff] %v319
      %346 = vst [vmem:[%s170 + $0x28] sm:$0xff] %v320
      %347 = vst [vmem:[%s170 + $0x30] sm:$0xff] %v321
      %348 = vst [vmem:[%s170 + $0x38] sm:$0xff] %v322
      %349 = vst [vmem:[%s170 + $0x40] sm:$0xff] %v323
      %350 = vst [vmem:[%s170 + $0x48] sm:$0xff] %v324
      %351 = vst [vmem:[%s170 + $0x50] sm:$0xff] %v325
      %352 = vst [vmem:[%s170 + $0x58] sm:$0xff] %v326
      %353 = vst [vmem:[%s170 + $0x60] sm:$0xff] %v327
      %354 = vst [vmem:[%s170 + $0x68] sm:$0xff] %v328
      %355 = vst [vmem:[%s170 + $0x70] sm:$0xff] %v329
      %356 = vst [vmem:[%s170 + $0x78] sm:$0xff] %v330
      %357 = vst [vmem:[%s170 + $0x80] sm:$0xff] %v331
      %358 = vst [vmem:[%s170 + $0x88] sm:$0xff] %v332
      %359 = vst [vmem:[%s170 + $0x90] sm:$0xff] %v333
      %360 = vst [vmem:[%s170 + $0x98] sm:$0xff] %v334
      %361 = vst [vmem:[%s170 + $0xa0] sm:$0xff] %v335
      %362 = vst [vmem:[%s170 + $0xa8] sm:$0xff] %v336
      %363 = vst [vmem:[%s170 + $0xb0] sm:$0xff] %v337
      %364 = vst [vmem:[%s170 + $0xb8] sm:$0xff] %v338
      %365 = vst [vmem:[%s170 + $0xc0] sm:$0xff] %v339
      %366 = vst [vmem:[%s170 + $0xc8] sm:$0xff] %v340
      %p367 = scmp.lt.s32.totalorder %s14, 1
      %s368 = scalar_select %p367, %s14, 1
      %s369 = smul.addr %s368, 26
      %s370 = smul.addr %s369, 8
      %s371 = scalar_lea.vmem %s3, %s370
      // Predicated region
      $region33: #{_lambda_.5} parent=31 // pred_check
        %p372 = pneg %p100
      $region34: #{_lambda_.5} parent=31 // pred_check_branch
        %374 = sbr.rel (%p372) target = $region36
      $region35: #{_lambda_.5} parent=31 // pred_region
        _
      $region36: #{_lambda_.5} parent=31 // pred_fallthru
        _
    $region32: #{_lambda_.5} parent=5 // pred_fallthru
      _
    %p375 = scmp.le.s32.totalorder 2, %s9
    // Predicated region
    $region37: #{_lambda_.5} parent=5 // pred_check
      %p376 = pneg %p375
    $region38: #{_lambda_.5} parent=5 // pred_check_branch
      %378 = sbr.rel (%p376) target = $region40
    $region39: #{_lambda_.5} parent=5 // pred_region
      %s379 = ssub.s32 %s9, 2
      // Predicated region
      $region41: #{_lambda_.5} parent=39 // pred_check
        %p380 = pneg %p106
      $region42: #{_lambda_.5} parent=39 // pred_check_branch
        %382 = sbr.rel (%p380) target = $region44
      $region43: #{_lambda_.5} parent=39 // pred_region
        %p383 = scmp.lt.s32.totalorder %s15, 1
        %s384 = scalar_select %p383, %s15, 1
        %s385 = smul.addr %s384, 26
        %s386 = smul.addr %s385, 8
        %s387 = scalar_lea.vmem %s3, %s386
      $region44: #{_lambda_.5} parent=39 // pred_fallthru
        _
    $region40: #{_lambda_.5} parent=5 // pred_fallthru
      _
  $region6: #{_lambda_.5} parent=0 // loop_footer
    %s13 = sadd.s32 1, %s9
  $region7: #{_lambda_.5} parent=0 // loop_footer_branch
    %8 = sbr.rel target = $region3
  $region8: #{_lambda_.5} parent=0 // loop_exit
    _

// kernel: _lambda_.4
$region0: #{_lambda_.4}
  #allocation0 [shape = 'u32[]', space=smem, size = 0x4, offset = 0x4, fixed_abs, tag = 'smem constant byte address 0x4 - core index']
  #allocation1 [shape = 'u32[144,128]{1,0:T(1,128)}', space=vmem, size = 0x12000, scoped, tag = 'internal scratch']
  %s0 = inlined_call_operand.vmem [shape: f32[2,240,128], index: 0, kind: input, shape index: {}]
  %s1 = inlined_call_operand.vmem [shape: f32[1,128], index: 1, kind: input, shape index: {}]
  %s2 = inlined_call_operand.vmem [shape: f32[1,128], index: 2, kind: input, shape index: {}]
  %s3 = inlined_call_operand.vmem [shape: bf16[72,128], index: 3, kind: input, shape index: {}]
  %s4 = inlined_call_operand.vmem [shape: f32[192,1], index: 4, kind: input, shape index: {}]
  %s5 = inlined_call_operand.vmem [shape: f32[2,208,128], index: 5, kind: output, shape index: {0}]
  %s6 = inlined_call_operand.vmem [shape: f32[2,2,128], index: 6, kind: output, shape index: {1}]
  %7 = xla_tuple %s5, %s6
  %s8 = sld [smem:[#allocation0]]
  $region61: #{_lambda_.4} parent=0
    _
  %s10 = ssub.s32 1, %s8
  %s11 = scalar_select 0, %s10, %s8
  loop: start=0, step=1, limit=4
  $region2: #{_lambda_.4} parent=0 // loop_pre_header
    _
  $region3: #{_lambda_.4} parent=0 // loop_header
    %s13 = sphi 0, %s17
    %p14 = scmp.ge.s32.totalorder %s13, 4
    %s23 = sphi 0, %s25
    %s26 = sphi 0, %s23
    %s27 = sphi 0, %s26
    %s43 = sphi 0, %s27
    %s47 = sphi 0, %s47
    %s49 = sphi 0, %s47
    %s50 = sphi 0, %s49
    %s64 = sphi 0, %s50
    %s68 = sphi 0, %s68
    %s70 = sphi 0, %s68
    %s71 = sphi 0, %s70
    %s85 = sphi 0, %s71
    %s89 = sphi 0, %s89
    %s91 = sphi 0, %s89
    %s92 = sphi 0, %s91
    %s106 = sphi 0, %s92
    %s110 = sphi 0, %s110
    %s112 = sphi 0, %s110
    %s113 = sphi 0, %s112
    %s127 = sphi 0, %s113
    %s133 = sphi 0, %s135
    %s136 = sphi 0, %s133
    %s137 = sphi 0, %s136
    %s153 = sphi 0, %s137
    %s159 = sphi 0, %s161
    %s162 = sphi 0, %s159
    %s163 = sphi 0, %s162
    %s179 = sphi 0, %s163
  $region4: #{_lambda_.4} parent=0 // loop_header_branch
    %16 = sbr.rel (%p14) target = $region8
  $region5: #{_lambda_.4} parent=0 // loop_body
    %s18 = ssub.s32 %s13, 1
    %s19 = ssub.s32 %s13, 2
    %s20 = sadd.s32 %s13, 1
    %s21 = ssub.s32 %s13, %s20
    %p22 = scmp.eq.s32.totalorder %s21, 0
    %s24 = sadd.s32 %s23, 1
    %s25 = scalar_select %p22, %s23, %s24
    %p28 = pneg %p22
    %p29 = scmp.eq.s32.totalorder %s13, 1
    %p30 = por %p28, %p29
    %p31 = scmp.ne.s32.totalorder %s23, %s26
    %p32 = scmp.eq.s32.totalorder %s13, 0
    %p33 = por %p31, %p32
    %p34 = scmp.ne.s32.totalorder %s23, %s26
    %p35 = scmp.eq.s32.totalorder %s18, 1
    %p36 = por %p34, %p35
    %p37 = scmp.ne.s32.totalorder %s26, %s27
    %p38 = scmp.eq.s32.totalorder %s18, 0
    %p39 = por %p37, %p38
    %p40 = scmp.ne.s32.totalorder %s26, %s27
    %p41 = scmp.eq.s32.totalorder %s19, 1
    %p42 = por %p40, %p41
    %p44 = scmp.ne.s32.totalorder %s27, %s43
    %p45 = scmp.eq.s32.totalorder %s19, 0
    %p46 = por %p44, %p45
    %s48 = sadd.s32 %s47, 1
    %p51 = scmp.eq.s32.totalorder %s13, 1
    %p52 = scmp.ne.s32.totalorder %s47, %s49
    %p53 = scmp.eq.s32.totalorder %s13, 0
    %p54 = por %p52, %p53
    %p55 = scmp.ne.s32.totalorder %s47, %s49
    %p56 = scmp.eq.s32.totalorder %s18, 1
    %p57 = por %p55, %p56
    %p58 = scmp.ne.s32.totalorder %s49, %s50
    %p59 = scmp.eq.s32.totalorder %s18, 0
    %p60 = por %p58, %p59
    %p61 = scmp.ne.s32.totalorder %s49, %s50
    %p62 = scmp.eq.s32.totalorder %s19, 1
    %p63 = por %p61, %p62
    %p65 = scmp.ne.s32.totalorder %s50, %s64
    %p66 = scmp.eq.s32.totalorder %s19, 0
    %p67 = por %p65, %p66
    %s69 = sadd.s32 %s68, 1
    %p72 = scmp.eq.s32.totalorder %s13, 1
    %p73 = scmp.ne.s32.totalorder %s68, %s70
    %p74 = scmp.eq.s32.totalorder %s13, 0
    %p75 = por %p73, %p74
    %p76 = scmp.ne.s32.totalorder %s68, %s70
    %p77 = scmp.eq.s32.totalorder %s18, 1
    %p78 = por %p76, %p77
    %p79 = scmp.ne.s32.totalorder %s70, %s71
    %p80 = scmp.eq.s32.totalorder %s18, 0
    %p81 = por %p79, %p80
    %p82 = scmp.ne.s32.totalorder %s70, %s71
    %p83 = scmp.eq.s32.totalorder %s19, 1
    %p84 = por %p82, %p83
    %p86 = scmp.ne.s32.totalorder %s71, %s85
    %p87 = scmp.eq.s32.totalorder %s19, 0
    %p88 = por %p86, %p87
    %s90 = sadd.s32 %s89, 1
    %p93 = scmp.eq.s32.totalorder %s13, 1
    %p94 = scmp.ne.s32.totalorder %s89, %s91
    %p95 = scmp.eq.s32.totalorder %s13, 0
    %p96 = por %p94, %p95
    %p97 = scmp.ne.s32.totalorder %s89, %s91
    %p98 = scmp.eq.s32.totalorder %s18, 1
    %p99 = por %p97, %p98
    %p100 = scmp.ne.s32.totalorder %s91, %s92
    %p101 = scmp.eq.s32.totalorder %s18, 0
    %p102 = por %p100, %p101
    %p103 = scmp.ne.s32.totalorder %s91, %s92
    %p104 = scmp.eq.s32.totalorder %s19, 1
    %p105 = por %p103, %p104
    %p107 = scmp.ne.s32.totalorder %s92, %s106
    %p108 = scmp.eq.s32.totalorder %s19, 0
    %p109 = por %p107, %p108
    %s111 = sadd.s32 %s110, 1
    %p114 = scmp.eq.s32.totalorder %s13, 1
    %p115 = scmp.ne.s32.totalorder %s110, %s112
    %p116 = scmp.eq.s32.totalorder %s13, 0
    %p117 = por %p115, %p116
    %p118 = scmp.ne.s32.totalorder %s110, %s112
    %p119 = scmp.eq.s32.totalorder %s18, 1
    %p120 = por %p118, %p119
    %p121 = scmp.ne.s32.totalorder %s112, %s113
    %p122 = scmp.eq.s32.totalorder %s18, 0
    %p123 = por %p121, %p122
    %p124 = scmp.ne.s32.totalorder %s112, %s113
    %p125 = scmp.eq.s32.totalorder %s19, 1
    %p126 = por %p124, %p125
    %p128 = scmp.ne.s32.totalorder %s113, %s127
    %p129 = scmp.eq.s32.totalorder %s19, 0
    %p130 = por %p128, %p129
    %s131 = ssub.s32 %s13, %s20
    %p132 = scmp.eq.s32.totalorder %s131, 0
    %s134 = sadd.s32 %s133, 1
    %s135 = scalar_select %p132, %s133, %s134
    %p138 = pneg %p132
    %p139 = scmp.eq.s32.totalorder %s13, 1
    %p140 = por %p138, %p139
    %p141 = scmp.ne.s32.totalorder %s133, %s136
    %p142 = scmp.eq.s32.totalorder %s13, 0
    %p143 = por %p141, %p142
    %p144 = scmp.ne.s32.totalorder %s133, %s136
    %p145 = scmp.eq.s32.totalorder %s18, 1
    %p146 = por %p144, %p145
    %p147 = scmp.ne.s32.totalorder %s136, %s137
    %p148 = scmp.eq.s32.totalorder %s18, 0
    %p149 = por %p147, %p148
    %p150 = scmp.ne.s32.totalorder %s136, %s137
    %p151 = scmp.eq.s32.totalorder %s19, 1
    %p152 = por %p150, %p151
    %p154 = scmp.ne.s32.totalorder %s137, %s153
    %p155 = scmp.eq.s32.totalorder %s19, 0
    %p156 = por %p154, %p155
    %s157 = ssub.s32 %s13, %s20
    %p158 = scmp.eq.s32.totalorder %s157, 0
    %s160 = sadd.s32 %s159, 1
    %s161 = scalar_select %p158, %s159, %s160
    %p164 = pneg %p158
    %p165 = scmp.eq.s32.totalorder %s13, 1
    %p166 = por %p164, %p165
    %p167 = scmp.ne.s32.totalorder %s159, %s162
    %p168 = scmp.eq.s32.totalorder %s13, 0
    %p169 = por %p167, %p168
    %p170 = scmp.ne.s32.totalorder %s159, %s162
    %p171 = scmp.eq.s32.totalorder %s18, 1
    %p172 = por %p170, %p171
    %p173 = scmp.ne.s32.totalorder %s162, %s163
    %p174 = scmp.eq.s32.totalorder %s18, 0
    %p175 = por %p173, %p174
    %p176 = scmp.ne.s32.totalorder %s162, %s163
    %p177 = scmp.eq.s32.totalorder %s19, 1
    %p178 = por %p176, %p177
    %p180 = scmp.ne.s32.totalorder %s163, %s179
    %p181 = scmp.eq.s32.totalorder %s19, 0
    %p182 = por %p180, %p181
    %p183 = scmp.le.s32.totalorder 1, %s13
    %p184 = scmp.lt.s32.totalorder %s13, 3
    %p185 = pnand %p183, %p184
    %p186 = pneg %p185
    // Predicated region
    $region9: #{_lambda_.4} parent=5 // pred_check
      _
    $region10: #{_lambda_.4} parent=5 // pred_check_branch
      %188 = sbr.rel (%p185) target = $region12
    $region11: #{_lambda_.4} parent=5 // pred_region
      %s189 = ssub.s32 %s13, 1
      // Predicated region
      $region13: #{_lambda_.4} parent=11 // pred_check
        %p190 = pneg %p60
      $region14: #{_lambda_.4} parent=11 // pred_check_branch
        %192 = sbr.rel (%p190) target = $region16
      $region15: #{_lambda_.4} parent=11 // pred_region
        _
      $region16: #{_lambda_.4} parent=11 // pred_fallthru
        _
      // Predicated region
      $region17: #{_lambda_.4} parent=11 // pred_check
        %p193 = pneg %p81
      $region18: #{_lambda_.4} parent=11 // pred_check_branch
        %195 = sbr.rel (%p193) target = $region20
      $region19: #{_lambda_.4} parent=11 // pred_region
        _
      $region20: #{_lambda_.4} parent=11 // pred_fallthru
        _
      // Predicated region
      $region21: #{_lambda_.4} parent=11 // pred_check
        %p196 = pneg %p102
      $region22: #{_lambda_.4} parent=11 // pred_check_branch
        %198 = sbr.rel (%p196) target = $region24
      $region23: #{_lambda_.4} parent=11 // pred_region
        _
      $region24: #{_lambda_.4} parent=11 // pred_fallthru
        _
      // Predicated region
      $region25: #{_lambda_.4} parent=11 // pred_check
        %p199 = pneg %p123
      $region26: #{_lambda_.4} parent=11 // pred_check_branch
        %201 = sbr.rel (%p199) target = $region28
      $region27: #{_lambda_.4} parent=11 // pred_region
        _
      $region28: #{_lambda_.4} parent=11 // pred_fallthru
        _
    $region12: #{_lambda_.4} parent=5 // pred_fallthru
      _
    %p202 = scmp.lt.s32.totalorder %s13, 2
    // Predicated region
    $region29: #{_lambda_.4} parent=5 // pred_check
      %p203 = pneg %p202
    $region30: #{_lambda_.4} parent=5 // pred_check_branch
      %205 = sbr.rel (%p203) target = $region32
    $region31: #{_lambda_.4} parent=5 // pred_region
      // Predicated region
      $region33: #{_lambda_.4} parent=31 // pred_check
        %p206 = pneg %p33
      $region34: #{_lambda_.4} parent=31 // pred_check_branch
        %208 = sbr.rel (%p206) target = $region36
      $region35: #{_lambda_.4} parent=31 // pred_region
        %p209 = scmp.lt.s32.totalorder %s13, 1
        %s210 = scalar_select %p209, %s13, 1
        %s211 = smul.addr %s210, 30
        %s212 = smul.addr %s211, 8
        %s213 = scalar_lea.vmem %s0, %s212
      $region36: #{_lambda_.4} parent=31 // pred_fallthru
        _
    $region32: #{_lambda_.4} parent=5 // pred_fallthru
      _
    %p214 = scmp.le.s32.totalorder 1, %s13
    %p215 = scmp.lt.s32.totalorder %s13, 3
    %p216 = pnand %p214, %p215
    %p217 = pneg %p216
    // Predicated region
    $region37: #{_lambda_.4} parent=5 // pred_check
      _
    $region38: #{_lambda_.4} parent=5 // pred_check_branch
      %219 = sbr.rel (%p216) target = $region40
    $region39: #{_lambda_.4} parent=5 // pred_region
      %s220 = ssub.s32 %s13, 1
      %p221 = scmp.lt.s32.totalorder %s18, 1
      %s222 = scalar_select %p221, %s18, 1
      %s223 = smul.addr %s222, 30
      %s224 = smul.addr %s223, 8
      %s225 = scalar_lea.vmem %s0, %s224
      %p226 = pneg %p39
      %p227 = pneg %p36
      %p228 = pneg %p60
      %p229 = pneg %p57
      %p230 = pneg %p81
      %p231 = pneg %p78
      %p232 = pneg %p102
      %p233 = pneg %p99
      %p234 = pneg %p123
      %p235 = pneg %p120
      %p236 = pneg %p149
      %p237 = pneg %p146
      %p238 = scmp.lt.s32.totalorder %s18, 1
      %s239 = scalar_select %p238, %s18, 1
      %s240 = smul.addr %s239, 26
      %s241 = smul.addr %s240, 8
      %s242 = scalar_lea.vmem %s5, %s241
      %p243 = pneg %p175
      %p244 = pneg %p172
      %p245 = scmp.lt.s32.totalorder %s18, 1
      %s246 = scalar_select %p245, %s18, 1
      %s247 = smul.addr %s246, 2
      %s248 = scalar_lea.vmem %s6, %s247
      %p249 = scmp.lt.s32.totalorder %s18, 1
      %s250 = scalar_select %p249, %s18, 1
      %s251 = smul.addr %s250, 30
      %s252 = smul.addr %s251, 8
      %s253 = scalar_lea.vmem %s0, %s252
      %p254 = scmp.lt.s32.totalorder %s18, 1
      %s255 = scalar_select %p254, %s18, 1
      %s256 = smul.addr %s255, 26
      %s257 = smul.addr %s256, 8
      %s258 = scalar_lea.vmem %s5, %s257
      %p259 = scmp.lt.s32.totalorder %s18, 1
      %s260 = scalar_select %p259, %s18, 1
      %s261 = smul.addr %s260, 2
      %s262 = scalar_lea.vmem %s6, %s261
      %v264 = vld [vmem:[%s253] sm:$0xff]
      %v265 = vld [vmem:[%s253 + $0x8] sm:$0xff]
      %v266 = vld [vmem:[%s253 + $0x10] sm:$0xff]
      %v267 = vld [vmem:[%s253 + $0x18] sm:$0xff]
      %v268 = vld [vmem:[%s253 + $0x20] sm:$0xff]
      %v269 = vld [vmem:[%s253 + $0x28] sm:$0xff]
      %v270 = vld [vmem:[%s253 + $0x30] sm:$0xff]
      %v271 = vld [vmem:[%s253 + $0x38] sm:$0xff]
      %v272 = vld [vmem:[%s253 + $0x40] sm:$0xff]
      %v273 = vld [vmem:[%s253 + $0x48] sm:$0xff]
      %v274 = vld [vmem:[%s253 + $0x50] sm:$0xff]
      %v275 = vld [vmem:[%s253 + $0x58] sm:$0xff]
      %v276 = vld [vmem:[%s253 + $0x60] sm:$0xff]
      %v277 = vld [vmem:[%s253 + $0x68] sm:$0xff]
      %v278 = vld [vmem:[%s253 + $0x70] sm:$0xff]
      %v279 = vld [vmem:[%s253 + $0x78] sm:$0xff]
      %v280 = vld [vmem:[%s253 + $0x80] sm:$0xff]
      %v281 = vld [vmem:[%s253 + $0x88] sm:$0xff]
      %v282 = vld [vmem:[%s253 + $0x90] sm:$0xff]
      %v283 = vld [vmem:[%s253 + $0x98] sm:$0xff]
      %v284 = vld [vmem:[%s253 + $0xa0] sm:$0xff]
      %v285 = vld [vmem:[%s253 + $0xa8] sm:$0xff]
      %v286 = vld [vmem:[%s253 + $0xb0] sm:$0xff]
      %v287 = vld [vmem:[%s253 + $0xb8] sm:$0xff]
      %v288 = vld [vmem:[%s253 + $0xc0] sm:$0xff]
      %v289 = vld [vmem:[%s253 + $0xc8] sm:$0xff]
      %v290 = vld [vmem:[%s253 + $0xd0] sm:$0xff]
      %v291 = vld [vmem:[%s253 + $0xd8] sm:$0xff]
      %v292 = vld [vmem:[%s253 + $0xe0] sm:$0xff]
      %v293 = vld [vmem:[%s1] sm:$0x1]
      %v294 = vld [vmem:[%s2] sm:$0x1]
      %v296 = vlaneseq
      %v297 = vshrl.u32 %v296, 7
      %v298 = vsub.s32 0, %v297
      %v299 = vrot.slane %v293, %v298
      %v301 = vmul.f32 %v264, %v299
      %v302 = vmul.f32 %v265, %v299
      %v303 = vmul.f32 %v266, %v299
      %v304 = vmul.f32 %v267, %v299
      %v305 = vmul.f32 %v268, %v299
      %v306 = vmul.f32 %v269, %v299
      %v307 = vmul.f32 %v270, %v299
      %v308 = vmul.f32 %v271, %v299
      %v309 = vmul.f32 %v272, %v299
      %v310 = vmul.f32 %v273, %v299
      %v311 = vmul.f32 %v274, %v299
      %v312 = vmul.f32 %v275, %v299
      %v313 = vmul.f32 %v276, %v299
      %v314 = vmul.f32 %v277, %v299
      %v315 = vmul.f32 %v278, %v299
      %v316 = vmul.f32 %v279, %v299
      %v317 = vmul.f32 %v280, %v299
      %v318 = vmul.f32 %v281, %v299
      %v319 = vmul.f32 %v282, %v299
      %v320 = vmul.f32 %v283, %v299
      %v321 = vmul.f32 %v284, %v299
      %v322 = vmul.f32 %v285, %v299
      %v323 = vmul.f32 %v286, %v299
      %v324 = vmul.f32 %v287, %v299
      %v325 = vmul.f32 %v288, %v299
      %v326 = vmul.f32 %v289, %v299
      %v327 = vmul.f32 %v290, %v299
      %v328 = vmul.f32 %v291, %v299
      %v329 = vmul.f32 %v292, %v299
      %v331 = vlaneseq
      %v332 = vshrl.u32 %v331, 7
      %v333 = vsub.s32 0, %v332
      %v334 = vrot.slane %v294, %v333
      %v336 = vadd.f32 %v301, %v334
      %v337 = vadd.f32 %v302, %v334
      %v338 = vadd.f32 %v303, %v334
      %v339 = vadd.f32 %v304, %v334
      %v340 = vadd.f32 %v305, %v334
      %v341 = vadd.f32 %v306, %v334
      %v342 = vadd.f32 %v307, %v334
      %v343 = vadd.f32 %v308, %v334
      %v344 = vadd.f32 %v309, %v334
      %v345 = vadd.f32 %v310, %v334
      %v346 = vadd.f32 %v311, %v334
      %v347 = vadd.f32 %v312, %v334
      %v348 = vadd.f32 %v313, %v334
      %v349 = vadd.f32 %v314, %v334
      %v350 = vadd.f32 %v315, %v334
      %v351 = vadd.f32 %v316, %v334
      %v352 = vadd.f32 %v317, %v334
      %v353 = vadd.f32 %v318, %v334
      %v354 = vadd.f32 %v319, %v334
      %v355 = vadd.f32 %v320, %v334
      %v356 = vadd.f32 %v321, %v334
      %v357 = vadd.f32 %v322, %v334
      %v358 = vadd.f32 %v323, %v334
      %v359 = vadd.f32 %v324, %v334
      %v360 = vadd.f32 %v325, %v334
      %v361 = vadd.f32 %v326, %v334
      %v362 = vadd.f32 %v327, %v334
      %v363 = vadd.f32 %v328, %v334
      %v364 = vadd.f32 %v329, %v334
      %vm365 = vcmp.gt.f32.partialorder %v336, 0.0
      %vm366 = vcmp.gt.f32.partialorder %v337, 0.0
      %vm367 = vcmp.gt.f32.partialorder %v338, 0.0
      %vm368 = vcmp.gt.f32.partialorder %v339, 0.0
      %vm369 = vcmp.gt.f32.partialorder %v340, 0.0
      %vm370 = vcmp.gt.f32.partialorder %v341, 0.0
      %vm371 = vcmp.gt.f32.partialorder %v342, 0.0
      %vm372 = vcmp.gt.f32.partialorder %v343, 0.0
      %vm373 = vcmp.gt.f32.partialorder %v344, 0.0
      %vm374 = vcmp.gt.f32.partialorder %v345, 0.0
      %vm375 = vcmp.gt.f32.partialorder %v346, 0.0
      %vm376 = vcmp.gt.f32.partialorder %v347, 0.0
      %vm377 = vcmp.gt.f32.partialorder %v348, 0.0
      %vm378 = vcmp.gt.f32.partialorder %v349, 0.0
      %vm379 = vcmp.gt.f32.partialorder %v350, 0.0
      %vm380 = vcmp.gt.f32.partialorder %v351, 0.0
      %vm381 = vcmp.gt.f32.partialorder %v352, 0.0
      %vm382 = vcmp.gt.f32.partialorder %v353, 0.0
      %vm383 = vcmp.gt.f32.partialorder %v354, 0.0
      %vm384 = vcmp.gt.f32.partialorder %v355, 0.0
      %vm385 = vcmp.gt.f32.partialorder %v356, 0.0
      %vm386 = vcmp.gt.f32.partialorder %v357, 0.0
      %vm387 = vcmp.gt.f32.partialorder %v358, 0.0
      %vm388 = vcmp.gt.f32.partialorder %v359, 0.0
      %vm389 = vcmp.gt.f32.partialorder %v360, 0.0
      %vm390 = vcmp.gt.f32.partialorder %v361, 0.0
      %vm391 = vcmp.gt.f32.partialorder %v362, 0.0
      %vm392 = vcmp.gt.f32.partialorder %v363, 0.0
      %vm393 = vcmp.gt.f32.partialorder %v364, 0.0
      %v394 = vmul.f32 %v336, 0.01
      %v395 = vmul.f32 %v337, 0.01
      %v396 = vmul.f32 %v338, 0.01
      %v397 = vmul.f32 %v339, 0.01
      %v398 = vmul.f32 %v340, 0.01
      %v399 = vmul.f32 %v341, 0.01
      %v400 = vmul.f32 %v342, 0.01
      %v401 = vmul.f32 %v343, 0.01
      %v402 = vmul.f32 %v344, 0.01
      %v403 = vmul.f32 %v345, 0.01
      %v404 = vmul.f32 %v346, 0.01
      %v405 = vmul.f32 %v347, 0.01
      %v406 = vmul.f32 %v348, 0.01
      %v407 = vmul.f32 %v349, 0.01
      %v408 = vmul.f32 %v350, 0.01
      %v409 = vmul.f32 %v351, 0.01
      %v410 = vmul.f32 %v352, 0.01
      %v411 = vmul.f32 %v353, 0.01
      %v412 = vmul.f32 %v354, 0.01
      %v413 = vmul.f32 %v355, 0.01
      %v414 = vmul.f32 %v356, 0.01
      %v415 = vmul.f32 %v357, 0.01
      %v416 = vmul.f32 %v358, 0.01
      %v417 = vmul.f32 %v359, 0.01
      %v418 = vmul.f32 %v360, 0.01
      %v419 = vmul.f32 %v361, 0.01
      %v420 = vmul.f32 %v362, 0.01
      %v421 = vmul.f32 %v363, 0.01
      %v422 = vmul.f32 %v364, 0.01
      %v423 = vsel %vm365, %v336, %v394
      %v424 = vsel %vm366, %v337, %v395
      %v425 = vsel %vm367, %v338, %v396
      %v426 = vsel %vm368, %v339, %v397
      %v427 = vsel %vm369, %v340, %v398
      %v428 = vsel %vm370, %v341, %v399
      %v429 = vsel %vm371, %v342, %v400
      %v430 = vsel %vm372, %v343, %v401
      %v431 = vsel %vm373, %v344, %v402
      %v432 = vsel %vm374, %v345, %v403
      %v433 = vsel %vm375, %v346, %v404
      %v434 = vsel %vm376, %v347, %v405
      %v435 = vsel %vm377, %v348, %v406
      %v436 = vsel %vm378, %v349, %v407
      %v437 = vsel %vm379, %v350, %v408
      %v438 = vsel %vm380, %v351, %v409
      %v439 = vsel %vm381, %v352, %v410
      %v440 = vsel %vm382, %v353, %v411
      %v441 = vsel %vm383, %v354, %v412
      %v442 = vsel %vm384, %v355, %v413
      %v443 = vsel %vm385, %v356, %v414
      %v444 = vsel %vm386, %v357, %v415
      %v445 = vsel %vm387, %v358, %v416
      %v446 = vsel %vm388, %v359, %v417
      %v447 = vsel %vm389, %v360, %v418
      %v448 = vsel %vm390, %v361, %v419
      %v449 = vsel %vm391, %v362, %v420
      %v450 = vsel %vm392, %v363, %v421
      %v451 = vsel %vm393, %v364, %v422
      %vm477 = vcmask 1046528
      %v478 = vrot.slane %v423, 1
      %v479 = vrot.slane %v424, 1
      %v480 = vsel %vm477, %v478, %v479
      %v481 = vrot.slane %v425, 1
      %v482 = vsel %vm477, %v479, %v481
      %v483 = vrot.slane %v426, 1
      %v484 = vsel %vm477, %v481, %v483
      %v485 = vrot.slane %v427, 1
      %v486 = vsel %vm477, %v483, %v485
      %v487 = vrot.slane %v428, 1
      %v488 = vsel %vm477, %v485, %v487
      %v489 = vrot.slane %v429, 1
      %v490 = vsel %vm477, %v487, %v489
      %v491 = vrot.slane %v430, 1
      %v492 = vsel %vm477, %v489, %v491
      %v493 = vrot.slane %v431, 1
      %v494 = vsel %vm477, %v491, %v493
      %v495 = vrot.slane %v432, 1
      %v496 = vsel %vm477, %v493, %v495
      %v497 = vrot.slane %v433, 1
      %v498 = vsel %vm477, %v495, %v497
      %v499 = vrot.slane %v434, 1
      %v500 = vsel %vm477, %v497, %v499
      %v501 = vrot.slane %v435, 1
      %v502 = vsel %vm477, %v499, %v501
      %v503 = vrot.slane %v436, 1
      %v504 = vsel %vm477, %v501, %v503
      %v505 = vrot.slane %v437, 1
      %v506 = vsel %vm477, %v503, %v505
      %v507 = vrot.slane %v438, 1
      %v508 = vsel %vm477, %v505, %v507
      %v509 = vrot.slane %v439, 1
      %v510 = vsel %vm477, %v507, %v509
      %v511 = vrot.slane %v440, 1
      %v512 = vsel %vm477, %v509, %v511
      %v513 = vrot.slane %v441, 1
      %v514 = vsel %vm477, %v511, %v513
      %v515 = vrot.slane %v442, 1
      %v516 = vsel %vm477, %v513, %v515
      %v517 = vrot.slane %v443, 1
      %v518 = vsel %vm477, %v515, %v517
      %v519 = vrot.slane %v444, 1
      %v520 = vsel %vm477, %v517, %v519
      %v521 = vrot.slane %v445, 1
      %v522 = vsel %vm477, %v519, %v521
      %v523 = vrot.slane %v446, 1
      %v524 = vsel %vm477, %v521, %v523
      %v525 = vrot.slane %v447, 1
      %v526 = vsel %vm477, %v523, %v525
      %527 = vrot.lane.b32.xlu0 %v480, 8
      %v528 = vpop.permute.xlu0 %527
      %529 = vrot.lane.b32.xlu0 %v482, 8
      %v530 = vpop.permute.xlu0 %529
      %531 = vrot.lane.b32.xlu0 %v484, 8
      %v532 = vpop.permute.xlu0 %531
      %533 = vrot.lane.b32.xlu0 %v486, 8
      %v534 = vpop.permute.xlu0 %533
      %535 = vrot.lane.b32.xlu0 %v488, 8
      %v536 = vpop.permute.xlu0 %535
      %537 = vrot.lane.b32.xlu0 %v490, 8
      %v538 = vpop.permute.xlu0 %537
      %539 = vrot.lane.b32.xlu0 %v492, 8
      %v540 = vpop.permute.xlu0 %539
      %541 = vrot.lane.b32.xlu0 %v494, 8
      %v542 = vpop.permute.xlu0 %541
      %543 = vrot.lane.b32.xlu0 %v496, 8
      %v544 = vpop.permute.xlu0 %543
      %545 = vrot.lane.b32.xlu0 %v498, 8
      %v546 = vpop.permute.xlu0 %545
      %547 = vrot.lane.b32.xlu0 %v500, 8
      %v548 = vpop.permute.xlu0 %547
      %549 = vrot.lane.b32.xlu0 %v502, 8
      %v550 = vpop.permute.xlu0 %549
      %551 = vrot.lane.b32.xlu0 %v504, 8
      %v552 = vpop.permute.xlu0 %551
      %553 = vrot.lane.b32.xlu0 %v506, 8
      %v554 = vpop.permute.xlu0 %553
      %555 = vrot.lane.b32.xlu0 %v508, 8
      %v556 = vpop.permute.xlu0 %555
      %557 = vrot.lane.b32.xlu0 %v510, 8
      %v558 = vpop.permute.xlu0 %557
      %559 = vrot.lane.b32.xlu0 %v512, 8
      %v560 = vpop.permute.xlu0 %559
      %561 = vrot.lane.b32.xlu0 %v514, 8
      %v562 = vpop.permute.xlu0 %561
      %563 = vrot.lane.b32.xlu0 %v516, 8
      %v564 = vpop.permute.xlu0 %563
      %565 = vrot.lane.b32.xlu0 %v518, 8
      %v566 = vpop.permute.xlu0 %565
      %567 = vrot.lane.b32.xlu0 %v520, 8
      %v568 = vpop.permute.xlu0 %567
      %569 = vrot.lane.b32.xlu0 %v522, 8
      %v570 = vpop.permute.xlu0 %569
      %571 = vrot.lane.b32.xlu0 %v524, 8
      %v572 = vpop.permute.xlu0 %571
      %573 = vrot.lane.b32.xlu0 %v526, 8
      %v574 = vpop.permute.xlu0 %573
      %vm599 = vcmask 1045504
      %v600 = vrot.slane %v423, 2
      %v601 = vrot.slane %v424, 2
      %v602 = vsel %vm599, %v600, %v601
      %v603 = vrot.slane %v425, 2
      %v604 = vsel %vm599, %v601, %v603
      %v605 = vrot.slane %v426, 2
      %v606 = vsel %vm599, %v603, %v605
      %v607 = vrot.slane %v427, 2
      %v608 = vsel %vm599, %v605, %v607
      %v609 = vrot.slane %v428, 2
      %v610 = vsel %vm599, %v607, %v609
      %v611 = vrot.slane %v429, 2
      %v612 = vsel %vm599, %v609, %v611
      %v613 = vrot.slane %v430, 2
      %v614 = vsel %vm599, %v611, %v613
      %v615 = vrot.slane %v431, 2
      %v616 = vsel %vm599, %v613, %v615
      %v617 = vrot.slane %v432, 2
      %v618 = vsel %vm599, %v615, %v617
      %v619 = vrot.slane %v433, 2
      %v620 = vsel %vm599, %v617, %v619
      %v621 = vrot.slane %v434, 2
      %v622 = vsel %vm599, %v619, %v621
      %v623 = vrot.slane %v435, 2
      %v624 = vsel %vm599, %v621, %v623
      %v625 = vrot.slane %v436, 2
      %v626 = vsel %vm599, %v623, %v625
      %v627 = vrot.slane %v437, 2
      %v628 = vsel %vm599, %v625, %v627
      %v629 = vrot.slane %v438, 2
      %v630 = vsel %vm599, %v627, %v629
      %v631 = vrot.slane %v439, 2
      %v632 = vsel %vm599, %v629, %v631
      %v633 = vrot.slane %v440, 2
      %v634 = vsel %vm599, %v631, %v633
      %v635 = vrot.slane %v441, 2
      %v636 = vsel %vm599, %v633, %v635
      %v637 = vrot.slane %v442, 2
      %v638 = vsel %vm599, %v635, %v637
      %v639 = vrot.slane %v443, 2
      %v640 = vsel %vm599, %v637, %v639
      %v641 = vrot.slane %v444, 2
      %v642 = vsel %vm599, %v639, %v641
      %v643 = vrot.slane %v445, 2
      %v644 = vsel %vm599, %v641, %v643
      %v645 = vrot.slane %v446, 2
      %v646 = vsel %vm599, %v643, %v645
      %v647 = vrot.slane %v447, 2
      %v648 = vsel %vm599, %v645, %v647
      %649 = vrot.lane.b32.xlu0 %v602, 16
      %v650 = vpop.permute.xlu0 %649
      %651 = vrot.lane.b32.xlu0 %v604, 16
      %v652 = vpop.permute.xlu0 %651
      %653 = vrot.lane.b32.xlu0 %v606, 16
      %v654 = vpop.permute.xlu0 %653
      %655 = vrot.lane.b32.xlu0 %v608, 16
      %v656 = vpop.permute.xlu0 %655
      %657 = vrot.lane.b32.xlu0 %v610, 16
      %v658 = vpop.permute.xlu0 %657
      %659 = vrot.lane.b32.xlu0 %v612, 16
      %v660 = vpop.permute.xlu0 %659
      %661 = vrot.lane.b32.xlu0 %v614, 16
      %v662 = vpop.permute.xlu0 %661
      %663 = vrot.lane.b32.xlu0 %v616, 16
      %v664 = vpop.permute.xlu0 %663
      %665 = vrot.lane.b32.xlu0 %v618, 16
      %v666 = vpop.permute.xlu0 %665
      %667 = vrot.lane.b32.xlu0 %v620, 16
      %v668 = vpop.permute.xlu0 %667
      %669 = vrot.lane.b32.xlu0 %v622, 16
      %v670 = vpop.permute.xlu0 %669
      %671 = vrot.lane.b32.xlu0 %v624, 16
      %v672 = vpop.permute.xlu0 %671
      %673 = vrot.lane.b32.xlu0 %v626, 16
      %v674 = vpop.permute.xlu0 %673
      %675 = vrot.lane.b32.xlu0 %v628, 16
      %v676 = vpop.permute.xlu0 %675
      %677 = vrot.lane.b32.xlu0 %v630, 16
      %v678 = vpop.permute.xlu0 %677
      %679 = vrot.lane.b32.xlu0 %v632, 16
      %v680 = vpop.permute.xlu0 %679
      %681 = vrot.lane.b32.xlu0 %v634, 16
      %v682 = vpop.permute.xlu0 %681
      %683 = vrot.lane.b32.xlu0 %v636, 16
      %v684 = vpop.permute.xlu0 %683
      %685 = vrot.lane.b32.xlu0 %v638, 16
      %v686 = vpop.permute.xlu0 %685
      %687 = vrot.lane.b32.xlu0 %v640, 16
      %v688 = vpop.permute.xlu0 %687
      %689 = vrot.lane.b32.xlu0 %v642, 16
      %v690 = vpop.permute.xlu0 %689
      %691 = vrot.lane.b32.xlu0 %v644, 16
      %v692 = vpop.permute.xlu0 %691
      %693 = vrot.lane.b32.xlu0 %v646, 16
      %v694 = vpop.permute.xlu0 %693
      %695 = vrot.lane.b32.xlu0 %v648, 16
      %v696 = vpop.permute.xlu0 %695
      %722 = vrot.lane.b32.xlu0 %v425, 24
      %v723 = vpop.permute.xlu0 %722
      %724 = vrot.lane.b32.xlu0 %v426, 24
      %v725 = vpop.permute.xlu0 %724
      %726 = vrot.lane.b32.xlu0 %v427, 24
      %v727 = vpop.permute.xlu0 %726
      %728 = vrot.lane.b32.xlu0 %v428, 24
      %v729 = vpop.permute.xlu0 %728
      %730 = vrot.lane.b32.xlu0 %v429, 24
      %v731 = vpop.permute.xlu0 %730
      %732 = vrot.lane.b32.xlu0 %v430, 24
      %v733 = vpop.permute.xlu0 %732
      %734 = vrot.lane.b32.xlu0 %v431, 24
      %v735 = vpop.permute.xlu0 %734
      %736 = vrot.lane.b32.xlu0 %v432, 24
      %v737 = vpop.permute.xlu0 %736
      %738 = vrot.lane.b32.xlu0 %v433, 24
      %v739 = vpop.permute.xlu0 %738
      %740 = vrot.lane.b32.xlu0 %v434, 24
      %v741 = vpop.permute.xlu0 %740
      %742 = vrot.lane.b32.xlu0 %v435, 24
      %v743 = vpop.permute.xlu0 %742
      %744 = vrot.lane.b32.xlu0 %v436, 24
      %v745 = vpop.permute.xlu0 %744
      %746 = vrot.lane.b32.xlu0 %v437, 24
      %v747 = vpop.permute.xlu0 %746
      %748 = vrot.lane.b32.xlu0 %v438, 24
      %v749 = vpop.permute.xlu0 %748
      %750 = vrot.lane.b32.xlu0 %v439, 24
      %v751 = vpop.permute.xlu0 %750
      %752 = vrot.lane.b32.xlu0 %v440, 24
      %v753 = vpop.permute.xlu0 %752
      %754 = vrot.lane.b32.xlu0 %v441, 24
      %v755 = vpop.permute.xlu0 %754
      %756 = vrot.lane.b32.xlu0 %v442, 24
      %v757 = vpop.permute.xlu0 %756
      %758 = vrot.lane.b32.xlu0 %v443, 24
      %v759 = vpop.permute.xlu0 %758
      %760 = vrot.lane.b32.xlu0 %v444, 24
      %v761 = vpop.permute.xlu0 %760
      %762 = vrot.lane.b32.xlu0 %v445, 24
      %v763 = vpop.permute.xlu0 %762
      %764 = vrot.lane.b32.xlu0 %v446, 24
      %v765 = vpop.permute.xlu0 %764
      %766 = vrot.lane.b32.xlu0 %v447, 24
      %v767 = vpop.permute.xlu0 %766
      %768 = vrot.lane.b32.xlu0 %v448, 24
      %v769 = vpop.permute.xlu0 %768
      %v795 = vrot.slane %v448, 1
      %v796 = vsel %vm477, %v525, %v795
      %v797 = vrot.slane %v449, 1
      %v798 = vsel %vm477, %v795, %v797
      %799 = vrot.lane.b32.xlu0 %v484, 32
      %v800 = vpop.permute.xlu0 %799
      %801 = vrot.lane.b32.xlu0 %v486, 32
      %v802 = vpop.permute.xlu0 %801
      %803 = vrot.lane.b32.xlu0 %v488, 32
      %v804 = vpop.permute.xlu0 %803
      %805 = vrot.lane.b32.xlu0 %v490, 32
      %v806 = vpop.permute.xlu0 %805
      %807 = vrot.lane.b32.xlu0 %v492, 32
      %v808 = vpop.permute.xlu0 %807
      %809 = vrot.lane.b32.xlu0 %v494, 32
      %v810 = vpop.permute.xlu0 %809
      %811 = vrot.lane.b32.xlu0 %v496, 32
      %v812 = vpop.permute.xlu0 %811
      %813 = vrot.lane.b32.xlu0 %v498, 32
      %v814 = vpop.permute.xlu0 %813
      %815 = vrot.lane.b32.xlu0 %v500, 32
      %v816 = vpop.permute.xlu0 %815
      %817 = vrot.lane.b32.xlu0 %v502, 32
      %v818 = vpop.permute.xlu0 %817
      %819 = vrot.lane.b32.xlu0 %v504, 32
      %v820 = vpop.permute.xlu0 %819
      %821 = vrot.lane.b32.xlu0 %v506, 32
      %v822 = vpop.permute.xlu0 %821
      %823 = vrot.lane.b32.xlu0 %v508, 32
      %v824 = vpop.permute.xlu0 %823
      %825 = vrot.lane.b32.xlu0 %v510, 32
      %v826 = vpop.permute.xlu0 %825
      %827 = vrot.lane.b32.xlu0 %v512, 32
      %v828 = vpop.permute.xlu0 %827
      %829 = vrot.lane.b32.xlu0 %v514, 32
      %v830 = vpop.permute.xlu0 %829
      %831 = vrot.lane.b32.xlu0 %v516, 32
      %v832 = vpop.permute.xlu0 %831
      %833 = vrot.lane.b32.xlu0 %v518, 32
      %v834 = vpop.permute.xlu0 %833
      %835 = vrot.lane.b32.xlu0 %v520, 32
      %v836 = vpop.permute.xlu0 %835
      %837 = vrot.lane.b32.xlu0 %v522, 32
      %v838 = vpop.permute.xlu0 %837
      %839 = vrot.lane.b32.xlu0 %v524, 32
      %v840 = vpop.permute.xlu0 %839
      %841 = vrot.lane.b32.xlu0 %v526, 32
      %v842 = vpop.permute.xlu0 %841
      %843 = vrot.lane.b32.xlu0 %v796, 32
      %v844 = vpop.permute.xlu0 %843
      %845 = vrot.lane.b32.xlu0 %v798, 32
      %v846 = vpop.permute.xlu0 %845
      %v871 = vrot.slane %v448, 2
      %v872 = vsel %vm599, %v647, %v871
      %v873 = vrot.slane %v449, 2
      %v874 = vsel %vm599, %v871, %v873
      %875 = vrot.lane.b32.xlu0 %v606, 40
      %v876 = vpop.permute.xlu0 %875
      %877 = vrot.lane.b32.xlu0 %v608, 40
      %v878 = vpop.permute.xlu0 %877
      %879 = vrot.lane.b32.xlu0 %v610, 40
      %v880 = vpop.permute.xlu0 %879
      %881 = vrot.lane.b32.xlu0 %v612, 40
      %v882 = vpop.permute.xlu0 %881
      %883 = vrot.lane.b32.xlu0 %v614, 40
      %v884 = vpop.permute.xlu0 %883
      %885 = vrot.lane.b32.xlu0 %v616, 40
      %v886 = vpop.permute.xlu0 %885
      %887 = vrot.lane.b32.xlu0 %v618, 40
      %v888 = vpop.permute.xlu0 %887
      %889 = vrot.lane.b32.xlu0 %v620, 40
      %v890 = vpop.permute.xlu0 %889
      %891 = vrot.lane.b32.xlu0 %v622, 40
      %v892 = vpop.permute.xlu0 %891
      %893 = vrot.lane.b32.xlu0 %v624, 40
      %v894 = vpop.permute.xlu0 %893
      %895 = vrot.lane.b32.xlu0 %v626, 40
      %v896 = vpop.permute.xlu0 %895
      %897 = vrot.lane.b32.xlu0 %v628, 40
      %v898 = vpop.permute.xlu0 %897
      %899 = vrot.lane.b32.xlu0 %v630, 40
      %v900 = vpop.permute.xlu0 %899
      %901 = vrot.lane.b32.xlu0 %v632, 40
      %v902 = vpop.permute.xlu0 %901
      %903 = vrot.lane.b32.xlu0 %v634, 40
      %v904 = vpop.permute.xlu0 %903
      %905 = vrot.lane.b32.xlu0 %v636, 40
      %v906 = vpop.permute.xlu0 %905
      %907 = vrot.lane.b32.xlu0 %v638, 40
      %v908 = vpop.permute.xlu0 %907
      %909 = vrot.lane.b32.xlu0 %v640, 40
      %v910 = vpop.permute.xlu0 %909
      %911 = vrot.lane.b32.xlu0 %v642, 40
      %v912 = vpop.permute.xlu0 %911
      %913 = vrot.lane.b32.xlu0 %v644, 40
      %v914 = vpop.permute.xlu0 %913
      %915 = vrot.lane.b32.xlu0 %v646, 40
      %v916 = vpop.permute.xlu0 %915
      %917 = vrot.lane.b32.xlu0 %v648, 40
      %v918 = vpop.permute.xlu0 %917
      %919 = vrot.lane.b32.xlu0 %v872, 40
      %v920 = vpop.permute.xlu0 %919
      %921 = vrot.lane.b32.xlu0 %v874, 40
      %v922 = vpop.permute.xlu0 %921
      %948 = vrot.lane.b32.xlu0 %v427, 48
      %v949 = vpop.permute.xlu0 %948
      %950 = vrot.lane.b32.xlu0 %v428, 48
      %v951 = vpop.permute.xlu0 %950
      %952 = vrot.lane.b32.xlu0 %v429, 48
      %v953 = vpop.permute.xlu0 %952
      %954 = vrot.lane.b32.xlu0 %v430, 48
      %v955 = vpop.permute.xlu0 %954
      %956 = vrot.lane.b32.xlu0 %v431, 48
      %v957 = vpop.permute.xlu0 %956
      %958 = vrot.lane.b32.xlu0 %v432, 48
      %v959 = vpop.permute.xlu0 %958
      %960 = vrot.lane.b32.xlu0 %v433, 48
      %v961 = vpop.permute.xlu0 %960
      %962 = vrot.lane.b32.xlu0 %v434, 48
      %v963 = vpop.permute.xlu0 %962
      %964 = vrot.lane.b32.xlu0 %v435, 48
      %v965 = vpop.permute.xlu0 %964
      %966 = vrot.lane.b32.xlu0 %v436, 48
      %v967 = vpop.permute.xlu0 %966
      %968 = vrot.lane.b32.xlu0 %v437, 48
      %v969 = vpop.permute.xlu0 %968
      %970 = vrot.lane.b32.xlu0 %v438, 48
      %v971 = vpop.permute.xlu0 %970
      %972 = vrot.lane.b32.xlu0 %v439, 48
      %v973 = vpop.permute.xlu0 %972
      %974 = vrot.lane.b32.xlu0 %v440, 48
      %v975 = vpop.permute.xlu0 %974
      %976 = vrot.lane.b32.xlu0 %v441, 48
      %v977 = vpop.permute.xlu0 %976
      %978 = vrot.lane.b32.xlu0 %v442, 48
      %v979 = vpop.permute.xlu0 %978
      %980 = vrot.lane.b32.xlu0 %v443, 48
      %v981 = vpop.permute.xlu0 %980
      %982 = vrot.lane.b32.xlu0 %v444, 48
      %v983 = vpop.permute.xlu0 %982
      %984 = vrot.lane.b32.xlu0 %v445, 48
      %v985 = vpop.permute.xlu0 %984
      %986 = vrot.lane.b32.xlu0 %v446, 48
      %v987 = vpop.permute.xlu0 %986
      %988 = vrot.lane.b32.xlu0 %v447, 48
      %v989 = vpop.permute.xlu0 %988
      %990 = vrot.lane.b32.xlu0 %v448, 48
      %v991 = vpop.permute.xlu0 %990
      %992 = vrot.lane.b32.xlu0 %v449, 48
      %v993 = vpop.permute.xlu0 %992
      %994 = vrot.lane.b32.xlu0 %v450, 48
      %v995 = vpop.permute.xlu0 %994
      %v1021 = vrot.slane %v450, 1
      %v1022 = vsel %vm477, %v797, %v1021
      %v1023 = vrot.slane %v451, 1
      %v1024 = vsel %vm477, %v1021, %v1023
      %1025 = vrot.lane.b32.xlu0 %v488, 56
      %v1026 = vpop.permute.xlu0 %1025
      %1027 = vrot.lane.b32.xlu0 %v490, 56
      %v1028 = vpop.permute.xlu0 %1027
      %1029 = vrot.lane.b32.xlu0 %v492, 56
      %v1030 = vpop.permute.xlu0 %1029
      %1031 = vrot.lane.b32.xlu0 %v494, 56
      %v1032 = vpop.permute.xlu0 %1031
      %1033 = vrot.lane.b32.xlu0 %v496, 56
      %v1034 = vpop.permute.xlu0 %1033
      %1035 = vrot.lane.b32.xlu0 %v498, 56
      %v1036 = vpop.permute.xlu0 %1035
      %1037 = vrot.lane.b32.xlu0 %v500, 56
      %v1038 = vpop.permute.xlu0 %1037
      %1039 = vrot.lane.b32.xlu0 %v502, 56
      %v1040 = vpop.permute.xlu0 %1039
      %1041 = vrot.lane.b32.xlu0 %v504, 56
      %v1042 = vpop.permute.xlu0 %1041
      %1043 = vrot.lane.b32.xlu0 %v506, 56
      %v1044 = vpop.permute.xlu0 %1043
      %1045 = vrot.lane.b32.xlu0 %v508, 56
      %v1046 = vpop.permute.xlu0 %1045
      %1047 = vrot.lane.b32.xlu0 %v510, 56
      %v1048 = vpop.permute.xlu0 %1047
      %1049 = vrot.lane.b32.xlu0 %v512, 56
      %v1050 = vpop.permute.xlu0 %1049
      %1051 = vrot.lane.b32.xlu0 %v514, 56
      %v1052 = vpop.permute.xlu0 %1051
      %1053 = vrot.lane.b32.xlu0 %v516, 56
      %v1054 = vpop.permute.xlu0 %1053
      %1055 = vrot.lane.b32.xlu0 %v518, 56
      %v1056 = vpop.permute.xlu0 %1055
      %1057 = vrot.lane.b32.xlu0 %v520, 56
      %v1058 = vpop.permute.xlu0 %1057
      %1059 = vrot.lane.b32.xlu0 %v522, 56
      %v1060 = vpop.permute.xlu0 %1059
      %1061 = vrot.lane.b32.xlu0 %v524, 56
      %v1062 = vpop.permute.xlu0 %1061
      %1063 = vrot.lane.b32.xlu0 %v526, 56
      %v1064 = vpop.permute.xlu0 %1063
      %1065 = vrot.lane.b32.xlu0 %v796, 56
      %v1066 = vpop.permute.xlu0 %1065
      %1067 = vrot.lane.b32.xlu0 %v798, 56
      %v1068 = vpop.permute.xlu0 %1067
      %1069 = vrot.lane.b32.xlu0 %v1022, 56
      %v1070 = vpop.permute.xlu0 %1069
      %1071 = vrot.lane.b32.xlu0 %v1024, 56
      %v1072 = vpop.permute.xlu0 %1071
      %v1097 = vrot.slane %v450, 2
      %v1098 = vsel %vm599, %v873, %v1097
      %v1099 = vrot.slane %v451, 2
      %v1100 = vsel %vm599, %v1097, %v1099
      %1101 = vrot.lane.b32.xlu0 %v610, 64
      %v1102 = vpop.permute.xlu0 %1101
      %1103 = vrot.lane.b32.xlu0 %v612, 64
      %v1104 = vpop.permute.xlu0 %1103
      %1105 = vrot.lane.b32.xlu0 %v614, 64
      %v1106 = vpop.permute.xlu0 %1105
      %1107 = vrot.lane.b32.xlu0 %v616, 64
      %v1108 = vpop.permute.xlu0 %1107
      %1109 = vrot.lane.b32.xlu0 %v618, 64
      %v1110 = vpop.permute.xlu0 %1109
      %1111 = vrot.lane.b32.xlu0 %v620, 64
      %v1112 = vpop.permute.xlu0 %1111
      %1113 = vrot.lane.b32.xlu0 %v622, 64
      %v1114 = vpop.permute.xlu0 %1113
      %1115 = vrot.lane.b32.xlu0 %v624, 64
      %v1116 = vpop.permute.xlu0 %1115
      %1117 = vrot.lane.b32.xlu0 %v626, 64
      %v1118 = vpop.permute.xlu0 %1117
      %1119 = vrot.lane.b32.xlu0 %v628, 64
      %v1120 = vpop.permute.xlu0 %1119
      %1121 = vrot.lane.b32.xlu0 %v630, 64
      %v1122 = vpop.permute.xlu0 %1121
      %1123 = vrot.lane.b32.xlu0 %v632, 64
      %v1124 = vpop.permute.xlu0 %1123
      %1125 = vrot.lane.b32.xlu0 %v634, 64
      %v1126 = vpop.permute.xlu0 %1125
      %1127 = vrot.lane.b32.xlu0 %v636, 64
      %v1128 = vpop.permute.xlu0 %1127
      %1129 = vrot.lane.b32.xlu0 %v638, 64
      %v1130 = vpop.permute.xlu0 %1129
      %1131 = vrot.lane.b32.xlu0 %v640, 64
      %v1132 = vpop.permute.xlu0 %1131
      %1133 = vrot.lane.b32.xlu0 %v642, 64
      %v1134 = vpop.permute.xlu0 %1133
      %1135 = vrot.lane.b32.xlu0 %v644, 64
      %v1136 = vpop.permute.xlu0 %1135
      %1137 = vrot.lane.b32.xlu0 %v646, 64
      %v1138 = vpop.permute.xlu0 %1137
      %1139 = vrot.lane.b32.xlu0 %v648, 64
      %v1140 = vpop.permute.xlu0 %1139
      %1141 = vrot.lane.b32.xlu0 %v872, 64
      %v1142 = vpop.permute.xlu0 %1141
      %1143 = vrot.lane.b32.xlu0 %v874, 64
      %v1144 = vpop.permute.xlu0 %1143
      %1145 = vrot.lane.b32.xlu0 %v1098, 64
      %v1146 = vpop.permute.xlu0 %1145
      %1147 = vrot.lane.b32.xlu0 %v1100, 64
      %v1148 = vpop.permute.xlu0 %1147
      %vm1173 = vcmask 64512
      %v1174 = vsel %vm1173, %v423, %v528
      %v1175 = vsel %vm1173, %v424, %v530
      %v1176 = vsel %vm1173, %v425, %v532
      %v1177 = vsel %vm1173, %v426, %v534
      %v1178 = vsel %vm1173, %v427, %v536
      %v1179 = vsel %vm1173, %v428, %v538
      %v1180 = vsel %vm1173, %v429, %v540
      %v1181 = vsel %vm1173, %v430, %v542
      %v1182 = vsel %vm1173, %v431, %v544
      %v1183 = vsel %vm1173, %v432, %v546
      %v1184 = vsel %vm1173, %v433, %v548
      %v1185 = vsel %vm1173, %v434, %v550
      %v1186 = vsel %vm1173, %v435, %v552
      %v1187 = vsel %vm1173, %v436, %v554
      %v1188 = vsel %vm1173, %v437, %v556
      %v1189 = vsel %vm1173, %v438, %v558
      %v1190 = vsel %vm1173, %v439, %v560
      %v1191 = vsel %vm1173, %v440, %v562
      %v1192 = vsel %vm1173, %v441, %v564
      %v1193 = vsel %vm1173, %v442, %v566
      %v1194 = vsel %vm1173, %v443, %v568
      %v1195 = vsel %vm1173, %v444, %v570
      %v1196 = vsel %vm1173, %v445, %v572
      %v1197 = vsel %vm1173, %v446, %v574
      %vm1198 = vcmask 130048
      %v1199 = vsel %vm1198, %v1174, %v650
      %v1200 = vsel %vm1198, %v1175, %v652
      %v1201 = vsel %vm1198, %v1176, %v654
      %v1202 = vsel %vm1198, %v1177, %v656
      %v1203 = vsel %vm1198, %v1178, %v658
      %v1204 = vsel %vm1198, %v1179, %v660
      %v1205 = vsel %vm1198, %v1180, %v662
      %v1206 = vsel %vm1198, %v1181, %v664
      %v1207 = vsel %vm1198, %v1182, %v666
      %v1208 = vsel %vm1198, %v1183, %v668
      %v1209 = vsel %vm1198, %v1184, %v670
      %v1210 = vsel %vm1198, %v1185, %v672
      %v1211 = vsel %vm1198, %v1186, %v674
      %v1212 = vsel %vm1198, %v1187, %v676
      %v1213 = vsel %vm1198, %v1188, %v678
      %v1214 = vsel %vm1198, %v1189, %v680
      %v1215 = vsel %vm1198, %v1190, %v682
      %v1216 = vsel %vm1198, %v1191, %v684
      %v1217 = vsel %vm1198, %v1192, %v686
      %v1218 = vsel %vm1198, %v1193, %v688
      %v1219 = vsel %vm1198, %v1194, %v690
      %v1220 = vsel %vm1198, %v1195, %v692
      %v1221 = vsel %vm1198, %v1196, %v694
      %v1222 = vsel %vm1198, %v1197, %v696
      %vm1223 = vcmask 195584
      %v1224 = vsel %vm1223, %v1199, %v723
      %v1225 = vsel %vm1223, %v1200, %v725
      %v1226 = vsel %vm1223, %v1201, %v727
      %v1227 = vsel %vm1223, %v1202, %v729
      %v1228 = vsel %vm1223, %v1203, %v731
      %v1229 = vsel %vm1223, %v1204, %v733
      %v1230 = vsel %vm1223, %v1205, %v735
      %v1231 = vsel %vm1223, %v1206, %v737
      %v1232 = vsel %vm1223, %v1207, %v739
      %v1233 = vsel %vm1223, %v1208, %v741
      %v1234 = vsel %vm1223, %v1209, %v743
      %v1235 = vsel %vm1223, %v1210, %v745
      %v1236 = vsel %vm1223, %v1211, %v747
      %v1237 = vsel %vm1223, %v1212, %v749
      %v1238 = vsel %vm1223, %v1213, %v751
      %v1239 = vsel %vm1223, %v1214, %v753
      %v1240 = vsel %vm1223, %v1215, %v755
      %v1241 = vsel %vm1223, %v1216, %v757
      %v1242 = vsel %vm1223, %v1217, %v759
      %v1243 = vsel %vm1223, %v1218, %v761
      %v1244 = vsel %vm1223, %v1219, %v763
      %v1245 = vsel %vm1223, %v1220, %v765
      %v1246 = vsel %vm1223, %v1221, %v767
      %v1247 = vsel %vm1223, %v1222, %v769
      %vm1248 = vcmask 261120
      %v1249 = vsel %vm1248, %v1224, %v800
      %v1250 = vsel %vm1248, %v1225, %v802
      %v1251 = vsel %vm1248, %v1226, %v804
      %v1252 = vsel %vm1248, %v1227, %v806
      %v1253 = vsel %vm1248, %v1228, %v808
      %v1254 = vsel %vm1248, %v1229, %v810
      %v1255 = vsel %vm1248, %v1230, %v812
      %v1256 = vsel %vm1248, %v1231, %v814
      %v1257 = vsel %vm1248, %v1232, %v816
      %v1258 = vsel %vm1248, %v1233, %v818
      %v1259 = vsel %vm1248, %v1234, %v820
      %v1260 = vsel %vm1248, %v1235, %v822
      %v1261 = vsel %vm1248, %v1236, %v824
      %v1262 = vsel %vm1248, %v1237, %v826
      %v1263 = vsel %vm1248, %v1238, %v828
      %v1264 = vsel %vm1248, %v1239, %v830
      %v1265 = vsel %vm1248, %v1240, %v832
      %v1266 = vsel %vm1248, %v1241, %v834
      %v1267 = vsel %vm1248, %v1242, %v836
      %v1268 = vsel %vm1248, %v1243, %v838
      %v1269 = vsel %vm1248, %v1244, %v840
      %v1270 = vsel %vm1248, %v1245, %v842
      %v1271 = vsel %vm1248, %v1246, %v844
      %v1272 = vsel %vm1248, %v1247, %v846
      %vm1273 = vcmask 326656
      %v1274 = vsel %vm1273, %v1249, %v876
      %v1275 = vsel %vm1273, %v1250, %v878
      %v1276 = vsel %vm1273, %v1251, %v880
      %v1277 = vsel %vm1273, %v1252, %v882
      %v1278 = vsel %vm1273, %v1253, %v884
      %v1279 = vsel %vm1273, %v1254, %v886
      %v1280 = vsel %vm1273, %v1255, %v888
      %v1281 = vsel %vm1273, %v1256, %v890
      %v1282 = vsel %vm1273, %v1257, %v892
      %v1283 = vsel %vm1273, %v1258, %v894
      %v1284 = vsel %vm1273, %v1259, %v896
      %v1285 = vsel %vm1273, %v1260, %v898
      %v1286 = vsel %vm1273, %v1261, %v900
      %v1287 = vsel %vm1273, %v1262, %v902
      %v1288 = vsel %vm1273, %v1263, %v904
      %v1289 = vsel %vm1273, %v1264, %v906
      %v1290 = vsel %vm1273, %v1265, %v908
      %v1291 = vsel %vm1273, %v1266, %v910
      %v1292 = vsel %vm1273, %v1267, %v912
      %v1293 = vsel %vm1273, %v1268, %v914
      %v1294 = vsel %vm1273, %v1269, %v916
      %v1295 = vsel %vm1273, %v1270, %v918
      %v1296 = vsel %vm1273, %v1271, %v920
      %v1297 = vsel %vm1273, %v1272, %v922
      %vm1298 = vcmask 392192
      %v1299 = vsel %vm1298, %v1274, %v949
      %v1300 = vsel %vm1298, %v1275, %v951
      %v1301 = vsel %vm1298, %v1276, %v953
      %v1302 = vsel %vm1298, %v1277, %v955
      %v1303 = vsel %vm1298, %v1278, %v957
      %v1304 = vsel %vm1298, %v1279, %v959
      %v1305 = vsel %vm1298, %v1280, %v961
      %v1306 = vsel %vm1298, %v1281, %v963
      %v1307 = vsel %vm1298, %v1282, %v965
      %v1308 = vsel %vm1298, %v1283, %v967
      %v1309 = vsel %vm1298, %v1284, %v969
      %v1310 = vsel %vm1298, %v1285, %v971
      %v1311 = vsel %vm1298, %v1286, %v973
      %v1312 = vsel %vm1298, %v1287, %v975
      %v1313 = vsel %vm1298, %v1288, %v977
      %v1314 = vsel %vm1298, %v1289, %v979
      %v1315 = vsel %vm1298, %v1290, %v981
      %v1316 = vsel %vm1298, %v1291, %v983
      %v1317 = vsel %vm1298, %v1292, %v985
      %v1318 = vsel %vm1298, %v1293, %v987
      %v1319 = vsel %vm1298, %v1294, %v989
      %v1320 = vsel %vm1298, %v1295, %v991
      %v1321 = vsel %vm1298, %v1296, %v993
      %v1322 = vsel %vm1298, %v1297, %v995
      %vm1323 = vcmask 457728
      %v1324 = vsel %vm1323, %v1299, %v1026
      %v1325 = vsel %vm1323, %v1300, %v1028
      %v1326 = vsel %vm1323, %v1301, %v1030
      %v1327 = vsel %vm1323, %v1302, %v1032
      %v1328 = vsel %vm1323, %v1303, %v1034
      %v1329 = vsel %vm1323, %v1304, %v1036
      %v1330 = vsel %vm1323, %v1305, %v1038
      %v1331 = vsel %vm1323, %v1306, %v1040
      %v1332 = vsel %vm1323, %v1307, %v1042
      %v1333 = vsel %vm1323, %v1308, %v1044
      %v1334 = vsel %vm1323, %v1309, %v1046
      %v1335 = vsel %vm1323, %v1310, %v1048
      %v1336 = vsel %vm1323, %v1311, %v1050
      %v1337 = vsel %vm1323, %v1312, %v1052
      %v1338 = vsel %vm1323, %v1313, %v1054
      %v1339 = vsel %vm1323, %v1314, %v1056
      %v1340 = vsel %vm1323, %v1315, %v1058
      %v1341 = vsel %vm1323, %v1316, %v1060
      %v1342 = vsel %vm1323, %v1317, %v1062
      %v1343 = vsel %vm1323, %v1318, %v1064
      %v1344 = vsel %vm1323, %v1319, %v1066
      %v1345 = vsel %vm1323, %v1320, %v1068
      %v1346 = vsel %vm1323, %v1321, %v1070
      %v1347 = vsel %vm1323, %v1322, %v1072
      %vm1348 = vcmask 523264
      %v1349 = vsel %vm1348, %v1324, %v1102
      %v1350 = vsel %vm1348, %v1325, %v1104
      %v1351 = vsel %vm1348, %v1326, %v1106
      %v1352 = vsel %vm1348, %v1327, %v1108
      %v1353 = vsel %vm1348, %v1328, %v1110
      %v1354 = vsel %vm1348, %v1329, %v1112
      %v1355 = vsel %vm1348, %v1330, %v1114
      %v1356 = vsel %vm1348, %v1331, %v1116
      %v1357 = vsel %vm1348, %v1332, %v1118
      %v1358 = vsel %vm1348, %v1333, %v1120
      %v1359 = vsel %vm1348, %v1334, %v1122
      %v1360 = vsel %vm1348, %v1335, %v1124
      %v1361 = vsel %vm1348, %v1336, %v1126
      %v1362 = vsel %vm1348, %v1337, %v1128
      %v1363 = vsel %vm1348, %v1338, %v1130
      %v1364 = vsel %vm1348, %v1339, %v1132
      %v1365 = vsel %vm1348, %v1340, %v1134
      %v1366 = vsel %vm1348, %v1341, %v1136
      %v1367 = vsel %vm1348, %v1342, %v1138
      %v1368 = vsel %vm1348, %v1343, %v1140
      %v1369 = vsel %vm1348, %v1344, %v1142
      %v1370 = vsel %vm1348, %v1345, %v1144
      %v1371 = vsel %vm1348, %v1346, %v1146
      %v1372 = vsel %vm1348, %v1347, %v1148
      %v1373 = vpack.c.bf16 %v1350, %v1349
      %v1374 = vpack.c.bf16 %v1352, %v1351
      %v1375 = vpack.c.bf16 %v1354, %v1353
      %v1376 = vpack.c.bf16 %v1356, %v1355
      %v1377 = vpack.c.bf16 %v1358, %v1357
      %v1378 = vpack.c.bf16 %v1360, %v1359
      %v1379 = vpack.c.bf16 %v1362, %v1361
      %v1380 = vpack.c.bf16 %v1364, %v1363
      %v1381 = vpack.c.bf16 %v1366, %v1365
      %v1382 = vpack.c.bf16 %v1368, %v1367
      %v1383 = vpack.c.bf16 %v1370, %v1369
      %v1384 = vpack.c.bf16 %v1372, %v1371
      %v1385 = vld [vmem:[%s3] sm:$0xf]
      %v1386 = vld [vmem:[%s3 + $0x4] sm:$0xf]
      %v1387 = vld [vmem:[%s3 + $0x8] sm:$0xf]
      %v1388 = vld [vmem:[%s3 + $0xc] sm:$0xf]
      %v1389 = vld [vmem:[%s3 + $0x10] sm:$0xf]
      %v1390 = vld [vmem:[%s3 + $0x14] sm:$0xf]
      %v1391 = vld [vmem:[%s3 + $0x18] sm:$0xf]
      %v1392 = vld [vmem:[%s3 + $0x1c] sm:$0xf]
      %v1393 = vld [vmem:[%s3 + $0x20] sm:$0xf]
      %v1403 = vunpack.c.l.b16 %v1385
      %v1404 = vunpack.c.l.b16 %v1386
      %v1405 = vunpack.c.l.b16 %v1387
      %v1406 = vunpack.c.l.b16 %v1388
      %v1407 = vunpack.c.l.b16 %v1389
      %v1408 = vunpack.c.l.b16 %v1390
      %v1409 = vunpack.c.l.b16 %v1391
      %v1410 = vunpack.c.l.b16 %v1392
      %v1411 = vunpack.c.l.b16 %v1393
      %v1412 = vpack.c.b16 %v1404, %v1403
      %v1413 = vpack.c.b16 %v1406, %v1405
      %v1414 = vpack.c.b16 %v1408, %v1407
      %v1415 = vpack.c.b16 %v1410, %v1409
      %v1416 = vpack.c.b16 %v1411, %v1411
      %vm1421 = vcmask 588800
      %v1423 = vsel %vm1421, %v1373, 0
      %v1426 = vsel %vm1421, %v1374, 0
      %v1429 = vsel %vm1421, %v1375, 0
      %v1432 = vsel %vm1421, %v1376, 0
      %v1435 = vsel %vm1421, %v1377, 0
      %v1438 = vsel %vm1421, %v1378, 0
      %v1441 = vsel %vm1421, %v1379, 0
      %v1444 = vsel %vm1421, %v1380, 0
      %v1447 = vsel %vm1421, %v1381, 0
      %v1450 = vsel %vm1421, %v1382, 0
      %v1453 = vsel %vm1421, %v1383, 0
      %v1456 = vsel %vm1421, %v1384, 0
      %vm1458 = vcmask 1043456
      %v1460 = vsel %vm1458, %v1416, 0
      %1462 = vmatprep.subr.bf16.mxu0 0
      %1463 = vmatpush1.bf16.msra.mxu0 0
      %1464 = vmatprep.subr.bf16.mxu0 0
      %1465 = vmatpush1.bf16.msra.mxu0 0
      %1466 = vmatprep.subr.bf16.mxu0 0
      %1467 = vmatpush1.bf16.msra.mxu0 0
      %1468 = vmatprep.subr.bf16.mxu0 0
      %1469 = vmatpush1.bf16.msra.mxu0 %v1460
      %1470 = vmatprep.subr.bf16.mxu0 0
      %1471 = vmatpush1.bf16.msra.mxu0 %v1415
      %1472 = vmatprep.subr.bf16.mxu0 0
      %1473 = vmatpush1.bf16.msra.mxu0 %v1414
      %1474 = vmatprep.subr.bf16.mxu0 0
      %1475 = vmatpush1.bf16.msra.mxu0 %v1413
      %1476 = vmatprep.subr.bf16.mxu0 0
      %1477 = vmatpush1.bf16.msra.mxu0 %v1412
      %1478 = vmatprep.subr.bf16.mxu0 0
      %1479 = vmatpush2.bf16.msra.mxu0 0
      %1480 = vmatprep.subr.bf16.mxu0 0
      %1481 = vmatpush2.bf16.msra.mxu0 0
      %1482 = vmatprep.subr.bf16.mxu0 0
      %1483 = vmatpush2.bf16.msra.mxu0 0
      %1484 = vmatprep.subr.bf16.mxu0 0
      %1485 = vmatpush2.bf16.msra.mxu0 0
      %1486 = vmatprep.subr.bf16.mxu0 0
      %1487 = vmatpush2.bf16.msra.mxu0 0
      %1488 = vmatprep.subr.bf16.mxu0 0
      %1489 = vmatpush2.bf16.msra.mxu0 0
      %1490 = vmatprep.subr.bf16.mxu0 0
      %1491 = vmatpush2.bf16.msra.mxu0 0
      %1492 = vmatprep.subr.bf16.mxu0 0
      %1493 = vmatpush2.bf16.msra.mxu0 0
      %1494 = vmatprep.mubr.bf16.mxu0 0
      %1495 = vmatmul.mubr.bf16.gmra.mxu0 %v1423
      %v1496 = vpop.f32.mrf.mxu0
      %v1497 = vadd.f32 0.0, %v1496
      %v1498 = vpop.f32.mrf.mxu0
      %v1499 = vpop.f32.mrf.mxu0
      %v1500 = vadd.f32 0.0, %v1499
      %v1501 = vpop.f32.mrf.mxu0
      %1502 = vmatprep.mubr.bf16.mxu0 0
      %1503 = vmatmul.mubr.bf16.gmra.mxu0 %v1426
      %v1504 = vpop.f32.mrf.mxu0
      %v1505 = vadd.f32 0.0, %v1504
      %v1506 = vpop.f32.mrf.mxu0
      %v1507 = vpop.f32.mrf.mxu0
      %v1508 = vadd.f32 0.0, %v1507
      %v1509 = vpop.f32.mrf.mxu0
      %1510 = vmatprep.mubr.bf16.mxu0 0
      %1511 = vmatmul.mubr.bf16.gmra.mxu0 %v1429
      %v1512 = vpop.f32.mrf.mxu0
      %v1513 = vadd.f32 0.0, %v1512
      %v1514 = vpop.f32.mrf.mxu0
      %v1515 = vpop.f32.mrf.mxu0
      %v1516 = vadd.f32 0.0, %v1515
      %v1517 = vpop.f32.mrf.mxu0
      %1518 = vmatprep.mubr.bf16.mxu0 0
      %1519 = vmatmul.mubr.bf16.gmra.mxu0 %v1432
      %v1520 = vpop.f32.mrf.mxu0
      %v1521 = vadd.f32 0.0, %v1520
      %v1522 = vpop.f32.mrf.mxu0
      %v1523 = vpop.f32.mrf.mxu0
      %v1524 = vadd.f32 0.0, %v1523
      %v1525 = vpop.f32.mrf.mxu0
      %1526 = vmatprep.mubr.bf16.mxu0 0
      %1527 = vmatmul.mubr.bf16.gmra.mxu0 %v1435
      %v1528 = vpop.f32.mrf.mxu0
      %v1529 = vadd.f32 0.0, %v1528
      %v1530 = vpop.f32.mrf.mxu0
      %v1531 = vpop.f32.mrf.mxu0
      %v1532 = vadd.f32 0.0, %v1531
      %v1533 = vpop.f32.mrf.mxu0
      %1534 = vmatprep.mubr.bf16.mxu0 0
      %1535 = vmatmul.mubr.bf16.gmra.mxu0 %v1438
      %v1536 = vpop.f32.mrf.mxu0
      %v1537 = vadd.f32 0.0, %v1536
      %v1538 = vpop.f32.mrf.mxu0
      %v1539 = vpop.f32.mrf.mxu0
      %v1540 = vadd.f32 0.0, %v1539
      %v1541 = vpop.f32.mrf.mxu0
      %1542 = vmatprep.mubr.bf16.mxu0 0
      %1543 = vmatmul.mubr.bf16.gmra.mxu0 %v1441
      %v1544 = vpop.f32.mrf.mxu0
      %v1545 = vadd.f32 0.0, %v1544
      %v1546 = vpop.f32.mrf.mxu0
      %v1547 = vpop.f32.mrf.mxu0
      %v1548 = vadd.f32 0.0, %v1547
      %v1549 = vpop.f32.mrf.mxu0
      %1550 = vmatprep.mubr.bf16.mxu0 0
      %1551 = vmatmul.mubr.bf16.gmra.mxu0 %v1444
      %v1552 = vpop.f32.mrf.mxu0
      %v1553 = vadd.f32 0.0, %v1552
      %v1554 = vpop.f32.mrf.mxu0
      %v1555 = vpop.f32.mrf.mxu0
      %v1556 = vadd.f32 0.0, %v1555
      %v1557 = vpop.f32.mrf.mxu0
      %1558 = vmatprep.mubr.bf16.mxu0 0
      %1559 = vmatmul.mubr.bf16.gmra.mxu0 %v1447
      %v1560 = vpop.f32.mrf.mxu0
      %v1561 = vadd.f32 0.0, %v1560
      %v1562 = vpop.f32.mrf.mxu0
      %v1563 = vpop.f32.mrf.mxu0
      %v1564 = vadd.f32 0.0, %v1563
      %v1565 = vpop.f32.mrf.mxu0
      %1566 = vmatprep.mubr.bf16.mxu0 0
      %1567 = vmatmul.mubr.bf16.gmra.mxu0 %v1450
      %v1568 = vpop.f32.mrf.mxu0
      %v1569 = vadd.f32 0.0, %v1568
      %v1570 = vpop.f32.mrf.mxu0
      %v1571 = vpop.f32.mrf.mxu0
      %v1572 = vadd.f32 0.0, %v1571
      %v1573 = vpop.f32.mrf.mxu0
      %1574 = vmatprep.mubr.bf16.mxu0 0
      %1575 = vmatmul.mubr.bf16.gmra.mxu0 %v1453
      %v1576 = vpop.f32.mrf.mxu0
      %v1577 = vadd.f32 0.0, %v1576
      %v1578 = vpop.f32.mrf.mxu0
      %v1579 = vpop.f32.mrf.mxu0
      %v1580 = vadd.f32 0.0, %v1579
      %v1581 = vpop.f32.mrf.mxu0
      %1582 = vmatprep.mubr.bf16.mxu0 0
      %1583 = vmatmul.mubr.bf16.gmra.mxu0 %v1456
      %v1584 = vpop.f32.mrf.mxu0
      %v1585 = vadd.f32 0.0, %v1584
      %v1586 = vpop.f32.mrf.mxu0
      %v1587 = vpop.f32.mrf.mxu0
      %v1588 = vadd.f32 0.0, %v1587
      %v1589 = vpop.f32.mrf.mxu0
      %1590 = vdwg.mxu0
      %v1591 = vld [vmem:[%s4] sm:$0xff]
      %v1592 = vld [vmem:[%s4 + $0x8] sm:$0xff]
      %v1593 = vld [vmem:[%s4 + $0x10] sm:$0xff]
      %v1594 = vld [vmem:[%s4 + $0x18] sm:$0xff]
      %v1595 = vld [vmem:[%s4 + $0x20] sm:$0xff]
      %v1596 = vld [vmem:[%s4 + $0x28] sm:$0xff]
      %v1597 = vld [vmem:[%s4 + $0x30] sm:$0xff]
      %v1598 = vld [vmem:[%s4 + $0x38] sm:$0xff]
      %v1599 = vld [vmem:[%s4 + $0x40] sm:$0xff]
      %v1600 = vld [vmem:[%s4 + $0x48] sm:$0xff]
      %v1601 = vld [vmem:[%s4 + $0x50] sm:$0xff]
      %v1602 = vld [vmem:[%s4 + $0x58] sm:$0xff]
      %v1603 = vld [vmem:[%s4 + $0x60] sm:$0xff]
      %v1604 = vld [vmem:[%s4 + $0x68] sm:$0xff]
      %v1605 = vld [vmem:[%s4 + $0x70] sm:$0xff]
      %v1606 = vld [vmem:[%s4 + $0x78] sm:$0xff]
      %v1607 = vld [vmem:[%s4 + $0x80] sm:$0xff]
      %v1608 = vld [vmem:[%s4 + $0x88] sm:$0xff]
      %v1609 = vld [vmem:[%s4 + $0x90] sm:$0xff]
      %v1610 = vld [vmem:[%s4 + $0x98] sm:$0xff]
      %v1611 = vld [vmem:[%s4 + $0xa0] sm:$0xff]
      %v1612 = vld [vmem:[%s4 + $0xa8] sm:$0xff]
      %v1613 = vld [vmem:[%s4 + $0xb0] sm:$0xff]
      %v1614 = vld [vmem:[%s4 + $0xb8] sm:$0xff]
      %1616 = vset.pattern.permute.xlu0 0
      %1617 = vperm.xlu0 %1616, %v1591
      %v1618 = vpop.permute.xlu0 %1617
      %1621 = vset.pattern.permute.xlu0 0
      %1622 = vperm.xlu0 %1621, %v1592
      %v1623 = vpop.permute.xlu0 %1622
      %1626 = vset.pattern.permute.xlu0 0
      %1627 = vperm.xlu0 %1626, %v1593
      %v1628 = vpop.permute.xlu0 %1627
      %1631 = vset.pattern.permute.xlu0 0
      %1632 = vperm.xlu0 %1631, %v1594
      %v1633 = vpop.permute.xlu0 %1632
      %1636 = vset.pattern.permute.xlu0 0
      %1637 = vperm.xlu0 %1636, %v1595
      %v1638 = vpop.permute.xlu0 %1637
      %1641 = vset.pattern.permute.xlu0 0
      %1642 = vperm.xlu0 %1641, %v1596
      %v1643 = vpop.permute.xlu0 %1642
      %1646 = vset.pattern.permute.xlu0 0
      %1647 = vperm.xlu0 %1646, %v1597
      %v1648 = vpop.permute.xlu0 %1647
      %1651 = vset.pattern.permute.xlu0 0
      %1652 = vperm.xlu0 %1651, %v1598
      %v1653 = vpop.permute.xlu0 %1652
      %1656 = vset.pattern.permute.xlu0 0
      %1657 = vperm.xlu0 %1656, %v1599
      %v1658 = vpop.permute.xlu0 %1657
      %1661 = vset.pattern.permute.xlu0 0
      %1662 = vperm.xlu0 %1661, %v1600
      %v1663 = vpop.permute.xlu0 %1662
      %1666 = vset.pattern.permute.xlu0 0
      %1667 = vperm.xlu0 %1666, %v1601
      %v1668 = vpop.permute.xlu0 %1667
      %1671 = vset.pattern.permute.xlu0 0
      %1672 = vperm.xlu0 %1671, %v1602
      %v1673 = vpop.permute.xlu0 %1672
      %1676 = vset.pattern.permute.xlu0 0
      %1677 = vperm.xlu0 %1676, %v1603
      %v1678 = vpop.permute.xlu0 %1677
      %1681 = vset.pattern.permute.xlu0 0
      %1682 = vperm.xlu0 %1681, %v1604
      %v1683 = vpop.permute.xlu0 %1682
      %1686 = vset.pattern.permute.xlu0 0
      %1687 = vperm.xlu0 %1686, %v1605
      %v1688 = vpop.permute.xlu0 %1687
      %1691 = vset.pattern.permute.xlu0 0
      %1692 = vperm.xlu0 %1691, %v1606
      %v1693 = vpop.permute.xlu0 %1692
      %1696 = vset.pattern.permute.xlu0 0
      %1697 = vperm.xlu0 %1696, %v1607
      %v1698 = vpop.permute.xlu0 %1697
      %1701 = vset.pattern.permute.xlu0 0
      %1702 = vperm.xlu0 %1701, %v1608
      %v1703 = vpop.permute.xlu0 %1702
      %1706 = vset.pattern.permute.xlu0 0
      %1707 = vperm.xlu0 %1706, %v1609
      %v1708 = vpop.permute.xlu0 %1707
      %1711 = vset.pattern.permute.xlu0 0
      %1712 = vperm.xlu0 %1711, %v1610
      %v1713 = vpop.permute.xlu0 %1712
      %1716 = vset.pattern.permute.xlu0 0
      %1717 = vperm.xlu0 %1716, %v1611
      %v1718 = vpop.permute.xlu0 %1717
      %1721 = vset.pattern.permute.xlu0 0
      %1722 = vperm.xlu0 %1721, %v1612
      %v1723 = vpop.permute.xlu0 %1722
      %1726 = vset.pattern.permute.xlu0 0
      %1727 = vperm.xlu0 %1726, %v1613
      %v1728 = vpop.permute.xlu0 %1727
      %1731 = vset.pattern.permute.xlu0 0
      %1732 = vperm.xlu0 %1731, %v1614
      %v1733 = vpop.permute.xlu0 %1732
      %v1735 = vmul.f32 %v1497, %v1618
      %v1736 = vmul.f32 %v1500, %v1623
      %v1737 = vmul.f32 %v1505, %v1628
      %v1738 = vmul.f32 %v1508, %v1633
      %v1739 = vmul.f32 %v1513, %v1638
      %v1740 = vmul.f32 %v1516, %v1643
      %v1741 = vmul.f32 %v1521, %v1648
      %v1742 = vmul.f32 %v1524, %v1653
      %v1743 = vmul.f32 %v1529, %v1658
      %v1744 = vmul.f32 %v1532, %v1663
      %v1745 = vmul.f32 %v1537, %v1668
      %v1746 = vmul.f32 %v1540, %v1673
      %v1747 = vmul.f32 %v1545, %v1678
      %v1748 = vmul.f32 %v1548, %v1683
      %v1749 = vmul.f32 %v1553, %v1688
      %v1750 = vmul.f32 %v1556, %v1693
      %v1751 = vmul.f32 %v1561, %v1698
      %v1752 = vmul.f32 %v1564, %v1703
      %v1753 = vmul.f32 %v1569, %v1708
      %v1754 = vmul.f32 %v1572, %v1713
      %v1755 = vmul.f32 %v1577, %v1718
      %v1756 = vmul.f32 %v1580, %v1723
      %v1757 = vmul.f32 %v1585, %v1728
      %v1758 = vmul.f32 %v1588, %v1733
      %1759 = vst [vmem:[%s258] sm:$0xff] %v1735
      %1760 = vst [vmem:[%s258 + $0x8] sm:$0xff] %v1736
      %1761 = vst [vmem:[%s258 + $0x10] sm:$0xff] %v1737
      %1762 = vst [vmem:[%s258 + $0x18] sm:$0xff] %v1738
      %1763 = vst [vmem:[%s258 + $0x20] sm:$0xff] %v1739
      %1764 = vst [vmem:[%s258 + $0x28] sm:$0xff] %v1740
      %1765 = vst [vmem:[%s258 + $0x30] sm:$0xff] %v1741
      %1766 = vst [vmem:[%s258 + $0x38] sm:$0xff] %v1742
      %1767 = vst [vmem:[%s258 + $0x40] sm:$0xff] %v1743
      %1768 = vst [vmem:[%s258 + $0x48] sm:$0xff] %v1744
      %1769 = vst [vmem:[%s258 + $0x50] sm:$0xff] %v1745
      %1770 = vst [vmem:[%s258 + $0x58] sm:$0xff] %v1746
      %1771 = vst [vmem:[%s258 + $0x60] sm:$0xff] %v1747
      %1772 = vst [vmem:[%s258 + $0x68] sm:$0xff] %v1748
      %1773 = vst [vmem:[%s258 + $0x70] sm:$0xff] %v1749
      %1774 = vst [vmem:[%s258 + $0x78] sm:$0xff] %v1750
      %1775 = vst [vmem:[%s258 + $0x80] sm:$0xff] %v1751
      %1776 = vst [vmem:[%s258 + $0x88] sm:$0xff] %v1752
      %1777 = vst [vmem:[%s258 + $0x90] sm:$0xff] %v1753
      %1778 = vst [vmem:[%s258 + $0x98] sm:$0xff] %v1754
      %1779 = vst [vmem:[%s258 + $0xa0] sm:$0xff] %v1755
      %1780 = vst [vmem:[%s258 + $0xa8] sm:$0xff] %v1756
      %1781 = vst [vmem:[%s258 + $0xb0] sm:$0xff] %v1757
      %1782 = vst [vmem:[%s258 + $0xb8] sm:$0xff] %v1758
      %1783 = vst [vmem:[%s258 + $0xc0] sm:$0xff] 0.0
      %1784 = vst [vmem:[%s258 + $0xc8] sm:$0xff] 0.0
      %v1785 = vadd.f32 %v1735, %v1736
      %v1786 = vadd.f32 %v1785, %v1737
      %v1787 = vadd.f32 %v1786, %v1738
      %v1788 = vadd.f32 %v1787, %v1739
      %v1789 = vadd.f32 %v1788, %v1740
      %v1790 = vadd.f32 %v1789, %v1741
      %v1791 = vadd.f32 %v1790, %v1742
      %v1792 = vadd.f32 %v1791, %v1743
      %v1793 = vadd.f32 %v1792, %v1744
      %v1794 = vadd.f32 %v1793, %v1745
      %v1795 = vadd.f32 %v1794, %v1746
      %v1796 = vadd.f32 %v1795, %v1747
      %v1797 = vadd.f32 %v1796, %v1748
      %v1798 = vadd.f32 %v1797, %v1749
      %v1799 = vadd.f32 %v1798, %v1750
      %v1800 = vadd.f32 %v1799, %v1751
      %v1801 = vadd.f32 %v1800, %v1752
      %v1802 = vadd.f32 %v1801, %v1753
      %v1803 = vadd.f32 %v1802, %v1754
      %v1804 = vadd.f32 %v1803, %v1755
      %v1805 = vadd.f32 %v1804, %v1756
      %v1806 = vadd.f32 %v1805, %v1757
      %v1807 = vadd.f32 %v1806, %v1758
      %v1808 = vrot.slane %v1807, 4
      %v1809 = vadd.f32 %v1807, %v1808
      %v1810 = vrot.slane %v1809, 2
      %v1811 = vadd.f32 %v1809, %v1810
      %v1812 = vrot.slane %v1811, 1
      %v1813 = vadd.f32 %v1811, %v1812
      %v1814 = vmul.f32 %v1735, %v1735
      %v1815 = vmul.f32 %v1736, %v1736
      %v1816 = vmul.f32 %v1737, %v1737
      %v1817 = vmul.f32 %v1738, %v1738
      %v1818 = vmul.f32 %v1739, %v1739
      %v1819 = vmul.f32 %v1740, %v1740
      %v1820 = vmul.f32 %v1741, %v1741
      %v1821 = vmul.f32 %v1742, %v1742
      %v1822 = vmul.f32 %v1743, %v1743
      %v1823 = vmul.f32 %v1744, %v1744
      %v1824 = vmul.f32 %v1745, %v1745
      %v1825 = vmul.f32 %v1746, %v1746
      %v1826 = vmul.f32 %v1747, %v1747
      %v1827 = vmul.f32 %v1748, %v1748
      %v1828 = vmul.f32 %v1749, %v1749
      %v1829 = vmul.f32 %v1750, %v1750
      %v1830 = vmul.f32 %v1751, %v1751
      %v1831 = vmul.f32 %v1752, %v1752
      %v1832 = vmul.f32 %v1753, %v1753
      %v1833 = vmul.f32 %v1754, %v1754
      %v1834 = vmul.f32 %v1755, %v1755
      %v1835 = vmul.f32 %v1756, %v1756
      %v1836 = vmul.f32 %v1757, %v1757
      %v1837 = vmul.f32 %v1758, %v1758
      %v1838 = vadd.f32 %v1814, %v1815
      %v1839 = vadd.f32 %v1838, %v1816
      %v1840 = vadd.f32 %v1839, %v1817
      %v1841 = vadd.f32 %v1840, %v1818
      %v1842 = vadd.f32 %v1841, %v1819
      %v1843 = vadd.f32 %v1842, %v1820
      %v1844 = vadd.f32 %v1843, %v1821
      %v1845 = vadd.f32 %v1844, %v1822
      %v1846 = vadd.f32 %v1845, %v1823
      %v1847 = vadd.f32 %v1846, %v1824
      %v1848 = vadd.f32 %v1847, %v1825
      %v1849 = vadd.f32 %v1848, %v1826
      %v1850 = vadd.f32 %v1849, %v1827
      %v1851 = vadd.f32 %v1850, %v1828
      %v1852 = vadd.f32 %v1851, %v1829
      %v1853 = vadd.f32 %v1852, %v1830
      %v1854 = vadd.f32 %v1853, %v1831
      %v1855 = vadd.f32 %v1854, %v1832
      %v1856 = vadd.f32 %v1855, %v1833
      %v1857 = vadd.f32 %v1856, %v1834
      %v1858 = vadd.f32 %v1857, %v1835
      %v1859 = vadd.f32 %v1858, %v1836
      %v1860 = vadd.f32 %v1859, %v1837
      %v1861 = vrot.slane %v1860, 4
      %v1862 = vadd.f32 %v1860, %v1861
      %v1863 = vrot.slane %v1862, 2
      %v1864 = vadd.f32 %v1862, %v1863
      %v1865 = vrot.slane %v1864, 1
      %v1866 = vadd.f32 %v1864, %v1865
      %vm1867 = vcmask 1040384
      %v1868 = vsel %vm1867, %v1813, %v1866
      %1869 = vst [vmem:[%s262] sm:$0x3] %v1868
      %p1870 = scmp.lt.s32.totalorder %s18, 1
      %s1871 = scalar_select %p1870, %s18, 1
      %s1872 = smul.addr %s1871, 26
      %s1873 = smul.addr %s1872, 8
      %s1874 = scalar_lea.vmem %s5, %s1873
      %p1875 = scmp.lt.s32.totalorder %s18, 1
      %s1876 = scalar_select %p1875, %s18, 1
      %s1877 = smul.addr %s1876, 2
      %s1878 = scalar_lea.vmem %s6, %s1877
      // Predicated region
      $region41: #{_lambda_.4} parent=39 // pred_check
        %p1879 = pneg %p146
      $region42: #{_lambda_.4} parent=39 // pred_check_branch
        %1881 = sbr.rel (%p1879) target = $region44
      $region43: #{_lambda_.4} parent=39 // pred_region
        _
      $region44: #{_lambda_.4} parent=39 // pred_fallthru
        _
      // Predicated region
      $region45: #{_lambda_.4} parent=39 // pred_check
        %p1882 = pneg %p172
      $region46: #{_lambda_.4} parent=39 // pred_check_branch
        %1884 = sbr.rel (%p1882) target = $region48
      $region47: #{_lambda_.4} parent=39 // pred_region
        _
      $region48: #{_lambda_.4} parent=39 // pred_fallthru
        _
    $region40: #{_lambda_.4} parent=5 // pred_fallthru
      _
    %p1885 = scmp.le.s32.totalorder 2, %s13
    // Predicated region
    $region49: #{_lambda_.4} parent=5 // pred_check
      %p1886 = pneg %p1885
    $region50: #{_lambda_.4} parent=5 // pred_check_branch
      %1888 = sbr.rel (%p1886) target = $region52
    $region51: #{_lambda_.4} parent=5 // pred_region
      %s1889 = ssub.s32 %s13, 2
      // Predicated region
      $region53: #{_lambda_.4} parent=51 // pred_check
        %p1890 = pneg %p152
      $region54: #{_lambda_.4} parent=51 // pred_check_branch
        %1892 = sbr.rel (%p1890) target = $region56
      $region55: #{_lambda_.4} parent=51 // pred_region
        %p1893 = scmp.lt.s32.totalorder %s19, 1
        %s1894 = scalar_select %p1893, %s19, 1
        %s1895 = smul.addr %s1894, 26
        %s1896 = smul.addr %s1895, 8
        %s1897 = scalar_lea.vmem %s5, %s1896
      $region56: #{_lambda_.4} parent=51 // pred_fallthru
        _
      // Predicated region
      $region57: #{_lambda_.4} parent=51 // pred_check
        %p1898 = pneg %p178
      $region58: #{_lambda_.4} parent=51 // pred_check_branch
        %1900 = sbr.rel (%p1898) target = $region60
      $region59: #{_lambda_.4} parent=51 // pred_region
        %p1901 = scmp.lt.s32.totalorder %s19, 1
        %s1902 = scalar_select %p1901, %s19, 1
        %s1903 = smul.addr %s1902, 2
        %s1904 = scalar_lea.vmem %s6, %s1903
      $region60: #{_lambda_.4} parent=51 // pred_fallthru
        _
    $region52: #{_lambda_.4} parent=5 // pred_fallthru
      _
  $region6: #{_lambda_.4} parent=0 // loop_footer
    %s17 = sadd.s32 1, %s13
  $region7: #{_lambda_.4} parent=0 // loop_footer_branch
    %12 = sbr.rel target = $region3
  $region8: #{_lambda_.4} parent=0 // loop_exit
    _

// kernel: _lambda_.3
$region0: #{_lambda_.3}
  #allocation0 [shape = 'u32[]', space=smem, size = 0x4, offset = 0x4, fixed_abs, tag = 'smem constant byte address 0x4 - core index']
  #allocation1 [shape = 'u32[144,128]{1,0:T(1,128)}', space=vmem, size = 0x12000, scoped, tag = 'internal scratch']
  %s0 = inlined_call_operand.vmem [shape: f32[2,272,4], index: 0, kind: input, shape index: {}]
  %s1 = inlined_call_operand.vmem [shape: bf16[36,128], index: 1, kind: input, shape index: {}]
  %s2 = inlined_call_operand.vmem [shape: f32[224,1], index: 2, kind: input, shape index: {}]
  %s3 = inlined_call_operand.vmem [shape: f32[2,240,128], index: 3, kind: output, shape index: {0}]
  %s4 = inlined_call_operand.vmem [shape: f32[2,2,128], index: 4, kind: output, shape index: {1}]
  %5 = xla_tuple %s3, %s4
  %s6 = sld [smem:[#allocation0]]
  $region53: #{_lambda_.3} parent=0
    _
  %s8 = ssub.s32 1, %s6
  %s9 = scalar_select 0, %s8, %s6
  loop: start=0, step=1, limit=4
  $region2: #{_lambda_.3} parent=0 // loop_pre_header
    _
  $region3: #{_lambda_.3} parent=0 // loop_header
    %s11 = sphi 0, %s15
    %p12 = scmp.ge.s32.totalorder %s11, 4
    %s21 = sphi 0, %s23
    %s24 = sphi 0, %s21
    %s25 = sphi 0, %s24
    %s41 = sphi 0, %s25
    %s45 = sphi 0, %s45
    %s47 = sphi 0, %s45
    %s48 = sphi 0, %s47
    %s62 = sphi 0, %s48
    %s66 = sphi 0, %s66
    %s68 = sphi 0, %s66
    %s69 = sphi 0, %s68
    %s83 = sphi 0, %s69
    %s89 = sphi 0, %s91
    %s92 = sphi 0, %s89
    %s93 = sphi 0, %s92
    %s109 = sphi 0, %s93
    %s115 = sphi 0, %s117
    %s118 = sphi 0, %s115
    %s119 = sphi 0, %s118
    %s135 = sphi 0, %s119
  $region4: #{_lambda_.3} parent=0 // loop_header_branch
    %14 = sbr.rel (%p12) target = $region8
  $region5: #{_lambda_.3} parent=0 // loop_body
    %s16 = ssub.s32 %s11, 1
    %s17 = ssub.s32 %s11, 2
    %s18 = sadd.s32 %s11, 1
    %s19 = ssub.s32 %s11, %s18
    %p20 = scmp.eq.s32.totalorder %s19, 0
    %s22 = sadd.s32 %s21, 1
    %s23 = scalar_select %p20, %s21, %s22
    %p26 = pneg %p20
    %p27 = scmp.eq.s32.totalorder %s11, 1
    %p28 = por %p26, %p27
    %p29 = scmp.ne.s32.totalorder %s21, %s24
    %p30 = scmp.eq.s32.totalorder %s11, 0
    %p31 = por %p29, %p30
    %p32 = scmp.ne.s32.totalorder %s21, %s24
    %p33 = scmp.eq.s32.totalorder %s16, 1
    %p34 = por %p32, %p33
    %p35 = scmp.ne.s32.totalorder %s24, %s25
    %p36 = scmp.eq.s32.totalorder %s16, 0
    %p37 = por %p35, %p36
    %p38 = scmp.ne.s32.totalorder %s24, %s25
    %p39 = scmp.eq.s32.totalorder %s17, 1
    %p40 = por %p38, %p39
    %p42 = scmp.ne.s32.totalorder %s25, %s41
    %p43 = scmp.eq.s32.totalorder %s17, 0
    %p44 = por %p42, %p43
    %s46 = sadd.s32 %s45, 1
    %p49 = scmp.eq.s32.totalorder %s11, 1
    %p50 = scmp.ne.s32.totalorder %s45, %s47
    %p51 = scmp.eq.s32.totalorder %s11, 0
    %p52 = por %p50, %p51
    %p53 = scmp.ne.s32.totalorder %s45, %s47
    %p54 = scmp.eq.s32.totalorder %s16, 1
    %p55 = por %p53, %p54
    %p56 = scmp.ne.s32.totalorder %s47, %s48
    %p57 = scmp.eq.s32.totalorder %s16, 0
    %p58 = por %p56, %p57
    %p59 = scmp.ne.s32.totalorder %s47, %s48
    %p60 = scmp.eq.s32.totalorder %s17, 1
    %p61 = por %p59, %p60
    %p63 = scmp.ne.s32.totalorder %s48, %s62
    %p64 = scmp.eq.s32.totalorder %s17, 0
    %p65 = por %p63, %p64
    %s67 = sadd.s32 %s66, 1
    %p70 = scmp.eq.s32.totalorder %s11, 1
    %p71 = scmp.ne.s32.totalorder %s66, %s68
    %p72 = scmp.eq.s32.totalorder %s11, 0
    %p73 = por %p71, %p72
    %p74 = scmp.ne.s32.totalorder %s66, %s68
    %p75 = scmp.eq.s32.totalorder %s16, 1
    %p76 = por %p74, %p75
    %p77 = scmp.ne.s32.totalorder %s68, %s69
    %p78 = scmp.eq.s32.totalorder %s16, 0
    %p79 = por %p77, %p78
    %p80 = scmp.ne.s32.totalorder %s68, %s69
    %p81 = scmp.eq.s32.totalorder %s17, 1
    %p82 = por %p80, %p81
    %p84 = scmp.ne.s32.totalorder %s69, %s83
    %p85 = scmp.eq.s32.totalorder %s17, 0
    %p86 = por %p84, %p85
    %s87 = ssub.s32 %s11, %s18
    %p88 = scmp.eq.s32.totalorder %s87, 0
    %s90 = sadd.s32 %s89, 1
    %s91 = scalar_select %p88, %s89, %s90
    %p94 = pneg %p88
    %p95 = scmp.eq.s32.totalorder %s11, 1
    %p96 = por %p94, %p95
    %p97 = scmp.ne.s32.totalorder %s89, %s92
    %p98 = scmp.eq.s32.totalorder %s11, 0
    %p99 = por %p97, %p98
    %p100 = scmp.ne.s32.totalorder %s89, %s92
    %p101 = scmp.eq.s32.totalorder %s16, 1
    %p102 = por %p100, %p101
    %p103 = scmp.ne.s32.totalorder %s92, %s93
    %p104 = scmp.eq.s32.totalorder %s16, 0
    %p105 = por %p103, %p104
    %p106 = scmp.ne.s32.totalorder %s92, %s93
    %p107 = scmp.eq.s32.totalorder %s17, 1
    %p108 = por %p106, %p107
    %p110 = scmp.ne.s32.totalorder %s93, %s109
    %p111 = scmp.eq.s32.totalorder %s17, 0
    %p112 = por %p110, %p111
    %s113 = ssub.s32 %s11, %s18
    %p114 = scmp.eq.s32.totalorder %s113, 0
    %s116 = sadd.s32 %s115, 1
    %s117 = scalar_select %p114, %s115, %s116
    %p120 = pneg %p114
    %p121 = scmp.eq.s32.totalorder %s11, 1
    %p122 = por %p120, %p121
    %p123 = scmp.ne.s32.totalorder %s115, %s118
    %p124 = scmp.eq.s32.totalorder %s11, 0
    %p125 = por %p123, %p124
    %p126 = scmp.ne.s32.totalorder %s115, %s118
    %p127 = scmp.eq.s32.totalorder %s16, 1
    %p128 = por %p126, %p127
    %p129 = scmp.ne.s32.totalorder %s118, %s119
    %p130 = scmp.eq.s32.totalorder %s16, 0
    %p131 = por %p129, %p130
    %p132 = scmp.ne.s32.totalorder %s118, %s119
    %p133 = scmp.eq.s32.totalorder %s17, 1
    %p134 = por %p132, %p133
    %p136 = scmp.ne.s32.totalorder %s119, %s135
    %p137 = scmp.eq.s32.totalorder %s17, 0
    %p138 = por %p136, %p137
    %p139 = scmp.le.s32.totalorder 1, %s11
    %p140 = scmp.lt.s32.totalorder %s11, 3
    %p141 = pnand %p139, %p140
    %p142 = pneg %p141
    // Predicated region
    $region9: #{_lambda_.3} parent=5 // pred_check
      _
    $region10: #{_lambda_.3} parent=5 // pred_check_branch
      %144 = sbr.rel (%p141) target = $region12
    $region11: #{_lambda_.3} parent=5 // pred_region
      %s145 = ssub.s32 %s11, 1
      // Predicated region
      $region13: #{_lambda_.3} parent=11 // pred_check
        %p146 = pneg %p58
      $region14: #{_lambda_.3} parent=11 // pred_check_branch
        %148 = sbr.rel (%p146) target = $region16
      $region15: #{_lambda_.3} parent=11 // pred_region
        _
      $region16: #{_lambda_.3} parent=11 // pred_fallthru
        _
      // Predicated region
      $region17: #{_lambda_.3} parent=11 // pred_check
        %p149 = pneg %p79
      $region18: #{_lambda_.3} parent=11 // pred_check_branch
        %151 = sbr.rel (%p149) target = $region20
      $region19: #{_lambda_.3} parent=11 // pred_region
        _
      $region20: #{_lambda_.3} parent=11 // pred_fallthru
        _
    $region12: #{_lambda_.3} parent=5 // pred_fallthru
      _
    %p152 = scmp.lt.s32.totalorder %s11, 2
    // Predicated region
    $region21: #{_lambda_.3} parent=5 // pred_check
      %p153 = pneg %p152
    $region22: #{_lambda_.3} parent=5 // pred_check_branch
      %155 = sbr.rel (%p153) target = $region24
    $region23: #{_lambda_.3} parent=5 // pred_region
      // Predicated region
      $region25: #{_lambda_.3} parent=23 // pred_check
        %p156 = pneg %p31
      $region26: #{_lambda_.3} parent=23 // pred_check_branch
        %158 = sbr.rel (%p156) target = $region28
      $region27: #{_lambda_.3} parent=23 // pred_region
        %p159 = scmp.lt.s32.totalorder %s11, 1
        %s160 = scalar_select %p159, %s11, 1
        %s161 = smul.addr %s160, 34
        %s162 = smul.addr %s161, 8
        %s163 = scalar_lea.vmem %s0, %s162
      $region28: #{_lambda_.3} parent=23 // pred_fallthru
        _
    $region24: #{_lambda_.3} parent=5 // pred_fallthru
      _
    %p164 = scmp.le.s32.totalorder 1, %s11
    %p165 = scmp.lt.s32.totalorder %s11, 3
    %p166 = pnand %p164, %p165
    %p167 = pneg %p166
    // Predicated region
    $region29: #{_lambda_.3} parent=5 // pred_check
      _
    $region30: #{_lambda_.3} parent=5 // pred_check_branch
      %169 = sbr.rel (%p166) target = $region32
    $region31: #{_lambda_.3} parent=5 // pred_region
      %s170 = ssub.s32 %s11, 1
      %p171 = scmp.lt.s32.totalorder %s16, 1
      %s172 = scalar_select %p171, %s16, 1
      %s173 = smul.addr %s172, 34
      %s174 = smul.addr %s173, 8
      %s175 = scalar_lea.vmem %s0, %s174
      %p176 = pneg %p37
      %p177 = pneg %p34
      %p178 = pneg %p58
      %p179 = pneg %p55
      %p180 = pneg %p79
      %p181 = pneg %p76
      %p182 = pneg %p105
      %p183 = pneg %p102
      %p184 = scmp.lt.s32.totalorder %s16, 1
      %s185 = scalar_select %p184, %s16, 1
      %s186 = smul.addr %s185, 30
      %s187 = smul.addr %s186, 8
      %s188 = scalar_lea.vmem %s3, %s187
      %p189 = pneg %p131
      %p190 = pneg %p128
      %p191 = scmp.lt.s32.totalorder %s16, 1
      %s192 = scalar_select %p191, %s16, 1
      %s193 = smul.addr %s192, 2
      %s194 = scalar_lea.vmem %s4, %s193
      %p195 = scmp.lt.s32.totalorder %s16, 1
      %s196 = scalar_select %p195, %s16, 1
      %s197 = smul.addr %s196, 34
      %s198 = smul.addr %s197, 8
      %s199 = scalar_lea.vmem %s0, %s198
      %p200 = scmp.lt.s32.totalorder %s16, 1
      %s201 = scalar_select %p200, %s16, 1
      %s202 = smul.addr %s201, 30
      %s203 = smul.addr %s202, 8
      %s204 = scalar_lea.vmem %s3, %s203
      %p205 = scmp.lt.s32.totalorder %s16, 1
      %s206 = scalar_select %p205, %s16, 1
      %s207 = smul.addr %s206, 2
      %s208 = scalar_lea.vmem %s4, %s207
      %v210 = vld [vmem:[%s199] sm:$0xff]
      %v211 = vld [vmem:[%s199 + $0x8] sm:$0xff]
      %v212 = vld [vmem:[%s199 + $0x10] sm:$0xff]
      %v213 = vld [vmem:[%s199 + $0x18] sm:$0xff]
      %v214 = vld [vmem:[%s199 + $0x20] sm:$0xff]
      %v215 = vld [vmem:[%s199 + $0x28] sm:$0xff]
      %v216 = vld [vmem:[%s199 + $0x30] sm:$0xff]
      %v217 = vld [vmem:[%s199 + $0x38] sm:$0xff]
      %v218 = vld [vmem:[%s199 + $0x40] sm:$0xff]
      %v219 = vld [vmem:[%s199 + $0x48] sm:$0xff]
      %v220 = vld [vmem:[%s199 + $0x50] sm:$0xff]
      %v221 = vld [vmem:[%s199 + $0x58] sm:$0xff]
      %v222 = vld [vmem:[%s199 + $0x60] sm:$0xff]
      %v223 = vld [vmem:[%s199 + $0x68] sm:$0xff]
      %v224 = vld [vmem:[%s199 + $0x70] sm:$0xff]
      %v225 = vld [vmem:[%s199 + $0x78] sm:$0xff]
      %v226 = vld [vmem:[%s199 + $0x80] sm:$0xff]
      %v227 = vld [vmem:[%s199 + $0x88] sm:$0xff]
      %v228 = vld [vmem:[%s199 + $0x90] sm:$0xff]
      %v229 = vld [vmem:[%s199 + $0x98] sm:$0xff]
      %v230 = vld [vmem:[%s199 + $0xa0] sm:$0xff]
      %v231 = vld [vmem:[%s199 + $0xa8] sm:$0xff]
      %v232 = vld [vmem:[%s199 + $0xb0] sm:$0xff]
      %v233 = vld [vmem:[%s199 + $0xb8] sm:$0xff]
      %v234 = vld [vmem:[%s199 + $0xc0] sm:$0xff]
      %v235 = vld [vmem:[%s199 + $0xc8] sm:$0xff]
      %v236 = vld [vmem:[%s199 + $0xd0] sm:$0xff]
      %v237 = vld [vmem:[%s199 + $0xd8] sm:$0xff]
      %v238 = vld [vmem:[%s199 + $0xe0] sm:$0xff]
      %v239 = vld [vmem:[%s199 + $0xe8] sm:$0xff]
      %v240 = vld [vmem:[%s199 + $0xf0] sm:$0xff]
      %v241 = vld [vmem:[%s199 + $0xf8] sm:$0xff]
      %v242 = vld [vmem:[%s199 + $0x100] sm:$0xff]
      %vm272 = vcmask 1046528
      %v273 = vrot.slane %v210, 1
      %v274 = vrot.slane %v211, 1
      %v275 = vsel %vm272, %v273, %v274
      %v276 = vrot.slane %v212, 1
      %v277 = vsel %vm272, %v274, %v276
      %v278 = vrot.slane %v213, 1
      %v279 = vsel %vm272, %v276, %v278
      %v280 = vrot.slane %v214, 1
      %v281 = vsel %vm272, %v278, %v280
      %v282 = vrot.slane %v215, 1
      %v283 = vsel %vm272, %v280, %v282
      %v284 = vrot.slane %v216, 1
      %v285 = vsel %vm272, %v282, %v284
      %v286 = vrot.slane %v217, 1
      %v287 = vsel %vm272, %v284, %v286
      %v288 = vrot.slane %v218, 1
      %v289 = vsel %vm272, %v286, %v288
      %v290 = vrot.slane %v219, 1
      %v291 = vsel %vm272, %v288, %v290
      %v292 = vrot.slane %v220, 1
      %v293 = vsel %vm272, %v290, %v292
      %v294 = vrot.slane %v221, 1
      %v295 = vsel %vm272, %v292, %v294
      %v296 = vrot.slane %v222, 1
      %v297 = vsel %vm272, %v294, %v296
      %v298 = vrot.slane %v223, 1
      %v299 = vsel %vm272, %v296, %v298
      %v300 = vrot.slane %v224, 1
      %v301 = vsel %vm272, %v298, %v300
      %v302 = vrot.slane %v225, 1
      %v303 = vsel %vm272, %v300, %v302
      %v304 = vrot.slane %v226, 1
      %v305 = vsel %vm272, %v302, %v304
      %v306 = vrot.slane %v227, 1
      %v307 = vsel %vm272, %v304, %v306
      %v308 = vrot.slane %v228, 1
      %v309 = vsel %vm272, %v306, %v308
      %v310 = vrot.slane %v229, 1
      %v311 = vsel %vm272, %v308, %v310
      %v312 = vrot.slane %v230, 1
      %v313 = vsel %vm272, %v310, %v312
      %v314 = vrot.slane %v231, 1
      %v315 = vsel %vm272, %v312, %v314
      %v316 = vrot.slane %v232, 1
      %v317 = vsel %vm272, %v314, %v316
      %v318 = vrot.slane %v233, 1
      %v319 = vsel %vm272, %v316, %v318
      %v320 = vrot.slane %v234, 1
      %v321 = vsel %vm272, %v318, %v320
      %v322 = vrot.slane %v235, 1
      %v323 = vsel %vm272, %v320, %v322
      %v324 = vrot.slane %v236, 1
      %v325 = vsel %vm272, %v322, %v324
      %v326 = vrot.slane %v237, 1
      %v327 = vsel %vm272, %v324, %v326
      %v328 = vrot.slane %v238, 1
      %v329 = vsel %vm272, %v326, %v328
      %330 = vrot.lane.b32.xlu0 %v275, 4
      %v331 = vpop.permute.xlu0 %330
      %332 = vrot.lane.b32.xlu0 %v277, 4
      %v333 = vpop.permute.xlu0 %332
      %334 = vrot.lane.b32.xlu0 %v279, 4
      %v335 = vpop.permute.xlu0 %334
      %336 = vrot.lane.b32.xlu0 %v281, 4
      %v337 = vpop.permute.xlu0 %336
      %338 = vrot.lane.b32.xlu0 %v283, 4
      %v339 = vpop.permute.xlu0 %338
      %340 = vrot.lane.b32.xlu0 %v285, 4
      %v341 = vpop.permute.xlu0 %340
      %342 = vrot.lane.b32.xlu0 %v287, 4
      %v343 = vpop.permute.xlu0 %342
      %344 = vrot.lane.b32.xlu0 %v289, 4
      %v345 = vpop.permute.xlu0 %344
      %346 = vrot.lane.b32.xlu0 %v291, 4
      %v347 = vpop.permute.xlu0 %346
      %348 = vrot.lane.b32.xlu0 %v293, 4
      %v349 = vpop.permute.xlu0 %348
      %350 = vrot.lane.b32.xlu0 %v295, 4
      %v351 = vpop.permute.xlu0 %350
      %352 = vrot.lane.b32.xlu0 %v297, 4
      %v353 = vpop.permute.xlu0 %352
      %354 = vrot.lane.b32.xlu0 %v299, 4
      %v355 = vpop.permute.xlu0 %354
      %356 = vrot.lane.b32.xlu0 %v301, 4
      %v357 = vpop.permute.xlu0 %356
      %358 = vrot.lane.b32.xlu0 %v303, 4
      %v359 = vpop.permute.xlu0 %358
      %360 = vrot.lane.b32.xlu0 %v305, 4
      %v361 = vpop.permute.xlu0 %360
      %362 = vrot.lane.b32.xlu0 %v307, 4
      %v363 = vpop.permute.xlu0 %362
      %364 = vrot.lane.b32.xlu0 %v309, 4
      %v365 = vpop.permute.xlu0 %364
      %366 = vrot.lane.b32.xlu0 %v311, 4
      %v367 = vpop.permute.xlu0 %366
      %368 = vrot.lane.b32.xlu0 %v313, 4
      %v369 = vpop.permute.xlu0 %368
      %370 = vrot.lane.b32.xlu0 %v315, 4
      %v371 = vpop.permute.xlu0 %370
      %372 = vrot.lane.b32.xlu0 %v317, 4
      %v373 = vpop.permute.xlu0 %372
      %374 = vrot.lane.b32.xlu0 %v319, 4
      %v375 = vpop.permute.xlu0 %374
      %376 = vrot.lane.b32.xlu0 %v321, 4
      %v377 = vpop.permute.xlu0 %376
      %378 = vrot.lane.b32.xlu0 %v323, 4
      %v379 = vpop.permute.xlu0 %378
      %380 = vrot.lane.b32.xlu0 %v325, 4
      %v381 = vpop.permute.xlu0 %380
      %382 = vrot.lane.b32.xlu0 %v327, 4
      %v383 = vpop.permute.xlu0 %382
      %384 = vrot.lane.b32.xlu0 %v329, 4
      %v385 = vpop.permute.xlu0 %384
      %vm414 = vcmask 1045504
      %v415 = vrot.slane %v210, 2
      %v416 = vrot.slane %v211, 2
      %v417 = vsel %vm414, %v415, %v416
      %v418 = vrot.slane %v212, 2
      %v419 = vsel %vm414, %v416, %v418
      %v420 = vrot.slane %v213, 2
      %v421 = vsel %vm414, %v418, %v420
      %v422 = vrot.slane %v214, 2
      %v423 = vsel %vm414, %v420, %v422
      %v424 = vrot.slane %v215, 2
      %v425 = vsel %vm414, %v422, %v424
      %v426 = vrot.slane %v216, 2
      %v427 = vsel %vm414, %v424, %v426
      %v428 = vrot.slane %v217, 2
      %v429 = vsel %vm414, %v426, %v428
      %v430 = vrot.slane %v218, 2
      %v431 = vsel %vm414, %v428, %v430
      %v432 = vrot.slane %v219, 2
      %v433 = vsel %vm414, %v430, %v432
      %v434 = vrot.slane %v220, 2
      %v435 = vsel %vm414, %v432, %v434
      %v436 = vrot.slane %v221, 2
      %v437 = vsel %vm414, %v434, %v436
      %v438 = vrot.slane %v222, 2
      %v439 = vsel %vm414, %v436, %v438
      %v440 = vrot.slane %v223, 2
      %v441 = vsel %vm414, %v438, %v440
      %v442 = vrot.slane %v224, 2
      %v443 = vsel %vm414, %v440, %v442
      %v444 = vrot.slane %v225, 2
      %v445 = vsel %vm414, %v442, %v444
      %v446 = vrot.slane %v226, 2
      %v447 = vsel %vm414, %v444, %v446
      %v448 = vrot.slane %v227, 2
      %v449 = vsel %vm414, %v446, %v448
      %v450 = vrot.slane %v228, 2
      %v451 = vsel %vm414, %v448, %v450
      %v452 = vrot.slane %v229, 2
      %v453 = vsel %vm414, %v450, %v452
      %v454 = vrot.slane %v230, 2
      %v455 = vsel %vm414, %v452, %v454
      %v456 = vrot.slane %v231, 2
      %v457 = vsel %vm414, %v454, %v456
      %v458 = vrot.slane %v232, 2
      %v459 = vsel %vm414, %v456, %v458
      %v460 = vrot.slane %v233, 2
      %v461 = vsel %vm414, %v458, %v460
      %v462 = vrot.slane %v234, 2
      %v463 = vsel %vm414, %v460, %v462
      %v464 = vrot.slane %v235, 2
      %v465 = vsel %vm414, %v462, %v464
      %v466 = vrot.slane %v236, 2
      %v467 = vsel %vm414, %v464, %v466
      %v468 = vrot.slane %v237, 2
      %v469 = vsel %vm414, %v466, %v468
      %v470 = vrot.slane %v238, 2
      %v471 = vsel %vm414, %v468, %v470
      %472 = vrot.lane.b32.xlu0 %v417, 8
      %v473 = vpop.permute.xlu0 %472
      %474 = vrot.lane.b32.xlu0 %v419, 8
      %v475 = vpop.permute.xlu0 %474
      %476 = vrot.lane.b32.xlu0 %v421, 8
      %v477 = vpop.permute.xlu0 %476
      %478 = vrot.lane.b32.xlu0 %v423, 8
      %v479 = vpop.permute.xlu0 %478
      %480 = vrot.lane.b32.xlu0 %v425, 8
      %v481 = vpop.permute.xlu0 %480
      %482 = vrot.lane.b32.xlu0 %v427, 8
      %v483 = vpop.permute.xlu0 %482
      %484 = vrot.lane.b32.xlu0 %v429, 8
      %v485 = vpop.permute.xlu0 %484
      %486 = vrot.lane.b32.xlu0 %v431, 8
      %v487 = vpop.permute.xlu0 %486
      %488 = vrot.lane.b32.xlu0 %v433, 8
      %v489 = vpop.permute.xlu0 %488
      %490 = vrot.lane.b32.xlu0 %v435, 8
      %v491 = vpop.permute.xlu0 %490
      %492 = vrot.lane.b32.xlu0 %v437, 8
      %v493 = vpop.permute.xlu0 %492
      %494 = vrot.lane.b32.xlu0 %v439, 8
      %v495 = vpop.permute.xlu0 %494
      %496 = vrot.lane.b32.xlu0 %v441, 8
      %v497 = vpop.permute.xlu0 %496
      %498 = vrot.lane.b32.xlu0 %v443, 8
      %v499 = vpop.permute.xlu0 %498
      %500 = vrot.lane.b32.xlu0 %v445, 8
      %v501 = vpop.permute.xlu0 %500
      %502 = vrot.lane.b32.xlu0 %v447, 8
      %v503 = vpop.permute.xlu0 %502
      %504 = vrot.lane.b32.xlu0 %v449, 8
      %v505 = vpop.permute.xlu0 %504
      %506 = vrot.lane.b32.xlu0 %v451, 8
      %v507 = vpop.permute.xlu0 %506
      %508 = vrot.lane.b32.xlu0 %v453, 8
      %v509 = vpop.permute.xlu0 %508
      %510 = vrot.lane.b32.xlu0 %v455, 8
      %v511 = vpop.permute.xlu0 %510
      %512 = vrot.lane.b32.xlu0 %v457, 8
      %v513 = vpop.permute.xlu0 %512
      %514 = vrot.lane.b32.xlu0 %v459, 8
      %v515 = vpop.permute.xlu0 %514
      %516 = vrot.lane.b32.xlu0 %v461, 8
      %v517 = vpop.permute.xlu0 %516
      %518 = vrot.lane.b32.xlu0 %v463, 8
      %v519 = vpop.permute.xlu0 %518
      %520 = vrot.lane.b32.xlu0 %v465, 8
      %v521 = vpop.permute.xlu0 %520
      %522 = vrot.lane.b32.xlu0 %v467, 8
      %v523 = vpop.permute.xlu0 %522
      %524 = vrot.lane.b32.xlu0 %v469, 8
      %v525 = vpop.permute.xlu0 %524
      %526 = vrot.lane.b32.xlu0 %v471, 8
      %v527 = vpop.permute.xlu0 %526
      %557 = vrot.lane.b32.xlu0 %v212, 12
      %v558 = vpop.permute.xlu0 %557
      %559 = vrot.lane.b32.xlu0 %v213, 12
      %v560 = vpop.permute.xlu0 %559
      %561 = vrot.lane.b32.xlu0 %v214, 12
      %v562 = vpop.permute.xlu0 %561
      %563 = vrot.lane.b32.xlu0 %v215, 12
      %v564 = vpop.permute.xlu0 %563
      %565 = vrot.lane.b32.xlu0 %v216, 12
      %v566 = vpop.permute.xlu0 %565
      %567 = vrot.lane.b32.xlu0 %v217, 12
      %v568 = vpop.permute.xlu0 %567
      %569 = vrot.lane.b32.xlu0 %v218, 12
      %v570 = vpop.permute.xlu0 %569
      %571 = vrot.lane.b32.xlu0 %v219, 12
      %v572 = vpop.permute.xlu0 %571
      %573 = vrot.lane.b32.xlu0 %v220, 12
      %v574 = vpop.permute.xlu0 %573
      %575 = vrot.lane.b32.xlu0 %v221, 12
      %v576 = vpop.permute.xlu0 %575
      %577 = vrot.lane.b32.xlu0 %v222, 12
      %v578 = vpop.permute.xlu0 %577
      %579 = vrot.lane.b32.xlu0 %v223, 12
      %v580 = vpop.permute.xlu0 %579
      %581 = vrot.lane.b32.xlu0 %v224, 12
      %v582 = vpop.permute.xlu0 %581
      %583 = vrot.lane.b32.xlu0 %v225, 12
      %v584 = vpop.permute.xlu0 %583
      %585 = vrot.lane.b32.xlu0 %v226, 12
      %v586 = vpop.permute.xlu0 %585
      %587 = vrot.lane.b32.xlu0 %v227, 12
      %v588 = vpop.permute.xlu0 %587
      %589 = vrot.lane.b32.xlu0 %v228, 12
      %v590 = vpop.permute.xlu0 %589
      %591 = vrot.lane.b32.xlu0 %v229, 12
      %v592 = vpop.permute.xlu0 %591
      %593 = vrot.lane.b32.xlu0 %v230, 12
      %v594 = vpop.permute.xlu0 %593
      %595 = vrot.lane.b32.xlu0 %v231, 12
      %v596 = vpop.permute.xlu0 %595
      %597 = vrot.lane.b32.xlu0 %v232, 12
      %v598 = vpop.permute.xlu0 %597
      %599 = vrot.lane.b32.xlu0 %v233, 12
      %v600 = vpop.permute.xlu0 %599
      %601 = vrot.lane.b32.xlu0 %v234, 12
      %v602 = vpop.permute.xlu0 %601
      %603 = vrot.lane.b32.xlu0 %v235, 12
      %v604 = vpop.permute.xlu0 %603
      %605 = vrot.lane.b32.xlu0 %v236, 12
      %v606 = vpop.permute.xlu0 %605
      %607 = vrot.lane.b32.xlu0 %v237, 12
      %v608 = vpop.permute.xlu0 %607
      %609 = vrot.lane.b32.xlu0 %v238, 12
      %v610 = vpop.permute.xlu0 %609
      %611 = vrot.lane.b32.xlu0 %v239, 12
      %v612 = vpop.permute.xlu0 %611
      %v642 = vrot.slane %v239, 1
      %v643 = vsel %vm272, %v328, %v642
      %v644 = vrot.slane %v240, 1
      %v645 = vsel %vm272, %v642, %v644
      %646 = vrot.lane.b32.xlu0 %v279, 16
      %v647 = vpop.permute.xlu0 %646
      %648 = vrot.lane.b32.xlu0 %v281, 16
      %v649 = vpop.permute.xlu0 %648
      %650 = vrot.lane.b32.xlu0 %v283, 16
      %v651 = vpop.permute.xlu0 %650
      %652 = vrot.lane.b32.xlu0 %v285, 16
      %v653 = vpop.permute.xlu0 %652
      %654 = vrot.lane.b32.xlu0 %v287, 16
      %v655 = vpop.permute.xlu0 %654
      %656 = vrot.lane.b32.xlu0 %v289, 16
      %v657 = vpop.permute.xlu0 %656
      %658 = vrot.lane.b32.xlu0 %v291, 16
      %v659 = vpop.permute.xlu0 %658
      %660 = vrot.lane.b32.xlu0 %v293, 16
      %v661 = vpop.permute.xlu0 %660
      %662 = vrot.lane.b32.xlu0 %v295, 16
      %v663 = vpop.permute.xlu0 %662
      %664 = vrot.lane.b32.xlu0 %v297, 16
      %v665 = vpop.permute.xlu0 %664
      %666 = vrot.lane.b32.xlu0 %v299, 16
      %v667 = vpop.permute.xlu0 %666
      %668 = vrot.lane.b32.xlu0 %v301, 16
      %v669 = vpop.permute.xlu0 %668
      %670 = vrot.lane.b32.xlu0 %v303, 16
      %v671 = vpop.permute.xlu0 %670
      %672 = vrot.lane.b32.xlu0 %v305, 16
      %v673 = vpop.permute.xlu0 %672
      %674 = vrot.lane.b32.xlu0 %v307, 16
      %v675 = vpop.permute.xlu0 %674
      %676 = vrot.lane.b32.xlu0 %v309, 16
      %v677 = vpop.permute.xlu0 %676
      %678 = vrot.lane.b32.xlu0 %v311, 16
      %v679 = vpop.permute.xlu0 %678
      %680 = vrot.lane.b32.xlu0 %v313, 16
      %v681 = vpop.permute.xlu0 %680
      %682 = vrot.lane.b32.xlu0 %v315, 16
      %v683 = vpop.permute.xlu0 %682
      %684 = vrot.lane.b32.xlu0 %v317, 16
      %v685 = vpop.permute.xlu0 %684
      %686 = vrot.lane.b32.xlu0 %v319, 16
      %v687 = vpop.permute.xlu0 %686
      %688 = vrot.lane.b32.xlu0 %v321, 16
      %v689 = vpop.permute.xlu0 %688
      %690 = vrot.lane.b32.xlu0 %v323, 16
      %v691 = vpop.permute.xlu0 %690
      %692 = vrot.lane.b32.xlu0 %v325, 16
      %v693 = vpop.permute.xlu0 %692
      %694 = vrot.lane.b32.xlu0 %v327, 16
      %v695 = vpop.permute.xlu0 %694
      %696 = vrot.lane.b32.xlu0 %v329, 16
      %v697 = vpop.permute.xlu0 %696
      %698 = vrot.lane.b32.xlu0 %v643, 16
      %v699 = vpop.permute.xlu0 %698
      %700 = vrot.lane.b32.xlu0 %v645, 16
      %v701 = vpop.permute.xlu0 %700
      %v730 = vrot.slane %v239, 2
      %v731 = vsel %vm414, %v470, %v730
      %v732 = vrot.slane %v240, 2
      %v733 = vsel %vm414, %v730, %v732
      %734 = vrot.lane.b32.xlu0 %v421, 20
      %v735 = vpop.permute.xlu0 %734
      %736 = vrot.lane.b32.xlu0 %v423, 20
      %v737 = vpop.permute.xlu0 %736
      %738 = vrot.lane.b32.xlu0 %v425, 20
      %v739 = vpop.permute.xlu0 %738
      %740 = vrot.lane.b32.xlu0 %v427, 20
      %v741 = vpop.permute.xlu0 %740
      %742 = vrot.lane.b32.xlu0 %v429, 20
      %v743 = vpop.permute.xlu0 %742
      %744 = vrot.lane.b32.xlu0 %v431, 20
      %v745 = vpop.permute.xlu0 %744
      %746 = vrot.lane.b32.xlu0 %v433, 20
      %v747 = vpop.permute.xlu0 %746
      %748 = vrot.lane.b32.xlu0 %v435, 20
      %v749 = vpop.permute.xlu0 %748
      %750 = vrot.lane.b32.xlu0 %v437, 20
      %v751 = vpop.permute.xlu0 %750
      %752 = vrot.lane.b32.xlu0 %v439, 20
      %v753 = vpop.permute.xlu0 %752
      %754 = vrot.lane.b32.xlu0 %v441, 20
      %v755 = vpop.permute.xlu0 %754
      %756 = vrot.lane.b32.xlu0 %v443, 20
      %v757 = vpop.permute.xlu0 %756
      %758 = vrot.lane.b32.xlu0 %v445, 20
      %v759 = vpop.permute.xlu0 %758
      %760 = vrot.lane.b32.xlu0 %v447, 20
      %v761 = vpop.permute.xlu0 %760
      %762 = vrot.lane.b32.xlu0 %v449, 20
      %v763 = vpop.permute.xlu0 %762
      %764 = vrot.lane.b32.xlu0 %v451, 20
      %v765 = vpop.permute.xlu0 %764
      %766 = vrot.lane.b32.xlu0 %v453, 20
      %v767 = vpop.permute.xlu0 %766
      %768 = vrot.lane.b32.xlu0 %v455, 20
      %v769 = vpop.permute.xlu0 %768
      %770 = vrot.lane.b32.xlu0 %v457, 20
      %v771 = vpop.permute.xlu0 %770
      %772 = vrot.lane.b32.xlu0 %v459, 20
      %v773 = vpop.permute.xlu0 %772
      %774 = vrot.lane.b32.xlu0 %v461, 20
      %v775 = vpop.permute.xlu0 %774
      %776 = vrot.lane.b32.xlu0 %v463, 20
      %v777 = vpop.permute.xlu0 %776
      %778 = vrot.lane.b32.xlu0 %v465, 20
      %v779 = vpop.permute.xlu0 %778
      %780 = vrot.lane.b32.xlu0 %v467, 20
      %v781 = vpop.permute.xlu0 %780
      %782 = vrot.lane.b32.xlu0 %v469, 20
      %v783 = vpop.permute.xlu0 %782
      %784 = vrot.lane.b32.xlu0 %v471, 20
      %v785 = vpop.permute.xlu0 %784
      %786 = vrot.lane.b32.xlu0 %v731, 20
      %v787 = vpop.permute.xlu0 %786
      %788 = vrot.lane.b32.xlu0 %v733, 20
      %v789 = vpop.permute.xlu0 %788
      %819 = vrot.lane.b32.xlu0 %v214, 24
      %v820 = vpop.permute.xlu0 %819
      %821 = vrot.lane.b32.xlu0 %v215, 24
      %v822 = vpop.permute.xlu0 %821
      %823 = vrot.lane.b32.xlu0 %v216, 24
      %v824 = vpop.permute.xlu0 %823
      %825 = vrot.lane.b32.xlu0 %v217, 24
      %v826 = vpop.permute.xlu0 %825
      %827 = vrot.lane.b32.xlu0 %v218, 24
      %v828 = vpop.permute.xlu0 %827
      %829 = vrot.lane.b32.xlu0 %v219, 24
      %v830 = vpop.permute.xlu0 %829
      %831 = vrot.lane.b32.xlu0 %v220, 24
      %v832 = vpop.permute.xlu0 %831
      %833 = vrot.lane.b32.xlu0 %v221, 24
      %v834 = vpop.permute.xlu0 %833
      %835 = vrot.lane.b32.xlu0 %v222, 24
      %v836 = vpop.permute.xlu0 %835
      %837 = vrot.lane.b32.xlu0 %v223, 24
      %v838 = vpop.permute.xlu0 %837
      %839 = vrot.lane.b32.xlu0 %v224, 24
      %v840 = vpop.permute.xlu0 %839
      %841 = vrot.lane.b32.xlu0 %v225, 24
      %v842 = vpop.permute.xlu0 %841
      %843 = vrot.lane.b32.xlu0 %v226, 24
      %v844 = vpop.permute.xlu0 %843
      %845 = vrot.lane.b32.xlu0 %v227, 24
      %v846 = vpop.permute.xlu0 %845
      %847 = vrot.lane.b32.xlu0 %v228, 24
      %v848 = vpop.permute.xlu0 %847
      %849 = vrot.lane.b32.xlu0 %v229, 24
      %v850 = vpop.permute.xlu0 %849
      %851 = vrot.lane.b32.xlu0 %v230, 24
      %v852 = vpop.permute.xlu0 %851
      %853 = vrot.lane.b32.xlu0 %v231, 24
      %v854 = vpop.permute.xlu0 %853
      %855 = vrot.lane.b32.xlu0 %v232, 24
      %v856 = vpop.permute.xlu0 %855
      %857 = vrot.lane.b32.xlu0 %v233, 24
      %v858 = vpop.permute.xlu0 %857
      %859 = vrot.lane.b32.xlu0 %v234, 24
      %v860 = vpop.permute.xlu0 %859
      %861 = vrot.lane.b32.xlu0 %v235, 24
      %v862 = vpop.permute.xlu0 %861
      %863 = vrot.lane.b32.xlu0 %v236, 24
      %v864 = vpop.permute.xlu0 %863
      %865 = vrot.lane.b32.xlu0 %v237, 24
      %v866 = vpop.permute.xlu0 %865
      %867 = vrot.lane.b32.xlu0 %v238, 24
      %v868 = vpop.permute.xlu0 %867
      %869 = vrot.lane.b32.xlu0 %v239, 24
      %v870 = vpop.permute.xlu0 %869
      %871 = vrot.lane.b32.xlu0 %v240, 24
      %v872 = vpop.permute.xlu0 %871
      %873 = vrot.lane.b32.xlu0 %v241, 24
      %v874 = vpop.permute.xlu0 %873
      %v904 = vrot.slane %v241, 1
      %v905 = vsel %vm272, %v644, %v904
      %v906 = vrot.slane %v242, 1
      %v907 = vsel %vm272, %v904, %v906
      %908 = vrot.lane.b32.xlu0 %v283, 28
      %v909 = vpop.permute.xlu0 %908
      %910 = vrot.lane.b32.xlu0 %v285, 28
      %v911 = vpop.permute.xlu0 %910
      %912 = vrot.lane.b32.xlu0 %v287, 28
      %v913 = vpop.permute.xlu0 %912
      %914 = vrot.lane.b32.xlu0 %v289, 28
      %v915 = vpop.permute.xlu0 %914
      %916 = vrot.lane.b32.xlu0 %v291, 28
      %v917 = vpop.permute.xlu0 %916
      %918 = vrot.lane.b32.xlu0 %v293, 28
      %v919 = vpop.permute.xlu0 %918
      %920 = vrot.lane.b32.xlu0 %v295, 28
      %v921 = vpop.permute.xlu0 %920
      %922 = vrot.lane.b32.xlu0 %v297, 28
      %v923 = vpop.permute.xlu0 %922
      %924 = vrot.lane.b32.xlu0 %v299, 28
      %v925 = vpop.permute.xlu0 %924
      %926 = vrot.lane.b32.xlu0 %v301, 28
      %v927 = vpop.permute.xlu0 %926
      %928 = vrot.lane.b32.xlu0 %v303, 28
      %v929 = vpop.permute.xlu0 %928
      %930 = vrot.lane.b32.xlu0 %v305, 28
      %v931 = vpop.permute.xlu0 %930
      %932 = vrot.lane.b32.xlu0 %v307, 28
      %v933 = vpop.permute.xlu0 %932
      %934 = vrot.lane.b32.xlu0 %v309, 28
      %v935 = vpop.permute.xlu0 %934
      %936 = vrot.lane.b32.xlu0 %v311, 28
      %v937 = vpop.permute.xlu0 %936
      %938 = vrot.lane.b32.xlu0 %v313, 28
      %v939 = vpop.permute.xlu0 %938
      %940 = vrot.lane.b32.xlu0 %v315, 28
      %v941 = vpop.permute.xlu0 %940
      %942 = vrot.lane.b32.xlu0 %v317, 28
      %v943 = vpop.permute.xlu0 %942
      %944 = vrot.lane.b32.xlu0 %v319, 28
      %v945 = vpop.permute.xlu0 %944
      %946 = vrot.lane.b32.xlu0 %v321, 28
      %v947 = vpop.permute.xlu0 %946
      %948 = vrot.lane.b32.xlu0 %v323, 28
      %v949 = vpop.permute.xlu0 %948
      %950 = vrot.lane.b32.xlu0 %v325, 28
      %v951 = vpop.permute.xlu0 %950
      %952 = vrot.lane.b32.xlu0 %v327, 28
      %v953 = vpop.permute.xlu0 %952
      %954 = vrot.lane.b32.xlu0 %v329, 28
      %v955 = vpop.permute.xlu0 %954
      %956 = vrot.lane.b32.xlu0 %v643, 28
      %v957 = vpop.permute.xlu0 %956
      %958 = vrot.lane.b32.xlu0 %v645, 28
      %v959 = vpop.permute.xlu0 %958
      %960 = vrot.lane.b32.xlu0 %v905, 28
      %v961 = vpop.permute.xlu0 %960
      %962 = vrot.lane.b32.xlu0 %v907, 28
      %v963 = vpop.permute.xlu0 %962
      %v992 = vrot.slane %v241, 2
      %v993 = vsel %vm414, %v732, %v992
      %v994 = vrot.slane %v242, 2
      %v995 = vsel %vm414, %v992, %v994
      %996 = vrot.lane.b32.xlu0 %v425, 32
      %v997 = vpop.permute.xlu0 %996
      %998 = vrot.lane.b32.xlu0 %v427, 32
      %v999 = vpop.permute.xlu0 %998
      %1000 = vrot.lane.b32.xlu0 %v429, 32
      %v1001 = vpop.permute.xlu0 %1000
      %1002 = vrot.lane.b32.xlu0 %v431, 32
      %v1003 = vpop.permute.xlu0 %1002
      %1004 = vrot.lane.b32.xlu0 %v433, 32
      %v1005 = vpop.permute.xlu0 %1004
      %1006 = vrot.lane.b32.xlu0 %v435, 32
      %v1007 = vpop.permute.xlu0 %1006
      %1008 = vrot.lane.b32.xlu0 %v437, 32
      %v1009 = vpop.permute.xlu0 %1008
      %1010 = vrot.lane.b32.xlu0 %v439, 32
      %v1011 = vpop.permute.xlu0 %1010
      %1012 = vrot.lane.b32.xlu0 %v441, 32
      %v1013 = vpop.permute.xlu0 %1012
      %1014 = vrot.lane.b32.xlu0 %v443, 32
      %v1015 = vpop.permute.xlu0 %1014
      %1016 = vrot.lane.b32.xlu0 %v445, 32
      %v1017 = vpop.permute.xlu0 %1016
      %1018 = vrot.lane.b32.xlu0 %v447, 32
      %v1019 = vpop.permute.xlu0 %1018
      %1020 = vrot.lane.b32.xlu0 %v449, 32
      %v1021 = vpop.permute.xlu0 %1020
      %1022 = vrot.lane.b32.xlu0 %v451, 32
      %v1023 = vpop.permute.xlu0 %1022
      %1024 = vrot.lane.b32.xlu0 %v453, 32
      %v1025 = vpop.permute.xlu0 %1024
      %1026 = vrot.lane.b32.xlu0 %v455, 32
      %v1027 = vpop.permute.xlu0 %1026
      %1028 = vrot.lane.b32.xlu0 %v457, 32
      %v1029 = vpop.permute.xlu0 %1028
      %1030 = vrot.lane.b32.xlu0 %v459, 32
      %v1031 = vpop.permute.xlu0 %1030
      %1032 = vrot.lane.b32.xlu0 %v461, 32
      %v1033 = vpop.permute.xlu0 %1032
      %1034 = vrot.lane.b32.xlu0 %v463, 32
      %v1035 = vpop.permute.xlu0 %1034
      %1036 = vrot.lane.b32.xlu0 %v465, 32
      %v1037 = vpop.permute.xlu0 %1036
      %1038 = vrot.lane.b32.xlu0 %v467, 32
      %v1039 = vpop.permute.xlu0 %1038
      %1040 = vrot.lane.b32.xlu0 %v469, 32
      %v1041 = vpop.permute.xlu0 %1040
      %1042 = vrot.lane.b32.xlu0 %v471, 32
      %v1043 = vpop.permute.xlu0 %1042
      %1044 = vrot.lane.b32.xlu0 %v731, 32
      %v1045 = vpop.permute.xlu0 %1044
      %1046 = vrot.lane.b32.xlu0 %v733, 32
      %v1047 = vpop.permute.xlu0 %1046
      %1048 = vrot.lane.b32.xlu0 %v993, 32
      %v1049 = vpop.permute.xlu0 %1048
      %1050 = vrot.lane.b32.xlu0 %v995, 32
      %v1051 = vpop.permute.xlu0 %1050
      %vm1080 = vcmask 31744
      %v1081 = vsel %vm1080, %v210, %v331
      %v1082 = vsel %vm1080, %v211, %v333
      %v1083 = vsel %vm1080, %v212, %v335
      %v1084 = vsel %vm1080, %v213, %v337
      %v1085 = vsel %vm1080, %v214, %v339
      %v1086 = vsel %vm1080, %v215, %v341
      %v1087 = vsel %vm1080, %v216, %v343
      %v1088 = vsel %vm1080, %v217, %v345
      %v1089 = vsel %vm1080, %v218, %v347
      %v1090 = vsel %vm1080, %v219, %v349
      %v1091 = vsel %vm1080, %v220, %v351
      %v1092 = vsel %vm1080, %v221, %v353
      %v1093 = vsel %vm1080, %v222, %v355
      %v1094 = vsel %vm1080, %v223, %v357
      %v1095 = vsel %vm1080, %v224, %v359
      %v1096 = vsel %vm1080, %v225, %v361
      %v1097 = vsel %vm1080, %v226, %v363
      %v1098 = vsel %vm1080, %v227, %v365
      %v1099 = vsel %vm1080, %v228, %v367
      %v1100 = vsel %vm1080, %v229, %v369
      %v1101 = vsel %vm1080, %v230, %v371
      %v1102 = vsel %vm1080, %v231, %v373
      %v1103 = vsel %vm1080, %v232, %v375
      %v1104 = vsel %vm1080, %v233, %v377
      %v1105 = vsel %vm1080, %v234, %v379
      %v1106 = vsel %vm1080, %v235, %v381
      %v1107 = vsel %vm1080, %v236, %v383
      %v1108 = vsel %vm1080, %v237, %v385
      %vm1109 = vcmask 64512
      %v1110 = vsel %vm1109, %v1081, %v473
      %v1111 = vsel %vm1109, %v1082, %v475
      %v1112 = vsel %vm1109, %v1083, %v477
      %v1113 = vsel %vm1109, %v1084, %v479
      %v1114 = vsel %vm1109, %v1085, %v481
      %v1115 = vsel %vm1109, %v1086, %v483
      %v1116 = vsel %vm1109, %v1087, %v485
      %v1117 = vsel %vm1109, %v1088, %v487
      %v1118 = vsel %vm1109, %v1089, %v489
      %v1119 = vsel %vm1109, %v1090, %v491
      %v1120 = vsel %vm1109, %v1091, %v493
      %v1121 = vsel %vm1109, %v1092, %v495
      %v1122 = vsel %vm1109, %v1093, %v497
      %v1123 = vsel %vm1109, %v1094, %v499
      %v1124 = vsel %vm1109, %v1095, %v501
      %v1125 = vsel %vm1109, %v1096, %v503
      %v1126 = vsel %vm1109, %v1097, %v505
      %v1127 = vsel %vm1109, %v1098, %v507
      %v1128 = vsel %vm1109, %v1099, %v509
      %v1129 = vsel %vm1109, %v1100, %v511
      %v1130 = vsel %vm1109, %v1101, %v513
      %v1131 = vsel %vm1109, %v1102, %v515
      %v1132 = vsel %vm1109, %v1103, %v517
      %v1133 = vsel %vm1109, %v1104, %v519
      %v1134 = vsel %vm1109, %v1105, %v521
      %v1135 = vsel %vm1109, %v1106, %v523
      %v1136 = vsel %vm1109, %v1107, %v525
      %v1137 = vsel %vm1109, %v1108, %v527
      %vm1138 = vcmask 97280
      %v1139 = vsel %vm1138, %v1110, %v558
      %v1140 = vsel %vm1138, %v1111, %v560
      %v1141 = vsel %vm1138, %v1112, %v562
      %v1142 = vsel %vm1138, %v1113, %v564
      %v1143 = vsel %vm1138, %v1114, %v566
      %v1144 = vsel %vm1138, %v1115, %v568
      %v1145 = vsel %vm1138, %v1116, %v570
      %v1146 = vsel %vm1138, %v1117, %v572
      %v1147 = vsel %vm1138, %v1118, %v574
      %v1148 = vsel %vm1138, %v1119, %v576
      %v1149 = vsel %vm1138, %v1120, %v578
      %v1150 = vsel %vm1138, %v1121, %v580
      %v1151 = vsel %vm1138, %v1122, %v582
      %v1152 = vsel %vm1138, %v1123, %v584
      %v1153 = vsel %vm1138, %v1124, %v586
      %v1154 = vsel %vm1138, %v1125, %v588
      %v1155 = vsel %vm1138, %v1126, %v590
      %v1156 = vsel %vm1138, %v1127, %v592
      %v1157 = vsel %vm1138, %v1128, %v594
      %v1158 = vsel %vm1138, %v1129, %v596
      %v1159 = vsel %vm1138, %v1130, %v598
      %v1160 = vsel %vm1138, %v1131, %v600
      %v1161 = vsel %vm1138, %v1132, %v602
      %v1162 = vsel %vm1138, %v1133, %v604
      %v1163 = vsel %vm1138, %v1134, %v606
      %v1164 = vsel %vm1138, %v1135, %v608
      %v1165 = vsel %vm1138, %v1136, %v610
      %v1166 = vsel %vm1138, %v1137, %v612
      %vm1167 = vcmask 130048
      %v1168 = vsel %vm1167, %v1139, %v647
      %v1169 = vsel %vm1167, %v1140, %v649
      %v1170 = vsel %vm1167, %v1141, %v651
      %v1171 = vsel %vm1167, %v1142, %v653
      %v1172 = vsel %vm1167, %v1143, %v655
      %v1173 = vsel %vm1167, %v1144, %v657
      %v1174 = vsel %vm1167, %v1145, %v659
      %v1175 = vsel %vm1167, %v1146, %v661
      %v1176 = vsel %vm1167, %v1147, %v663
      %v1177 = vsel %vm1167, %v1148, %v665
      %v1178 = vsel %vm1167, %v1149, %v667
      %v1179 = vsel %vm1167, %v1150, %v669
      %v1180 = vsel %vm1167, %v1151, %v671
      %v1181 = vsel %vm1167, %v1152, %v673
      %v1182 = vsel %vm1167, %v1153, %v675
      %v1183 = vsel %vm1167, %v1154, %v677
      %v1184 = vsel %vm1167, %v1155, %v679
      %v1185 = vsel %vm1167, %v1156, %v681
      %v1186 = vsel %vm1167, %v1157, %v683
      %v1187 = vsel %vm1167, %v1158, %v685
      %v1188 = vsel %vm1167, %v1159, %v687
      %v1189 = vsel %vm1167, %v1160, %v689
      %v1190 = vsel %vm1167, %v1161, %v691
      %v1191 = vsel %vm1167, %v1162, %v693
      %v1192 = vsel %vm1167, %v1163, %v695
      %v1193 = vsel %vm1167, %v1164, %v697
      %v1194 = vsel %vm1167, %v1165, %v699
      %v1195 = vsel %vm1167, %v1166, %v701
      %vm1196 = vcmask 162816
      %v1197 = vsel %vm1196, %v1168, %v735
      %v1198 = vsel %vm1196, %v1169, %v737
      %v1199 = vsel %vm1196, %v1170, %v739
      %v1200 = vsel %vm1196, %v1171, %v741
      %v1201 = vsel %vm1196, %v1172, %v743
      %v1202 = vsel %vm1196, %v1173, %v745
      %v1203 = vsel %vm1196, %v1174, %v747
      %v1204 = vsel %vm1196, %v1175, %v749
      %v1205 = vsel %vm1196, %v1176, %v751
      %v1206 = vsel %vm1196, %v1177, %v753
      %v1207 = vsel %vm1196, %v1178, %v755
      %v1208 = vsel %vm1196, %v1179, %v757
      %v1209 = vsel %vm1196, %v1180, %v759
      %v1210 = vsel %vm1196, %v1181, %v761
      %v1211 = vsel %vm1196, %v1182, %v763
      %v1212 = vsel %vm1196, %v1183, %v765
      %v1213 = vsel %vm1196, %v1184, %v767
      %v1214 = vsel %vm1196, %v1185, %v769
      %v1215 = vsel %vm1196, %v1186, %v771
      %v1216 = vsel %vm1196, %v1187, %v773
      %v1217 = vsel %vm1196, %v1188, %v775
      %v1218 = vsel %vm1196, %v1189, %v777
      %v1219 = vsel %vm1196, %v1190, %v779
      %v1220 = vsel %vm1196, %v1191, %v781
      %v1221 = vsel %vm1196, %v1192, %v783
      %v1222 = vsel %vm1196, %v1193, %v785
      %v1223 = vsel %vm1196, %v1194, %v787
      %v1224 = vsel %vm1196, %v1195, %v789
      %vm1225 = vcmask 195584
      %v1226 = vsel %vm1225, %v1197, %v820
      %v1227 = vsel %vm1225, %v1198, %v822
      %v1228 = vsel %vm1225, %v1199, %v824
      %v1229 = vsel %vm1225, %v1200, %v826
      %v1230 = vsel %vm1225, %v1201, %v828
      %v1231 = vsel %vm1225, %v1202, %v830
      %v1232 = vsel %vm1225, %v1203, %v832
      %v1233 = vsel %vm1225, %v1204, %v834
      %v1234 = vsel %vm1225, %v1205, %v836
      %v1235 = vsel %vm1225, %v1206, %v838
      %v1236 = vsel %vm1225, %v1207, %v840
      %v1237 = vsel %vm1225, %v1208, %v842
      %v1238 = vsel %vm1225, %v1209, %v844
      %v1239 = vsel %vm1225, %v1210, %v846
      %v1240 = vsel %vm1225, %v1211, %v848
      %v1241 = vsel %vm1225, %v1212, %v850
      %v1242 = vsel %vm1225, %v1213, %v852
      %v1243 = vsel %vm1225, %v1214, %v854
      %v1244 = vsel %vm1225, %v1215, %v856
      %v1245 = vsel %vm1225, %v1216, %v858
      %v1246 = vsel %vm1225, %v1217, %v860
      %v1247 = vsel %vm1225, %v1218, %v862
      %v1248 = vsel %vm1225, %v1219, %v864
      %v1249 = vsel %vm1225, %v1220, %v866
      %v1250 = vsel %vm1225, %v1221, %v868
      %v1251 = vsel %vm1225, %v1222, %v870
      %v1252 = vsel %vm1225, %v1223, %v872
      %v1253 = vsel %vm1225, %v1224, %v874
      %vm1254 = vcmask 228352
      %v1255 = vsel %vm1254, %v1226, %v909
      %v1256 = vsel %vm1254, %v1227, %v911
      %v1257 = vsel %vm1254, %v1228, %v913
      %v1258 = vsel %vm1254, %v1229, %v915
      %v1259 = vsel %vm1254, %v1230, %v917
      %v1260 = vsel %vm1254, %v1231, %v919
      %v1261 = vsel %vm1254, %v1232, %v921
      %v1262 = vsel %vm1254, %v1233, %v923
      %v1263 = vsel %vm1254, %v1234, %v925
      %v1264 = vsel %vm1254, %v1235, %v927
      %v1265 = vsel %vm1254, %v1236, %v929
      %v1266 = vsel %vm1254, %v1237, %v931
      %v1267 = vsel %vm1254, %v1238, %v933
      %v1268 = vsel %vm1254, %v1239, %v935
      %v1269 = vsel %vm1254, %v1240, %v937
      %v1270 = vsel %vm1254, %v1241, %v939
      %v1271 = vsel %vm1254, %v1242, %v941
      %v1272 = vsel %vm1254, %v1243, %v943
      %v1273 = vsel %vm1254, %v1244, %v945
      %v1274 = vsel %vm1254, %v1245, %v947
      %v1275 = vsel %vm1254, %v1246, %v949
      %v1276 = vsel %vm1254, %v1247, %v951
      %v1277 = vsel %vm1254, %v1248, %v953
      %v1278 = vsel %vm1254, %v1249, %v955
      %v1279 = vsel %vm1254, %v1250, %v957
      %v1280 = vsel %vm1254, %v1251, %v959
      %v1281 = vsel %vm1254, %v1252, %v961
      %v1282 = vsel %vm1254, %v1253, %v963
      %vm1283 = vcmask 261120
      %v1284 = vsel %vm1283, %v1255, %v997
      %v1285 = vsel %vm1283, %v1256, %v999
      %v1286 = vsel %vm1283, %v1257, %v1001
      %v1287 = vsel %vm1283, %v1258, %v1003
      %v1288 = vsel %vm1283, %v1259, %v1005
      %v1289 = vsel %vm1283, %v1260, %v1007
      %v1290 = vsel %vm1283, %v1261, %v1009
      %v1291 = vsel %vm1283, %v1262, %v1011
      %v1292 = vsel %vm1283, %v1263, %v1013
      %v1293 = vsel %vm1283, %v1264, %v1015
      %v1294 = vsel %vm1283, %v1265, %v1017
      %v1295 = vsel %vm1283, %v1266, %v1019
      %v1296 = vsel %vm1283, %v1267, %v1021
      %v1297 = vsel %vm1283, %v1268, %v1023
      %v1298 = vsel %vm1283, %v1269, %v1025
      %v1299 = vsel %vm1283, %v1270, %v1027
      %v1300 = vsel %vm1283, %v1271, %v1029
      %v1301 = vsel %vm1283, %v1272, %v1031
      %v1302 = vsel %vm1283, %v1273, %v1033
      %v1303 = vsel %vm1283, %v1274, %v1035
      %v1304 = vsel %vm1283, %v1275, %v1037
      %v1305 = vsel %vm1283, %v1276, %v1039
      %v1306 = vsel %vm1283, %v1277, %v1041
      %v1307 = vsel %vm1283, %v1278, %v1043
      %v1308 = vsel %vm1283, %v1279, %v1045
      %v1309 = vsel %vm1283, %v1280, %v1047
      %v1310 = vsel %vm1283, %v1281, %v1049
      %v1311 = vsel %vm1283, %v1282, %v1051
      %v1312 = vpack.c.bf16 %v1285, %v1284
      %v1313 = vpack.c.bf16 %v1287, %v1286
      %v1314 = vpack.c.bf16 %v1289, %v1288
      %v1315 = vpack.c.bf16 %v1291, %v1290
      %v1316 = vpack.c.bf16 %v1293, %v1292
      %v1317 = vpack.c.bf16 %v1295, %v1294
      %v1318 = vpack.c.bf16 %v1297, %v1296
      %v1319 = vpack.c.bf16 %v1299, %v1298
      %v1320 = vpack.c.bf16 %v1301, %v1300
      %v1321 = vpack.c.bf16 %v1303, %v1302
      %v1322 = vpack.c.bf16 %v1305, %v1304
      %v1323 = vpack.c.bf16 %v1307, %v1306
      %v1324 = vpack.c.bf16 %v1309, %v1308
      %v1325 = vpack.c.bf16 %v1311, %v1310
      %v1326 = vld [vmem:[%s1] sm:$0xf]
      %v1327 = vld [vmem:[%s1 + $0x4] sm:$0xf]
      %v1328 = vld [vmem:[%s1 + $0x8] sm:$0xf]
      %v1329 = vld [vmem:[%s1 + $0xc] sm:$0xf]
      %v1330 = vld [vmem:[%s1 + $0x10] sm:$0x3]
      %v1336 = vunpack.c.l.b16 %v1326
      %v1337 = vunpack.c.l.b16 %v1327
      %v1338 = vunpack.c.l.b16 %v1328
      %v1339 = vunpack.c.l.b16 %v1329
      %v1340 = vunpack.c.l.b16 %v1330
      %v1341 = vpack.c.b16 %v1337, %v1336
      %v1342 = vpack.c.b16 %v1339, %v1338
      %v1343 = vpack.c.b16 %v1340, %v1340
      %vm1346 = vcmask 293888
      %v1348 = vsel %vm1346, %v1312, 0
      %v1351 = vsel %vm1346, %v1313, 0
      %v1354 = vsel %vm1346, %v1314, 0
      %v1357 = vsel %vm1346, %v1315, 0
      %v1360 = vsel %vm1346, %v1316, 0
      %v1363 = vsel %vm1346, %v1317, 0
      %v1366 = vsel %vm1346, %v1318, 0
      %v1369 = vsel %vm1346, %v1319, 0
      %v1372 = vsel %vm1346, %v1320, 0
      %v1375 = vsel %vm1346, %v1321, 0
      %v1378 = vsel %vm1346, %v1322, 0
      %v1381 = vsel %vm1346, %v1323, 0
      %v1384 = vsel %vm1346, %v1324, 0
      %v1387 = vsel %vm1346, %v1325, 0
      %vm1389 = vcmask 1041408
      %v1391 = vsel %vm1389, %v1343, 0
      %1393 = vmatprep.subr.bf16.mxu0 0
      %1394 = vmatpush1.bf16.msra.mxu0 0
      %1395 = vmatprep.subr.bf16.mxu0 0
      %1396 = vmatpush1.bf16.msra.mxu0 0
      %1397 = vmatprep.subr.bf16.mxu0 0
      %1398 = vmatpush1.bf16.msra.mxu0 0
      %1399 = vmatprep.subr.bf16.mxu0 0
      %1400 = vmatpush1.bf16.msra.mxu0 0
      %1401 = vmatprep.subr.bf16.mxu0 0
      %1402 = vmatpush1.bf16.msra.mxu0 0
      %1403 = vmatprep.subr.bf16.mxu0 0
      %1404 = vmatpush1.bf16.msra.mxu0 %v1391
      %1405 = vmatprep.subr.bf16.mxu0 0
      %1406 = vmatpush1.bf16.msra.mxu0 %v1342
      %1407 = vmatprep.subr.bf16.mxu0 0
      %1408 = vmatpush1.bf16.msra.mxu0 %v1341
      %1409 = vmatprep.subr.bf16.mxu0 0
      %1410 = vmatpush2.bf16.msra.mxu0 0
      %1411 = vmatprep.subr.bf16.mxu0 0
      %1412 = vmatpush2.bf16.msra.mxu0 0
      %1413 = vmatprep.subr.bf16.mxu0 0
      %1414 = vmatpush2.bf16.msra.mxu0 0
      %1415 = vmatprep.subr.bf16.mxu0 0
      %1416 = vmatpush2.bf16.msra.mxu0 0
      %1417 = vmatprep.subr.bf16.mxu0 0
      %1418 = vmatpush2.bf16.msra.mxu0 0
      %1419 = vmatprep.subr.bf16.mxu0 0
      %1420 = vmatpush2.bf16.msra.mxu0 0
      %1421 = vmatprep.subr.bf16.mxu0 0
      %1422 = vmatpush2.bf16.msra.mxu0 0
      %1423 = vmatprep.subr.bf16.mxu0 0
      %1424 = vmatpush2.bf16.msra.mxu0 0
      %1425 = vmatprep.mubr.bf16.mxu0 0
      %1426 = vmatmul.mubr.bf16.gmra.mxu0 %v1348
      %v1427 = vpop.f32.mrf.mxu0
      %v1428 = vadd.f32 0.0, %v1427
      %v1429 = vpop.f32.mrf.mxu0
      %v1430 = vpop.f32.mrf.mxu0
      %v1431 = vadd.f32 0.0, %v1430
      %v1432 = vpop.f32.mrf.mxu0
      %1433 = vmatprep.mubr.bf16.mxu0 0
      %1434 = vmatmul.mubr.bf16.gmra.mxu0 %v1351
      %v1435 = vpop.f32.mrf.mxu0
      %v1436 = vadd.f32 0.0, %v1435
      %v1437 = vpop.f32.mrf.mxu0
      %v1438 = vpop.f32.mrf.mxu0
      %v1439 = vadd.f32 0.0, %v1438
      %v1440 = vpop.f32.mrf.mxu0
      %1441 = vmatprep.mubr.bf16.mxu0 0
      %1442 = vmatmul.mubr.bf16.gmra.mxu0 %v1354
      %v1443 = vpop.f32.mrf.mxu0
      %v1444 = vadd.f32 0.0, %v1443
      %v1445 = vpop.f32.mrf.mxu0
      %v1446 = vpop.f32.mrf.mxu0
      %v1447 = vadd.f32 0.0, %v1446
      %v1448 = vpop.f32.mrf.mxu0
      %1449 = vmatprep.mubr.bf16.mxu0 0
      %1450 = vmatmul.mubr.bf16.gmra.mxu0 %v1357
      %v1451 = vpop.f32.mrf.mxu0
      %v1452 = vadd.f32 0.0, %v1451
      %v1453 = vpop.f32.mrf.mxu0
      %v1454 = vpop.f32.mrf.mxu0
      %v1455 = vadd.f32 0.0, %v1454
      %v1456 = vpop.f32.mrf.mxu0
      %1457 = vmatprep.mubr.bf16.mxu0 0
      %1458 = vmatmul.mubr.bf16.gmra.mxu0 %v1360
      %v1459 = vpop.f32.mrf.mxu0
      %v1460 = vadd.f32 0.0, %v1459
      %v1461 = vpop.f32.mrf.mxu0
      %v1462 = vpop.f32.mrf.mxu0
      %v1463 = vadd.f32 0.0, %v1462
      %v1464 = vpop.f32.mrf.mxu0
      %1465 = vmatprep.mubr.bf16.mxu0 0
      %1466 = vmatmul.mubr.bf16.gmra.mxu0 %v1363
      %v1467 = vpop.f32.mrf.mxu0
      %v1468 = vadd.f32 0.0, %v1467
      %v1469 = vpop.f32.mrf.mxu0
      %v1470 = vpop.f32.mrf.mxu0
      %v1471 = vadd.f32 0.0, %v1470
      %v1472 = vpop.f32.mrf.mxu0
      %1473 = vmatprep.mubr.bf16.mxu0 0
      %1474 = vmatmul.mubr.bf16.gmra.mxu0 %v1366
      %v1475 = vpop.f32.mrf.mxu0
      %v1476 = vadd.f32 0.0, %v1475
      %v1477 = vpop.f32.mrf.mxu0
      %v1478 = vpop.f32.mrf.mxu0
      %v1479 = vadd.f32 0.0, %v1478
      %v1480 = vpop.f32.mrf.mxu0
      %1481 = vmatprep.mubr.bf16.mxu0 0
      %1482 = vmatmul.mubr.bf16.gmra.mxu0 %v1369
      %v1483 = vpop.f32.mrf.mxu0
      %v1484 = vadd.f32 0.0, %v1483
      %v1485 = vpop.f32.mrf.mxu0
      %v1486 = vpop.f32.mrf.mxu0
      %v1487 = vadd.f32 0.0, %v1486
      %v1488 = vpop.f32.mrf.mxu0
      %1489 = vmatprep.mubr.bf16.mxu0 0
      %1490 = vmatmul.mubr.bf16.gmra.mxu0 %v1372
      %v1491 = vpop.f32.mrf.mxu0
      %v1492 = vadd.f32 0.0, %v1491
      %v1493 = vpop.f32.mrf.mxu0
      %v1494 = vpop.f32.mrf.mxu0
      %v1495 = vadd.f32 0.0, %v1494
      %v1496 = vpop.f32.mrf.mxu0
      %1497 = vmatprep.mubr.bf16.mxu0 0
      %1498 = vmatmul.mubr.bf16.gmra.mxu0 %v1375
      %v1499 = vpop.f32.mrf.mxu0
      %v1500 = vadd.f32 0.0, %v1499
      %v1501 = vpop.f32.mrf.mxu0
      %v1502 = vpop.f32.mrf.mxu0
      %v1503 = vadd.f32 0.0, %v1502
      %v1504 = vpop.f32.mrf.mxu0
      %1505 = vmatprep.mubr.bf16.mxu0 0
      %1506 = vmatmul.mubr.bf16.gmra.mxu0 %v1378
      %v1507 = vpop.f32.mrf.mxu0
      %v1508 = vadd.f32 0.0, %v1507
      %v1509 = vpop.f32.mrf.mxu0
      %v1510 = vpop.f32.mrf.mxu0
      %v1511 = vadd.f32 0.0, %v1510
      %v1512 = vpop.f32.mrf.mxu0
      %1513 = vmatprep.mubr.bf16.mxu0 0
      %1514 = vmatmul.mubr.bf16.gmra.mxu0 %v1381
      %v1515 = vpop.f32.mrf.mxu0
      %v1516 = vadd.f32 0.0, %v1515
      %v1517 = vpop.f32.mrf.mxu0
      %v1518 = vpop.f32.mrf.mxu0
      %v1519 = vadd.f32 0.0, %v1518
      %v1520 = vpop.f32.mrf.mxu0
      %1521 = vmatprep.mubr.bf16.mxu0 0
      %1522 = vmatmul.mubr.bf16.gmra.mxu0 %v1384
      %v1523 = vpop.f32.mrf.mxu0
      %v1524 = vadd.f32 0.0, %v1523
      %v1525 = vpop.f32.mrf.mxu0
      %v1526 = vpop.f32.mrf.mxu0
      %v1527 = vadd.f32 0.0, %v1526
      %v1528 = vpop.f32.mrf.mxu0
      %1529 = vmatprep.mubr.bf16.mxu0 0
      %1530 = vmatmul.mubr.bf16.gmra.mxu0 %v1387
      %v1531 = vpop.f32.mrf.mxu0
      %v1532 = vadd.f32 0.0, %v1531
      %v1533 = vpop.f32.mrf.mxu0
      %v1534 = vpop.f32.mrf.mxu0
      %v1535 = vadd.f32 0.0, %v1534
      %v1536 = vpop.f32.mrf.mxu0
      %1537 = vdwg.mxu0
      %v1538 = vld [vmem:[%s2] sm:$0xff]
      %v1539 = vld [vmem:[%s2 + $0x8] sm:$0xff]
      %v1540 = vld [vmem:[%s2 + $0x10] sm:$0xff]
      %v1541 = vld [vmem:[%s2 + $0x18] sm:$0xff]
      %v1542 = vld [vmem:[%s2 + $0x20] sm:$0xff]
      %v1543 = vld [vmem:[%s2 + $0x28] sm:$0xff]
      %v1544 = vld [vmem:[%s2 + $0x30] sm:$0xff]
      %v1545 = vld [vmem:[%s2 + $0x38] sm:$0xff]
      %v1546 = vld [vmem:[%s2 + $0x40] sm:$0xff]
      %v1547 = vld [vmem:[%s2 + $0x48] sm:$0xff]
      %v1548 = vld [vmem:[%s2 + $0x50] sm:$0xff]
      %v1549 = vld [vmem:[%s2 + $0x58] sm:$0xff]
      %v1550 = vld [vmem:[%s2 + $0x60] sm:$0xff]
      %v1551 = vld [vmem:[%s2 + $0x68] sm:$0xff]
      %v1552 = vld [vmem:[%s2 + $0x70] sm:$0xff]
      %v1553 = vld [vmem:[%s2 + $0x78] sm:$0xff]
      %v1554 = vld [vmem:[%s2 + $0x80] sm:$0xff]
      %v1555 = vld [vmem:[%s2 + $0x88] sm:$0xff]
      %v1556 = vld [vmem:[%s2 + $0x90] sm:$0xff]
      %v1557 = vld [vmem:[%s2 + $0x98] sm:$0xff]
      %v1558 = vld [vmem:[%s2 + $0xa0] sm:$0xff]
      %v1559 = vld [vmem:[%s2 + $0xa8] sm:$0xff]
      %v1560 = vld [vmem:[%s2 + $0xb0] sm:$0xff]
      %v1561 = vld [vmem:[%s2 + $0xb8] sm:$0xff]
      %v1562 = vld [vmem:[%s2 + $0xc0] sm:$0xff]
      %v1563 = vld [vmem:[%s2 + $0xc8] sm:$0xff]
      %v1564 = vld [vmem:[%s2 + $0xd0] sm:$0xff]
      %v1565 = vld [vmem:[%s2 + $0xd8] sm:$0xff]
      %1567 = vset.pattern.permute.xlu0 0
      %1568 = vperm.xlu0 %1567, %v1538
      %v1569 = vpop.permute.xlu0 %1568
      %1572 = vset.pattern.permute.xlu0 0
      %1573 = vperm.xlu0 %1572, %v1539
      %v1574 = vpop.permute.xlu0 %1573
      %1577 = vset.pattern.permute.xlu0 0
      %1578 = vperm.xlu0 %1577, %v1540
      %v1579 = vpop.permute.xlu0 %1578
      %1582 = vset.pattern.permute.xlu0 0
      %1583 = vperm.xlu0 %1582, %v1541
      %v1584 = vpop.permute.xlu0 %1583
      %1587 = vset.pattern.permute.xlu0 0
      %1588 = vperm.xlu0 %1587, %v1542
      %v1589 = vpop.permute.xlu0 %1588
      %1592 = vset.pattern.permute.xlu0 0
      %1593 = vperm.xlu0 %1592, %v1543
      %v1594 = vpop.permute.xlu0 %1593
      %1597 = vset.pattern.permute.xlu0 0
      %1598 = vperm.xlu0 %1597, %v1544
      %v1599 = vpop.permute.xlu0 %1598
      %1602 = vset.pattern.permute.xlu0 0
      %1603 = vperm.xlu0 %1602, %v1545
      %v1604 = vpop.permute.xlu0 %1603
      %1607 = vset.pattern.permute.xlu0 0
      %1608 = vperm.xlu0 %1607, %v1546
      %v1609 = vpop.permute.xlu0 %1608
      %1612 = vset.pattern.permute.xlu0 0
      %1613 = vperm.xlu0 %1612, %v1547
      %v1614 = vpop.permute.xlu0 %1613
      %1617 = vset.pattern.permute.xlu0 0
      %1618 = vperm.xlu0 %1617, %v1548
      %v1619 = vpop.permute.xlu0 %1618
      %1622 = vset.pattern.permute.xlu0 0
      %1623 = vperm.xlu0 %1622, %v1549
      %v1624 = vpop.permute.xlu0 %1623
      %1627 = vset.pattern.permute.xlu0 0
      %1628 = vperm.xlu0 %1627, %v1550
      %v1629 = vpop.permute.xlu0 %1628
      %1632 = vset.pattern.permute.xlu0 0
      %1633 = vperm.xlu0 %1632, %v1551
      %v1634 = vpop.permute.xlu0 %1633
      %1637 = vset.pattern.permute.xlu0 0
      %1638 = vperm.xlu0 %1637, %v1552
      %v1639 = vpop.permute.xlu0 %1638
      %1642 = vset.pattern.permute.xlu0 0
      %1643 = vperm.xlu0 %1642, %v1553
      %v1644 = vpop.permute.xlu0 %1643
      %1647 = vset.pattern.permute.xlu0 0
      %1648 = vperm.xlu0 %1647, %v1554
      %v1649 = vpop.permute.xlu0 %1648
      %1652 = vset.pattern.permute.xlu0 0
      %1653 = vperm.xlu0 %1652, %v1555
      %v1654 = vpop.permute.xlu0 %1653
      %1657 = vset.pattern.permute.xlu0 0
      %1658 = vperm.xlu0 %1657, %v1556
      %v1659 = vpop.permute.xlu0 %1658
      %1662 = vset.pattern.permute.xlu0 0
      %1663 = vperm.xlu0 %1662, %v1557
      %v1664 = vpop.permute.xlu0 %1663
      %1667 = vset.pattern.permute.xlu0 0
      %1668 = vperm.xlu0 %1667, %v1558
      %v1669 = vpop.permute.xlu0 %1668
      %1672 = vset.pattern.permute.xlu0 0
      %1673 = vperm.xlu0 %1672, %v1559
      %v1674 = vpop.permute.xlu0 %1673
      %1677 = vset.pattern.permute.xlu0 0
      %1678 = vperm.xlu0 %1677, %v1560
      %v1679 = vpop.permute.xlu0 %1678
      %1682 = vset.pattern.permute.xlu0 0
      %1683 = vperm.xlu0 %1682, %v1561
      %v1684 = vpop.permute.xlu0 %1683
      %1687 = vset.pattern.permute.xlu0 0
      %1688 = vperm.xlu0 %1687, %v1562
      %v1689 = vpop.permute.xlu0 %1688
      %1692 = vset.pattern.permute.xlu0 0
      %1693 = vperm.xlu0 %1692, %v1563
      %v1694 = vpop.permute.xlu0 %1693
      %1697 = vset.pattern.permute.xlu0 0
      %1698 = vperm.xlu0 %1697, %v1564
      %v1699 = vpop.permute.xlu0 %1698
      %1702 = vset.pattern.permute.xlu0 0
      %1703 = vperm.xlu0 %1702, %v1565
      %v1704 = vpop.permute.xlu0 %1703
      %v1706 = vmul.f32 %v1428, %v1569
      %v1707 = vmul.f32 %v1431, %v1574
      %v1708 = vmul.f32 %v1436, %v1579
      %v1709 = vmul.f32 %v1439, %v1584
      %v1710 = vmul.f32 %v1444, %v1589
      %v1711 = vmul.f32 %v1447, %v1594
      %v1712 = vmul.f32 %v1452, %v1599
      %v1713 = vmul.f32 %v1455, %v1604
      %v1714 = vmul.f32 %v1460, %v1609
      %v1715 = vmul.f32 %v1463, %v1614
      %v1716 = vmul.f32 %v1468, %v1619
      %v1717 = vmul.f32 %v1471, %v1624
      %v1718 = vmul.f32 %v1476, %v1629
      %v1719 = vmul.f32 %v1479, %v1634
      %v1720 = vmul.f32 %v1484, %v1639
      %v1721 = vmul.f32 %v1487, %v1644
      %v1722 = vmul.f32 %v1492, %v1649
      %v1723 = vmul.f32 %v1495, %v1654
      %v1724 = vmul.f32 %v1500, %v1659
      %v1725 = vmul.f32 %v1503, %v1664
      %v1726 = vmul.f32 %v1508, %v1669
      %v1727 = vmul.f32 %v1511, %v1674
      %v1728 = vmul.f32 %v1516, %v1679
      %v1729 = vmul.f32 %v1519, %v1684
      %v1730 = vmul.f32 %v1524, %v1689
      %v1731 = vmul.f32 %v1527, %v1694
      %v1732 = vmul.f32 %v1532, %v1699
      %v1733 = vmul.f32 %v1535, %v1704
      %1734 = vst [vmem:[%s204] sm:$0xff] %v1706
      %1735 = vst [vmem:[%s204 + $0x8] sm:$0xff] %v1707
      %1736 = vst [vmem:[%s204 + $0x10] sm:$0xff] %v1708
      %1737 = vst [vmem:[%s204 + $0x18] sm:$0xff] %v1709
      %1738 = vst [vmem:[%s204 + $0x20] sm:$0xff] %v1710
      %1739 = vst [vmem:[%s204 + $0x28] sm:$0xff] %v1711
      %1740 = vst [vmem:[%s204 + $0x30] sm:$0xff] %v1712
      %1741 = vst [vmem:[%s204 + $0x38] sm:$0xff] %v1713
      %1742 = vst [vmem:[%s204 + $0x40] sm:$0xff] %v1714
      %1743 = vst [vmem:[%s204 + $0x48] sm:$0xff] %v1715
      %1744 = vst [vmem:[%s204 + $0x50] sm:$0xff] %v1716
      %1745 = vst [vmem:[%s204 + $0x58] sm:$0xff] %v1717
      %1746 = vst [vmem:[%s204 + $0x60] sm:$0xff] %v1718
      %1747 = vst [vmem:[%s204 + $0x68] sm:$0xff] %v1719
      %1748 = vst [vmem:[%s204 + $0x70] sm:$0xff] %v1720
      %1749 = vst [vmem:[%s204 + $0x78] sm:$0xff] %v1721
      %1750 = vst [vmem:[%s204 + $0x80] sm:$0xff] %v1722
      %1751 = vst [vmem:[%s204 + $0x88] sm:$0xff] %v1723
      %1752 = vst [vmem:[%s204 + $0x90] sm:$0xff] %v1724
      %1753 = vst [vmem:[%s204 + $0x98] sm:$0xff] %v1725
      %1754 = vst [vmem:[%s204 + $0xa0] sm:$0xff] %v1726
      %1755 = vst [vmem:[%s204 + $0xa8] sm:$0xff] %v1727
      %1756 = vst [vmem:[%s204 + $0xb0] sm:$0xff] %v1728
      %1757 = vst [vmem:[%s204 + $0xb8] sm:$0xff] %v1729
      %1758 = vst [vmem:[%s204 + $0xc0] sm:$0xff] %v1730
      %1759 = vst [vmem:[%s204 + $0xc8] sm:$0xff] %v1731
      %1760 = vst [vmem:[%s204 + $0xd0] sm:$0xff] %v1732
      %1761 = vst [vmem:[%s204 + $0xd8] sm:$0xff] %v1733
      %1762 = vst [vmem:[%s204 + $0xe0] sm:$0xff] 0.0
      %1763 = vst [vmem:[%s204 + $0xe8] sm:$0xff] 0.0
      %v1764 = vadd.f32 %v1706, %v1707
      %v1765 = vadd.f32 %v1764, %v1708
      %v1766 = vadd.f32 %v1765, %v1709
      %v1767 = vadd.f32 %v1766, %v1710
      %v1768 = vadd.f32 %v1767, %v1711
      %v1769 = vadd.f32 %v1768, %v1712
      %v1770 = vadd.f32 %v1769, %v1713
      %v1771 = vadd.f32 %v1770, %v1714
      %v1772 = vadd.f32 %v1771, %v1715
      %v1773 = vadd.f32 %v1772, %v1716
      %v1774 = vadd.f32 %v1773, %v1717
      %v1775 = vadd.f32 %v1774, %v1718
      %v1776 = vadd.f32 %v1775, %v1719
      %v1777 = vadd.f32 %v1776, %v1720
      %v1778 = vadd.f32 %v1777, %v1721
      %v1779 = vadd.f32 %v1778, %v1722
      %v1780 = vadd.f32 %v1779, %v1723
      %v1781 = vadd.f32 %v1780, %v1724
      %v1782 = vadd.f32 %v1781, %v1725
      %v1783 = vadd.f32 %v1782, %v1726
      %v1784 = vadd.f32 %v1783, %v1727
      %v1785 = vadd.f32 %v1784, %v1728
      %v1786 = vadd.f32 %v1785, %v1729
      %v1787 = vadd.f32 %v1786, %v1730
      %v1788 = vadd.f32 %v1787, %v1731
      %v1789 = vadd.f32 %v1788, %v1732
      %v1790 = vadd.f32 %v1789, %v1733
      %v1791 = vrot.slane %v1790, 4
      %v1792 = vadd.f32 %v1790, %v1791
      %v1793 = vrot.slane %v1792, 2
      %v1794 = vadd.f32 %v1792, %v1793
      %v1795 = vrot.slane %v1794, 1
      %v1796 = vadd.f32 %v1794, %v1795
      %v1797 = vmul.f32 %v1706, %v1706
      %v1798 = vmul.f32 %v1707, %v1707
      %v1799 = vmul.f32 %v1708, %v1708
      %v1800 = vmul.f32 %v1709, %v1709
      %v1801 = vmul.f32 %v1710, %v1710
      %v1802 = vmul.f32 %v1711, %v1711
      %v1803 = vmul.f32 %v1712, %v1712
      %v1804 = vmul.f32 %v1713, %v1713
      %v1805 = vmul.f32 %v1714, %v1714
      %v1806 = vmul.f32 %v1715, %v1715
      %v1807 = vmul.f32 %v1716, %v1716
      %v1808 = vmul.f32 %v1717, %v1717
      %v1809 = vmul.f32 %v1718, %v1718
      %v1810 = vmul.f32 %v1719, %v1719
      %v1811 = vmul.f32 %v1720, %v1720
      %v1812 = vmul.f32 %v1721, %v1721
      %v1813 = vmul.f32 %v1722, %v1722
      %v1814 = vmul.f32 %v1723, %v1723
      %v1815 = vmul.f32 %v1724, %v1724
      %v1816 = vmul.f32 %v1725, %v1725
      %v1817 = vmul.f32 %v1726, %v1726
      %v1818 = vmul.f32 %v1727, %v1727
      %v1819 = vmul.f32 %v1728, %v1728
      %v1820 = vmul.f32 %v1729, %v1729
      %v1821 = vmul.f32 %v1730, %v1730
      %v1822 = vmul.f32 %v1731, %v1731
      %v1823 = vmul.f32 %v1732, %v1732
      %v1824 = vmul.f32 %v1733, %v1733
      %v1825 = vadd.f32 %v1797, %v1798
      %v1826 = vadd.f32 %v1825, %v1799
      %v1827 = vadd.f32 %v1826, %v1800
      %v1828 = vadd.f32 %v1827, %v1801
      %v1829 = vadd.f32 %v1828, %v1802
      %v1830 = vadd.f32 %v1829, %v1803
      %v1831 = vadd.f32 %v1830, %v1804
      %v1832 = vadd.f32 %v1831, %v1805
      %v1833 = vadd.f32 %v1832, %v1806
      %v1834 = vadd.f32 %v1833, %v1807
      %v1835 = vadd.f32 %v1834, %v1808
      %v1836 = vadd.f32 %v1835, %v1809
      %v1837 = vadd.f32 %v1836, %v1810
      %v1838 = vadd.f32 %v1837, %v1811
      %v1839 = vadd.f32 %v1838, %v1812
      %v1840 = vadd.f32 %v1839, %v1813
      %v1841 = vadd.f32 %v1840, %v1814
      %v1842 = vadd.f32 %v1841, %v1815
      %v1843 = vadd.f32 %v1842, %v1816
      %v1844 = vadd.f32 %v1843, %v1817
      %v1845 = vadd.f32 %v1844, %v1818
      %v1846 = vadd.f32 %v1845, %v1819
      %v1847 = vadd.f32 %v1846, %v1820
      %v1848 = vadd.f32 %v1847, %v1821
      %v1849 = vadd.f32 %v1848, %v1822
      %v1850 = vadd.f32 %v1849, %v1823
      %v1851 = vadd.f32 %v1850, %v1824
      %v1852 = vrot.slane %v1851, 4
      %v1853 = vadd.f32 %v1851, %v1852
      %v1854 = vrot.slane %v1853, 2
      %v1855 = vadd.f32 %v1853, %v1854
      %v1856 = vrot.slane %v1855, 1
      %v1857 = vadd.f32 %v1855, %v1856
      %vm1858 = vcmask 1040384
      %v1859 = vsel %vm1858, %v1796, %v1857
      %1860 = vst [vmem:[%s208] sm:$0x3] %v1859
      %p1861 = scmp.lt.s32.totalorder %s16, 1
      %s1862 = scalar_select %p1861, %s16, 1
      %s1863 = smul.addr %s1862, 30
      %s1864 = smul.addr %s1863, 8
      %s1865 = scalar_lea.vmem %s3, %s1864
      %p1866 = scmp.lt.s32.totalorder %s16, 1
      %s1867 = scalar_select %p1866, %s16, 1
      %s1868 = smul.addr %s1867, 2
      %s1869 = scalar_lea.vmem %s4, %s1868
      // Predicated region
      $region33: #{_lambda_.3} parent=31 // pred_check
        %p1870 = pneg %p102
      $region34: #{_lambda_.3} parent=31 // pred_check_branch
        %1872 = sbr.rel (%p1870) target = $region36
      $region35: #{_lambda_.3} parent=31 // pred_region
        _
      $region36: #{_lambda_.3} parent=31 // pred_fallthru
        _
      // Predicated region
      $region37: #{_lambda_.3} parent=31 // pred_check
        %p1873 = pneg %p128
      $region38: #{_lambda_.3} parent=31 // pred_check_branch
        %1875 = sbr.rel (%p1873) target = $region40
      $region39: #{_lambda_.3} parent=31 // pred_region
        _
      $region40: #{_lambda_.3} parent=31 // pred_fallthru
        _
    $region32: #{_lambda_.3} parent=5 // pred_fallthru
      _
    %p1876 = scmp.le.s32.totalorder 2, %s11
    // Predicated region
    $region41: #{_lambda_.3} parent=5 // pred_check
      %p1877 = pneg %p1876
    $region42: #{_lambda_.3} parent=5 // pred_check_branch
      %1879 = sbr.rel (%p1877) target = $region44
    $region43: #{_lambda_.3} parent=5 // pred_region
      %s1880 = ssub.s32 %s11, 2
      // Predicated region
      $region45: #{_lambda_.3} parent=43 // pred_check
        %p1881 = pneg %p108
      $region46: #{_lambda_.3} parent=43 // pred_check_branch
        %1883 = sbr.rel (%p1881) target = $region48
      $region47: #{_lambda_.3} parent=43 // pred_region
        %p1884 = scmp.lt.s32.totalorder %s17, 1
        %s1885 = scalar_select %p1884, %s17, 1
        %s1886 = smul.addr %s1885, 30
        %s1887 = smul.addr %s1886, 8
        %s1888 = scalar_lea.vmem %s3, %s1887
      $region48: #{_lambda_.3} parent=43 // pred_fallthru
        _
      // Predicated region
      $region49: #{_lambda_.3} parent=43 // pred_check
        %p1889 = pneg %p134
      $region50: #{_lambda_.3} parent=43 // pred_check_branch
        %1891 = sbr.rel (%p1889) target = $region52
      $region51: #{_lambda_.3} parent=43 // pred_region
        %p1892 = scmp.lt.s32.totalorder %s17, 1
        %s1893 = scalar_select %p1892, %s17, 1
        %s1894 = smul.addr %s1893, 2
        %s1895 = scalar_lea.vmem %s4, %s1894
      $region52: #{_lambda_.3} parent=43 // pred_fallthru
        _
    $region44: #{_lambda_.3} parent=5 // pred_fallthru
      _
  $region6: #{_lambda_.3} parent=0 // loop_footer
    %s15 = sadd.s32 1, %s11
  $region7: #{_lambda_.3} parent=0 // loop_footer_branch
    %10 = sbr.rel target = $region3
  $region8: #{_lambda_.3} parent=0 // loop_exit
    _

</llo_original>
